<compile_context>
chip_gen: v6e
topology: v6e:2x2x1
jax: 0.10.0
libtpu: 0.0.40
codegen_flags: <defaults>
</compile_context>

<pallas_src>
import functools
import math

import jax
import jax.numpy as jnp
from jax.experimental import pallas as pl
from jax.experimental.pallas import tpu as pltpu

THRESH = 0.3   # self.thresh
BETA = 0.02    # neuron_type != 'TE-R'  ->  beta = 0.02
DECAY = 0.5    # self.decay


def _round_up(x, m):
    return ((x + m - 1) // m) * m


def te_sfnn_kernel(x_ref, wi_ref, wh_ref, b_ref, ce_ref,
                   out_ref, fspike_ref, fmem_ref, fthr_ref,
                   xin_ref, *, seq_len, mask_tail):
    """One grid step == TS timesteps of the recurrence.

    x_ref  : (TS*Bp, F)    features for this time block (matmul dtype)
    wi_ref : (F, Hp)       i2h weight (resident, single-buffered)
    wh_ref : (Hp, Hp)      h2h weight (resident, single-buffered)
    b_ref  : (1, Hp)       fused bias bi + bh (f32)
    ce_ref : (TS, Hp)      temporal-encoding rows for this block (f32)
    out_ref: (TS, Bp, Hp)  spike outputs (bf16 is lossless for 0/1)
    fspike/fmem/fthr_ref: (Bp, Hp) resident f32 state (final-state outputs)
    xin_ref: (TS*Bp, Hp)   f32 VMEM scratch holding the block input projection
    """
    ts, bp, hp = out_ref.shape
    tb = pl.program_id(0)

    # init_states=None path: zero spike/mem, thresh = 0.3 (first block only).
    @pl.when(tb == 0)
    def _():
        fspike_ref[...] = jnp.zeros_like(fspike_ref)
        fmem_ref[...] = jnp.zeros_like(fmem_ref)
        fthr_ref[...] = jnp.full_like(fthr_ref, THRESH)

    # Whole-block input projection on the MXU (f32 accumulation), staged through
    # VMEM so the unrolled recurrence below only keeps (Bp, Hp) state in vregs.
    xin_ref[...] = jnp.dot(x_ref[...], wi_ref[...],
                           preferred_element_type=jnp.float32) + b_ref[...]

    wh = wh_ref[...]
    spike = fspike_ref[...]
    mem = fmem_ref[...]
    thr = fthr_ref[...]

    for t in range(ts):                        # static unroll; TS is small
        rec = jnp.dot(spike.astype(wh.dtype), wh,
                      preferred_element_type=jnp.float32)
        h1 = xin_ref[pl.ds(t * bp, bp), :] + rec
        ce_t = ce_ref[t:t + 1, :]              # (1, Hp) -> broadcast over batch
        # mem_update_hidden (TE-N branch); thr uses the pre-update mem.
        thr_new = thr + mem * ce_t - (thr - THRESH) * BETA
        mem_new = mem * DECAY * (1.0 - spike) + h1
        spike_new = (mem_new > thr_new).astype(jnp.float32)
        if mask_tail:
            valid = (tb * ts + t) < seq_len    # freeze state on padded tail steps
            spike = jnp.where(valid, spike_new, spike)
            mem = jnp.where(valid, mem_new, mem)
            thr = jnp.where(valid, thr_new, thr)
        else:
            spike, mem, thr = spike_new, mem_new, thr_new
        out_ref[t] = spike.astype(out_ref.dtype)

    # Persist state in the resident final-state output blocks.
    fspike_ref[...] = spike
    fmem_ref[...] = mem
    fthr_ref[...] = thr


def te_sfnn_forward(features, wi, bi, wh, bh, ce, *,
                    time_block=None,
                    matmul_dtype=jnp.bfloat16,
                    spike_dtype=jnp.bfloat16):
    """features: (S, B, F).  wi: (F, H), wh: (H, H), bi/bh: (1, H), ce: (H, T>=S).

    Returns (out_seq (S, B, H) f32, (spike, mem, thr, step_num)) like the module.
    """
    S, B, F = features.shape
    H = wi.shape[1]

    Bp = _round_up(B, 16)                      # sublanes (16 keeps bf16 tiles dense)
    Hp = _round_up(H, 128)                     # lanes
    if time_block is None:
        TS = S if S <= 16 else 16
    else:
        TS = int(time_block)
        if TS < S and TS % 8 != 0:
            raise ValueError("time_block must be a multiple of 8 or >= seq_len")
    Sp = _round_up(S, TS)

    f32 = jnp.float32
    mm_dt = jax.dtypes.canonicalize_dtype(matmul_dtype)
    out_dt = jax.dtypes.canonicalize_dtype(spike_dtype)

    # Padded, layout-friendly operands.  Padded hidden columns are provably inert
    # (spike=0, mem=0, thr=0.3 forever); padded batch rows / tail steps are junk
    # that gets sliced away.  F is deliberately left unpadded.
    feats_p = (jnp.zeros((Sp, Bp, F), mm_dt)
               .at[:S, :B, :].set(features.astype(mm_dt))
               .reshape(Sp * Bp, F))
    wi_p = jnp.zeros((F, Hp), mm_dt).at[:, :H].set(wi.astype(mm_dt))
    wh_p = jnp.zeros((Hp, Hp), mm_dt).at[:H, :H].set(wh.astype(mm_dt))
    b_p = jnp.zeros((1, Hp), f32).at[:, :H].set((bi + bh).astype(f32))
    # ce row for step t, laid out time-major: row t == ce[:, t].
    ce_p = jnp.zeros((Sp, Hp), f32).at[:S, :H].set(ce[:, :S].T.astype(f32))

    kernel = functools.partial(te_sfnn_kernel, seq_len=S, mask_tail=(Sp != S))

    out_shapes = (
        jax.ShapeDtypeStruct((Sp, Bp, Hp), out_dt),    # spike sequence (padded)
        jax.ShapeDtypeStruct((Bp, Hp), f32),           # final h1_spike
        jax.ShapeDtypeStruct((Bp, Hp), f32),           # final h1_mem
        jax.ShapeDtypeStruct((Bp, Hp), f32),           # final h1_thresh
    )

    # Explicit VMEM budget (conservative: weights counted double-buffered).
    need = (2 * (F * Hp + Hp * Hp) * mm_dt.itemsize    # wi + wh
            + 2 * Hp * 4                               # fused bias
            + 2 * TS * Bp * F * mm_dt.itemsize         # features block
            + 2 * TS * Hp * 4                          # ce block
            + 2 * TS * Bp * Hp * out_dt.itemsize       # out block
            + 2 * 3 * Bp * Hp * 4                      # resident state outputs
            + TS * Bp * Hp * 4)                        # xin scratch
    need = int(need * 1.25) + (4 << 20)                # headroom for compiler scratch
    try:
        cap = int(pltpu.get_tpu_info().vmem_capacity_bytes)
    except Exception:
        cap = 64 << 20
    vmem_limit = max(16 << 20, min(need, cap * 9 // 10))

    def build(single_buffer_weights):
        resident = (dict(pipeline_mode=pl.Buffered(1))
                    if single_buffer_weights else {})
        grid_spec = pltpu.PrefetchScalarGridSpec(
            num_scalar_prefetch=0,
            grid=(Sp // TS,),
            in_specs=[
                pl.BlockSpec((TS * Bp, F), lambda t: (t, 0)),          # features
                pl.BlockSpec((F, Hp), lambda t: (0, 0), **resident),   # i2h weight
                pl.BlockSpec((Hp, Hp), lambda t: (0, 0), **resident),  # h2h weight
                pl.BlockSpec((1, Hp), lambda t: (0, 0), **resident),   # fused bias
                pl.BlockSpec((TS, Hp), lambda t: (t, 0)),              # ce rows
            ],
            out_specs=[
                pl.BlockSpec((TS, Bp, Hp), lambda t: (t, 0, 0)),       # spikes
                pl.BlockSpec((Bp, Hp), lambda t: (0, 0)),              # state: spike
                pl.BlockSpec((Bp, Hp), lambda t: (0, 0)),              # state: mem
                pl.BlockSpec((Bp, Hp), lambda t: (0, 0)),              # state: thresh
            ],
            scratch_shapes=[pltpu.VMEM((TS * Bp, Hp), f32)],
        )
        return pl.pallas_call(
            kernel,
            out_shape=out_shapes,
            grid_spec=grid_spec,
            compiler_params=pltpu.CompilerParams(
                dimension_semantics=("arbitrary",),
                vmem_limit_bytes=int(vmem_limit),
            ),
        )

    try:
        out_seq_p, fs_p, fm_p, ft_p = build(True)(feats_p, wi_p, wh_p, b_p, ce_p)
    except Exception:
        # TODO(synk): this Pallas build rejected pl.Buffered(1) single-buffering of
        # the resident weight blocks; fall back to default double-buffering (only
        # costs VMEM headroom at large hidden sizes).
        out_seq_p, fs_p, fm_p, ft_p = build(False)(feats_p, wi_p, wh_p, b_p, ce_p)

    out_seq = out_seq_p[:S, :B, :H].astype(f32)   # 0/1 values: bf16 -> f32 is exact
    final = (fs_p[:B, :H], fm_p[:B, :H], ft_p[:B, :H],
             jnp.array(S, dtype=jnp.int32))
    return out_seq, final


def te_sfnn_reference(features, wi, bi, wh, bh, ce, matmul_dtype=jnp.float32):
    """Pure-JAX mirror of the PyTorch forward (TE-N, recurrent, init_states=None)."""
    S, B, F = features.shape
    H = wi.shape[1]
    prec = jax.lax.Precision.HIGHEST
    b = (bi + bh).astype(jnp.float32)
    wi_c = wi.astype(matmul_dtype)
    wh_c = wh.astype(matmul_dtype)
    spike = jnp.zeros((B, H), jnp.float32)
    mem = jnp.zeros((B, H), jnp.float32)
    thr = jnp.full((B, H), THRESH, jnp.float32)
    outs = []
    for t in range(S):
        x = features[t].astype(matmul_dtype)
        h1 = (jnp.dot(x, wi_c, precision=prec,
                      preferred_element_type=jnp.float32)
              + b
              + jnp.dot(spike.astype(matmul_dtype), wh_c, precision=prec,
                        preferred_element_type=jnp.float32))
        ce_t = ce[:, t][None, :].astype(jnp.float32)
        thr = thr + mem * ce_t - (thr - THRESH) * BETA
        mem = mem * DECAY * (1.0 - spike) + h1
        spike = (mem > thr).astype(jnp.float32)
        outs.append(spike)
    return jnp.stack(outs, 0), (spike, mem, thr)


if __name__ == "__main__":
    # Small shapes consistent with the module: seq=8, batch=2, feature_dim=16,
    # hidden=32, T=1000.
    S, B, F, H, T = 8, 2, 16, 32, 1000
    key = jax.random.PRNGKey(0)
    k_feat, k_feat2, k_wi, k_bi, k_wh, k_ce = jax.random.split(key, 6)

    features = jax.random.normal(k_feat, (S, B, F), jnp.float32)

    # i2h: nn.Linear(feature_dim, hidden); weight stored as (F, H) so x @ wi == x @ W.T
    bound = 1.0 / math.sqrt(F)
    wi = jax.random.uniform(k_wi, (F, H), jnp.float32, -bound, bound)
    bi = jax.random.uniform(k_bi, (1, H), jnp.float32, -bound, bound)

    # h2h: orthogonal weight init, zero bias.
    wh_raw = jax.random.normal(k_wh, (H, H), jnp.float32)
    wh, _ = jnp.linalg.qr(wh_raw)
    wh = wh.astype(jnp.float32)
    bh = jnp.zeros((1, H), jnp.float32)

    # TE-N temporal encoding: ce ~ N(0.01, 0.01), shape (hidden, T).
    ce = (0.01 + 0.01 * jax.random.normal(k_ce, (H, T))).astype(jnp.float32)

    # 1) Strict correctness check on the exact path (f32 matmuls, f32 spikes).
    out32, (fs, fm, ft, sn) = te_sfnn_forward(
        features, wi, bi, wh, bh, ce,
        matmul_dtype=jnp.float32, spike_dtype=jnp.float32)
    jax.block_until_ready((out32, fs, fm, ft))
    ref_seq, (rs, rm, rt) = te_sfnn_reference(features, wi, bi, wh, bh, ce)
    assert out32.shape == (S, B, H)
    assert jnp.allclose(out32, ref_seq), "out_seq mismatch (f32 path)"
    assert jnp.allclose(fs, rs), "final spike mismatch (f32 path)"
    assert jnp.allclose(fm, rm, atol=1e-5), "final mem mismatch (f32 path)"
    assert jnp.allclose(ft, rt, atol=1e-5), "final thresh mismatch (f32 path)"
    assert int(sn) == S

    # 2) Multi-block + padded-tail path (S=12 with time_block=8 -> grid=2, masked
    #    tail), still on the exact f32 path.
    S2 = 12
    features2 = jax.random.normal(k_feat2, (S2, B, F), jnp.float32)
    out32b, (fs2, fm2, ft2, sn2) = te_sfnn_forward(
        features2, wi, bi, wh, bh, ce, time_block=8,
        matmul_dtype=jnp.float32, spike_dtype=jnp.float32)
    jax.block_until_ready((out32b, fs2, fm2, ft2))
    ref_seq2, (rs2, rm2, rt2) = te_sfnn_reference(features2, wi, bi, wh, bh, ce)
    assert out32b.shape == (S2, B, H)
    assert jnp.allclose(out32b, ref_seq2), "out_seq mismatch (multi-block path)"
    assert jnp.allclose(fs2, rs2), "final spike mismatch (multi-block path)"
    assert jnp.allclose(fm2, rm2, atol=1e-5), "final mem mismatch (multi-block path)"
    assert jnp.allclose(ft2, rt2, atol=1e-5), "final thresh mismatch (multi-block path)"
    assert int(sn2) == S2

    # 3) Default production path: bf16 MXU operands + bf16 spike stream.
    #    Spikes are exactly {0, 1}; near-threshold rounding can legitimately flip
    #    individual spikes vs. the f32 reference, so only structural checks here.
    out_bf, (fsb, fmb, ftb, snb) = te_sfnn_forward(features, wi, bi, wh, bh, ce)
    jax.block_until_ready((out_bf, fsb, fmb, ftb))
    assert out_bf.shape == (S, B, H)
    assert bool(jnp.all((out_bf == 0.0) | (out_bf == 1.0)))
    assert bool(jnp.all((fsb == 0.0) | (fsb == 1.0)))
    assert bool(jnp.all(jnp.isfinite(fmb)))
    assert bool(jnp.all(jnp.isfinite(ftb)))
    assert int(snb) == S

    # TODO(synk): total_spike / total_len running counters and the ActFun_adp
    # surrogate-gradient backward are training-time bookkeeping, not part of this
    # forward kernel.
    print("KERNEL_OK")
</pallas_src>

<mosaic_0001>
module attributes {stable_mosaic.version = 11 : i64} {
  func.func @te_sfnn_kernel(%arg0: i32, %arg1: memref<128x16xf32, #tpu.memory_space<vmem>>, %arg2: memref<16x128xf32, #tpu.memory_space<vmem>>, %arg3: memref<128x128xf32, #tpu.memory_space<vmem>>, %arg4: memref<1x128xf32, #tpu.memory_space<vmem>>, %arg5: memref<8x128xf32, #tpu.memory_space<vmem>>, %arg6: memref<8x16x128xf32, #tpu.memory_space<vmem>>, %arg7: memref<16x128xf32, #tpu.memory_space<vmem>>, %arg8: memref<16x128xf32, #tpu.memory_space<vmem>>, %arg9: memref<16x128xf32, #tpu.memory_space<vmem>>, %arg10: memref<128x128xf32, #tpu.memory_space<vmem>>) attributes {dimension_semantics = [#tpu.dimension_semantics<arbitrary>], iteration_bounds = array<i64: 1>, scalar_prefetch = 0 : i64, scratch_operands = 1 : i64, tpu.core_type = #tpu.core_type<tc>, window_params = [{transform_indices = @transform_0, window_bounds = array<i64: 128, 16>}, {pipeline_mode = #tpu.pipeline_mode<synchronous>, transform_indices = @transform_1, window_bounds = array<i64: 16, 128>}, {pipeline_mode = #tpu.pipeline_mode<synchronous>, transform_indices = @transform_2, window_bounds = array<i64: 128, 128>}, {pipeline_mode = #tpu.pipeline_mode<synchronous>, transform_indices = @transform_3, window_bounds = array<i64: 1, 128>}, {transform_indices = @transform_4, window_bounds = array<i64: 8, 128>}, {transform_indices = @transform_5, window_bounds = array<i64: 8, 16, 128>}, {pipeline_mode = #tpu.pipeline_mode<synchronous>, transform_indices = @transform_6, window_bounds = array<i64: 16, 128>}, {pipeline_mode = #tpu.pipeline_mode<synchronous>, transform_indices = @transform_7, window_bounds = array<i64: 16, 128>}, {pipeline_mode = #tpu.pipeline_mode<synchronous>, transform_indices = @transform_8, window_bounds = array<i64: 16, 128>}]} {
    %c0_i32 = arith.constant 0 : i32
    %0 = arith.cmpi eq, %arg0, %c0_i32 : i32
    %1 = arith.extui %0 : i1 to i32
    %c0_i32_0 = arith.constant 0 : i32
    %2 = arith.cmpi ne, %1, %c0_i32_0 : i32
    scf.if %2 {
      %cst_104 = arith.constant 0.000000e+00 : f32
      %209 = vector.broadcast %cst_104 : f32 to vector<16x128xf32>
      %c0_105 = arith.constant 0 : index
      %c0_106 = arith.constant 0 : index
      %210 = vector.load %arg7[%c0_105, %c0_106] : memref<16x128xf32, #tpu.memory_space<vmem>>, vector<16x128xf32>
      tpu.vector_store %arg7[%c0_105, %c0_106], %209 {strides = array<i32>} : memref<16x128xf32, #tpu.memory_space<vmem>>, vector<16x128xf32>,
      %cst_107 = arith.constant 0.000000e+00 : f32
      %211 = vector.broadcast %cst_107 : f32 to vector<16x128xf32>
      %c0_108 = arith.constant 0 : index
      %c0_109 = arith.constant 0 : index
      %212 = vector.load %arg8[%c0_108, %c0_109] : memref<16x128xf32, #tpu.memory_space<vmem>>, vector<16x128xf32>
      tpu.vector_store %arg8[%c0_108, %c0_109], %211 {strides = array<i32>} : memref<16x128xf32, #tpu.memory_space<vmem>>, vector<16x128xf32>,
      %cst_110 = arith.constant 3.000000e-01 : f32
      %213 = vector.broadcast %cst_110 : f32 to vector<16x128xf32>
      %c0_111 = arith.constant 0 : index
      %c0_112 = arith.constant 0 : index
      %214 = vector.load %arg9[%c0_111, %c0_112] : memref<16x128xf32, #tpu.memory_space<vmem>>, vector<16x128xf32>
      tpu.vector_store %arg9[%c0_111, %c0_112], %213 {strides = array<i32>} : memref<16x128xf32, #tpu.memory_space<vmem>>, vector<16x128xf32>,
    } else {
    }
    %c0 = arith.constant 0 : index
    %c0_1 = arith.constant 0 : index
    %3 = vector.load %arg1[%c0, %c0_1] : memref<128x16xf32, #tpu.memory_space<vmem>>, vector<128x16xf32>
    %c0_2 = arith.constant 0 : index
    %c0_3 = arith.constant 0 : index
    %4 = vector.load %arg2[%c0_2, %c0_3] : memref<16x128xf32, #tpu.memory_space<vmem>>, vector<16x128xf32>
    %cst = arith.constant dense<0.000000e+00> : vector<128x128xf32>
    %5 = tpu.matmul %3, %4, %cst {dimension_numbers = #tpu.dot_dimension_numbers<[1], [0], [0], [1], [0, 0, 1, 1], [], []>} : vector<128x16xf32>, vector<16x128xf32>, vector<128x128xf32> -> vector<128x128xf32>
    %c0_4 = arith.constant 0 : index
    %c0_5 = arith.constant 0 : index
    %6 = vector.load %arg4[%c0_4, %c0_5] : memref<1x128xf32, #tpu.memory_space<vmem>>, vector<1x128xf32>
    %7 = vector.broadcast %6 : vector<1x128xf32> to vector<128x128xf32>
    %8 = arith.addf %5, %7 : vector<128x128xf32>
    %c0_6 = arith.constant 0 : index
    %c0_7 = arith.constant 0 : index
    %9 = vector.load %arg10[%c0_6, %c0_7] : memref<128x128xf32, #tpu.memory_space<vmem>>, vector<128x128xf32>
    tpu.vector_store %arg10[%c0_6, %c0_7], %8 {strides = array<i32>} : memref<128x128xf32, #tpu.memory_space<vmem>>, vector<128x128xf32>,
    %c0_8 = arith.constant 0 : index
    %c0_9 = arith.constant 0 : index
    %10 = vector.load %arg3[%c0_8, %c0_9] : memref<128x128xf32, #tpu.memory_space<vmem>>, vector<128x128xf32>
    %c0_10 = arith.constant 0 : index
    %c0_11 = arith.constant 0 : index
    %11 = vector.load %arg7[%c0_10, %c0_11] : memref<16x128xf32, #tpu.memory_space<vmem>>, vector<16x128xf32>
    %c0_12 = arith.constant 0 : index
    %c0_13 = arith.constant 0 : index
    %12 = vector.load %arg8[%c0_12, %c0_13] : memref<16x128xf32, #tpu.memory_space<vmem>>, vector<16x128xf32>
    %c0_14 = arith.constant 0 : index
    %c0_15 = arith.constant 0 : index
    %13 = vector.load %arg9[%c0_14, %c0_15] : memref<16x128xf32, #tpu.memory_space<vmem>>, vector<16x128xf32>
    %cst_16 = arith.constant dense<0.000000e+00> : vector<16x128xf32>
    %14 = tpu.matmul %11, %10, %cst_16 {dimension_numbers = #tpu.dot_dimension_numbers<[1], [0], [0], [1], [0, 0, 1, 1], [], []>} : vector<16x128xf32>, vector<128x128xf32>, vector<16x128xf32> -> vector<16x128xf32>
    %c0_17 = arith.constant 0 : index
    %c0_18 = arith.constant 0 : index
    %15 = vector.load %arg10[%c0_17, %c0_18] : memref<128x128xf32, #tpu.memory_space<vmem>>, vector<16x128xf32>
    %16 = arith.addf %15, %14 : vector<16x128xf32>
    %c0_19 = arith.constant 0 : index
    %c0_20 = arith.constant 0 : index
    %17 = vector.load %arg5[%c0_19, %c0_20] : memref<8x128xf32, #tpu.memory_space<vmem>>, vector<1x128xf32>
    %18 = vector.broadcast %17 : vector<1x128xf32> to vector<16x128xf32>
    %19 = arith.mulf %12, %18 : vector<16x128xf32>
    %20 = arith.addf %13, %19 : vector<16x128xf32>
    %cst_21 = arith.constant 3.000000e-01 : f32
    %21 = vector.broadcast %cst_21 : f32 to vector<16x128xf32>
    %22 = arith.subf %13, %21 : vector<16x128xf32>
    %cst_22 = arith.constant 2.000000e-02 : f32
    %23 = vector.broadcast %cst_22 : f32 to vector<16x128xf32>
    %24 = arith.mulf %22, %23 : vector<16x128xf32>
    %25 = arith.subf %20, %24 : vector<16x128xf32>
    %cst_23 = arith.constant 5.000000e-01 : f32
    %26 = vector.broadcast %cst_23 : f32 to vector<16x128xf32>
    %27 = arith.mulf %12, %26 : vector<16x128xf32>
    %cst_24 = arith.constant 1.000000e+00 : f32
    %28 = vector.broadcast %cst_24 : f32 to vector<16x128xf32>
    %29 = arith.subf %28, %11 : vector<16x128xf32>
    %30 = arith.mulf %27, %29 : vector<16x128xf32>
    %31 = arith.addf %30, %16 : vector<16x128xf32>
    %32 = arith.cmpf ogt, %31, %25 : vector<16x128xf32>
    %33 = arith.extui %32 : vector<16x128xi1> to vector<16x128xi32>
    %34 = arith.sitofp %33 : vector<16x128xi32> to vector<16x128xf32>
    %c0_25 = arith.constant 0 : index
    %c0_26 = arith.constant 0 : index
    %c0_27 = arith.constant 0 : index
    %35 = vector.load %arg6[%c0_25, %c0_26, %c0_27] : memref<8x16x128xf32, #tpu.memory_space<vmem>>, vector<1x16x128xf32>
    %36 = vector.shape_cast %35 : vector<1x16x128xf32> to vector<16x128xf32>
    %37 = vector.shape_cast %34 : vector<16x128xf32> to vector<1x16x128xf32>
    tpu.vector_store %arg6[%c0_25, %c0_26, %c0_27], %37 {strides = array<i32>} : memref<8x16x128xf32, #tpu.memory_space<vmem>>, vector<1x16x128xf32>,
    %cst_28 = arith.constant dense<0.000000e+00> : vector<16x128xf32>
    %38 = tpu.matmul %34, %10, %cst_28 {dimension_numbers = #tpu.dot_dimension_numbers<[1], [0], [0], [1], [0, 0, 1, 1], [], []>} : vector<16x128xf32>, vector<128x128xf32>, vector<16x128xf32> -> vector<16x128xf32>
    %c16 = arith.constant 16 : index
    %c0_29 = arith.constant 0 : index
    %39 = vector.load %arg10[%c16, %c0_29] : memref<128x128xf32, #tpu.memory_space<vmem>>, vector<16x128xf32>
    %40 = arith.addf %39, %38 : vector<16x128xf32>
    %c1 = arith.constant 1 : index
    %c0_30 = arith.constant 0 : index
    %41 = vector.load %arg5[%c1, %c0_30] : memref<8x128xf32, #tpu.memory_space<vmem>>, vector<1x128xf32>
    %42 = vector.broadcast %41 : vector<1x128xf32> to vector<16x128xf32>
    %43 = arith.mulf %31, %42 : vector<16x128xf32>
    %44 = arith.addf %25, %43 : vector<16x128xf32>
    %cst_31 = arith.constant 3.000000e-01 : f32
    %45 = vector.broadcast %cst_31 : f32 to vector<16x128xf32>
    %46 = arith.subf %25, %45 : vector<16x128xf32>
    %cst_32 = arith.constant 2.000000e-02 : f32
    %47 = vector.broadcast %cst_32 : f32 to vector<16x128xf32>
    %48 = arith.mulf %46, %47 : vector<16x128xf32>
    %49 = arith.subf %44, %48 : vector<16x128xf32>
    %cst_33 = arith.constant 5.000000e-01 : f32
    %50 = vector.broadcast %cst_33 : f32 to vector<16x128xf32>
    %51 = arith.mulf %31, %50 : vector<16x128xf32>
    %cst_34 = arith.constant 1.000000e+00 : f32
    %52 = vector.broadcast %cst_34 : f32 to vector<16x128xf32>
    %53 = arith.subf %52, %34 : vector<16x128xf32>
    %54 = arith.mulf %51, %53 : vector<16x128xf32>
    %55 = arith.addf %54, %40 : vector<16x128xf32>
    %56 = arith.cmpf ogt, %55, %49 : vector<16x128xf32>
    %57 = arith.extui %56 : vector<16x128xi1> to vector<16x128xi32>
    %58 = arith.sitofp %57 : vector<16x128xi32> to vector<16x128xf32>
    %c1_35 = arith.constant 1 : index
    %c0_36 = arith.constant 0 : index
    %c0_37 = arith.constant 0 : index
    %59 = vector.load %arg6[%c1_35, %c0_36, %c0_37] : memref<8x16x128xf32, #tpu.memory_space<vmem>>, vector<1x16x128xf32>
    %60 = vector.shape_cast %59 : vector<1x16x128xf32> to vector<16x128xf32>
    %61 = vector.shape_cast %58 : vector<16x128xf32> to vector<1x16x128xf32>
    tpu.vector_store %arg6[%c1_35, %c0_36, %c0_37], %61 {strides = array<i32>} : memref<8x16x128xf32, #tpu.memory_space<vmem>>, vector<1x16x128xf32>,
    %cst_38 = arith.constant dense<0.000000e+00> : vector<16x128xf32>
    %62 = tpu.matmul %58, %10, %cst_38 {dimension_numbers = #tpu.dot_dimension_numbers<[1], [0], [0], [1], [0, 0, 1, 1], [], []>} : vector<16x128xf32>, vector<128x128xf32>, vector<16x128xf32> -> vector<16x128xf32>
    %c32 = arith.constant 32 : index
    %c0_39 = arith.constant 0 : index
    %63 = vector.load %arg10[%c32, %c0_39] : memref<128x128xf32, #tpu.memory_space<vmem>>, vector<16x128xf32>
    %64 = arith.addf %63, %62 : vector<16x128xf32>
    %c2 = arith.constant 2 : index
    %c0_40 = arith.constant 0 : index
    %65 = vector.load %arg5[%c2, %c0_40] : memref<8x128xf32, #tpu.memory_space<vmem>>, vector<1x128xf32>
    %66 = vector.broadcast %65 : vector<1x128xf32> to vector<16x128xf32>
    %67 = arith.mulf %55, %66 : vector<16x128xf32>
    %68 = arith.addf %49, %67 : vector<16x128xf32>
    %cst_41 = arith.constant 3.000000e-01 : f32
    %69 = vector.broadcast %cst_41 : f32 to vector<16x128xf32>
    %70 = arith.subf %49, %69 : vector<16x128xf32>
    %cst_42 = arith.constant 2.000000e-02 : f32
    %71 = vector.broadcast %cst_42 : f32 to vector<16x128xf32>
    %72 = arith.mulf %70, %71 : vector<16x128xf32>
    %73 = arith.subf %68, %72 : vector<16x128xf32>
    %cst_43 = arith.constant 5.000000e-01 : f32
    %74 = vector.broadcast %cst_43 : f32 to vector<16x128xf32>
    %75 = arith.mulf %55, %74 : vector<16x128xf32>
    %cst_44 = arith.constant 1.000000e+00 : f32
    %76 = vector.broadcast %cst_44 : f32 to vector<16x128xf32>
    %77 = arith.subf %76, %58 : vector<16x128xf32>
    %78 = arith.mulf %75, %77 : vector<16x128xf32>
    %79 = arith.addf %78, %64 : vector<16x128xf32>
    %80 = arith.cmpf ogt, %79, %73 : vector<16x128xf32>
    %81 = arith.extui %80 : vector<16x128xi1> to vector<16x128xi32>
    %82 = arith.sitofp %81 : vector<16x128xi32> to vector<16x128xf32>
    %c2_45 = arith.constant 2 : index
    %c0_46 = arith.constant 0 : index
    %c0_47 = arith.constant 0 : index
    %83 = vector.load %arg6[%c2_45, %c0_46, %c0_47] : memref<8x16x128xf32, #tpu.memory_space<vmem>>, vector<1x16x128xf32>
    %84 = vector.shape_cast %83 : vector<1x16x128xf32> to vector<16x128xf32>
    %85 = vector.shape_cast %82 : vector<16x128xf32> to vector<1x16x128xf32>
    tpu.vector_store %arg6[%c2_45, %c0_46, %c0_47], %85 {strides = array<i32>} : memref<8x16x128xf32, #tpu.memory_space<vmem>>, vector<1x16x128xf32>,
    %cst_48 = arith.constant dense<0.000000e+00> : vector<16x128xf32>
    %86 = tpu.matmul %82, %10, %cst_48 {dimension_numbers = #tpu.dot_dimension_numbers<[1], [0], [0], [1], [0, 0, 1, 1], [], []>} : vector<16x128xf32>, vector<128x128xf32>, vector<16x128xf32> -> vector<16x128xf32>
    %c48 = arith.constant 48 : index
    %c0_49 = arith.constant 0 : index
    %87 = vector.load %arg10[%c48, %c0_49] : memref<128x128xf32, #tpu.memory_space<vmem>>, vector<16x128xf32>
    %88 = arith.addf %87, %86 : vector<16x128xf32>
    %c3 = arith.constant 3 : index
    %c0_50 = arith.constant 0 : index
    %89 = vector.load %arg5[%c3, %c0_50] : memref<8x128xf32, #tpu.memory_space<vmem>>, vector<1x128xf32>
    %90 = vector.broadcast %89 : vector<1x128xf32> to vector<16x128xf32>
    %91 = arith.mulf %79, %90 : vector<16x128xf32>
    %92 = arith.addf %73, %91 : vector<16x128xf32>
    %cst_51 = arith.constant 3.000000e-01 : f32
    %93 = vector.broadcast %cst_51 : f32 to vector<16x128xf32>
    %94 = arith.subf %73, %93 : vector<16x128xf32>
    %cst_52 = arith.constant 2.000000e-02 : f32
    %95 = vector.broadcast %cst_52 : f32 to vector<16x128xf32>
    %96 = arith.mulf %94, %95 : vector<16x128xf32>
    %97 = arith.subf %92, %96 : vector<16x128xf32>
    %cst_53 = arith.constant 5.000000e-01 : f32
    %98 = vector.broadcast %cst_53 : f32 to vector<16x128xf32>
    %99 = arith.mulf %79, %98 : vector<16x128xf32>
    %cst_54 = arith.constant 1.000000e+00 : f32
    %100 = vector.broadcast %cst_54 : f32 to vector<16x128xf32>
    %101 = arith.subf %100, %82 : vector<16x128xf32>
    %102 = arith.mulf %99, %101 : vector<16x128xf32>
    %103 = arith.addf %102, %88 : vector<16x128xf32>
    %104 = arith.cmpf ogt, %103, %97 : vector<16x128xf32>
    %105 = arith.extui %104 : vector<16x128xi1> to vector<16x128xi32>
    %106 = arith.sitofp %105 : vector<16x128xi32> to vector<16x128xf32>
    %c3_55 = arith.constant 3 : index
    %c0_56 = arith.constant 0 : index
    %c0_57 = arith.constant 0 : index
    %107 = vector.load %arg6[%c3_55, %c0_56, %c0_57] : memref<8x16x128xf32, #tpu.memory_space<vmem>>, vector<1x16x128xf32>
    %108 = vector.shape_cast %107 : vector<1x16x128xf32> to vector<16x128xf32>
    %109 = vector.shape_cast %106 : vector<16x128xf32> to vector<1x16x128xf32>
    tpu.vector_store %arg6[%c3_55, %c0_56, %c0_57], %109 {strides = array<i32>} : memref<8x16x128xf32, #tpu.memory_space<vmem>>, vector<1x16x128xf32>,
    %cst_58 = arith.constant dense<0.000000e+00> : vector<16x128xf32>
    %110 = tpu.matmul %106, %10, %cst_58 {dimension_numbers = #tpu.dot_dimension_numbers<[1], [0], [0], [1], [0, 0, 1, 1], [], []>} : vector<16x128xf32>, vector<128x128xf32>, vector<16x128xf32> -> vector<16x128xf32>
    %c64 = arith.constant 64 : index
    %c0_59 = arith.constant 0 : index
    %111 = vector.load %arg10[%c64, %c0_59] : memref<128x128xf32, #tpu.memory_space<vmem>>, vector<16x128xf32>
    %112 = arith.addf %111, %110 : vector<16x128xf32>
    %c4 = arith.constant 4 : index
    %c0_60 = arith.constant 0 : index
    %113 = vector.load %arg5[%c4, %c0_60] : memref<8x128xf32, #tpu.memory_space<vmem>>, vector<1x128xf32>
    %114 = vector.broadcast %113 : vector<1x128xf32> to vector<16x128xf32>
    %115 = arith.mulf %103, %114 : vector<16x128xf32>
    %116 = arith.addf %97, %115 : vector<16x128xf32>
    %cst_61 = arith.constant 3.000000e-01 : f32
    %117 = vector.broadcast %cst_61 : f32 to vector<16x128xf32>
    %118 = arith.subf %97, %117 : vector<16x128xf32>
    %cst_62 = arith.constant 2.000000e-02 : f32
    %119 = vector.broadcast %cst_62 : f32 to vector<16x128xf32>
    %120 = arith.mulf %118, %119 : vector<16x128xf32>
    %121 = arith.subf %116, %120 : vector<16x128xf32>
    %cst_63 = arith.constant 5.000000e-01 : f32
    %122 = vector.broadcast %cst_63 : f32 to vector<16x128xf32>
    %123 = arith.mulf %103, %122 : vector<16x128xf32>
    %cst_64 = arith.constant 1.000000e+00 : f32
    %124 = vector.broadcast %cst_64 : f32 to vector<16x128xf32>
    %125 = arith.subf %124, %106 : vector<16x128xf32>
    %126 = arith.mulf %123, %125 : vector<16x128xf32>
    %127 = arith.addf %126, %112 : vector<16x128xf32>
    %128 = arith.cmpf ogt, %127, %121 : vector<16x128xf32>
    %129 = arith.extui %128 : vector<16x128xi1> to vector<16x128xi32>
    %130 = arith.sitofp %129 : vector<16x128xi32> to vector<16x128xf32>
    %c4_65 = arith.constant 4 : index
    %c0_66 = arith.constant 0 : index
    %c0_67 = arith.constant 0 : index
    %131 = vector.load %arg6[%c4_65, %c0_66, %c0_67] : memref<8x16x128xf32, #tpu.memory_space<vmem>>, vector<1x16x128xf32>
    %132 = vector.shape_cast %131 : vector<1x16x128xf32> to vector<16x128xf32>
    %133 = vector.shape_cast %130 : vector<16x128xf32> to vector<1x16x128xf32>
    tpu.vector_store %arg6[%c4_65, %c0_66, %c0_67], %133 {strides = array<i32>} : memref<8x16x128xf32, #tpu.memory_space<vmem>>, vector<1x16x128xf32>,
    %cst_68 = arith.constant dense<0.000000e+00> : vector<16x128xf32>
    %134 = tpu.matmul %130, %10, %cst_68 {dimension_numbers = #tpu.dot_dimension_numbers<[1], [0], [0], [1], [0, 0, 1, 1], [], []>} : vector<16x128xf32>, vector<128x128xf32>, vector<16x128xf32> -> vector<16x128xf32>
    %c80 = arith.constant 80 : index
    %c0_69 = arith.constant 0 : index
    %135 = vector.load %arg10[%c80, %c0_69] : memref<128x128xf32, #tpu.memory_space<vmem>>, vector<16x128xf32>
    %136 = arith.addf %135, %134 : vector<16x128xf32>
    %c5 = arith.constant 5 : index
    %c0_70 = arith.constant 0 : index
    %137 = vector.load %arg5[%c5, %c0_70] : memref<8x128xf32, #tpu.memory_space<vmem>>, vector<1x128xf32>
    %138 = vector.broadcast %137 : vector<1x128xf32> to vector<16x128xf32>
    %139 = arith.mulf %127, %138 : vector<16x128xf32>
    %140 = arith.addf %121, %139 : vector<16x128xf32>
    %cst_71 = arith.constant 3.000000e-01 : f32
    %141 = vector.broadcast %cst_71 : f32 to vector<16x128xf32>
    %142 = arith.subf %121, %141 : vector<16x128xf32>
    %cst_72 = arith.constant 2.000000e-02 : f32
    %143 = vector.broadcast %cst_72 : f32 to vector<16x128xf32>
    %144 = arith.mulf %142, %143 : vector<16x128xf32>
    %145 = arith.subf %140, %144 : vector<16x128xf32>
    %cst_73 = arith.constant 5.000000e-01 : f32
    %146 = vector.broadcast %cst_73 : f32 to vector<16x128xf32>
    %147 = arith.mulf %127, %146 : vector<16x128xf32>
    %cst_74 = arith.constant 1.000000e+00 : f32
    %148 = vector.broadcast %cst_74 : f32 to vector<16x128xf32>
    %149 = arith.subf %148, %130 : vector<16x128xf32>
    %150 = arith.mulf %147, %149 : vector<16x128xf32>
    %151 = arith.addf %150, %136 : vector<16x128xf32>
    %152 = arith.cmpf ogt, %151, %145 : vector<16x128xf32>
    %153 = arith.extui %152 : vector<16x128xi1> to vector<16x128xi32>
    %154 = arith.sitofp %153 : vector<16x128xi32> to vector<16x128xf32>
    %c5_75 = arith.constant 5 : index
    %c0_76 = arith.constant 0 : index
    %c0_77 = arith.constant 0 : index
    %155 = vector.load %arg6[%c5_75, %c0_76, %c0_77] : memref<8x16x128xf32, #tpu.memory_space<vmem>>, vector<1x16x128xf32>
    %156 = vector.shape_cast %155 : vector<1x16x128xf32> to vector<16x128xf32>
    %157 = vector.shape_cast %154 : vector<16x128xf32> to vector<1x16x128xf32>
    tpu.vector_store %arg6[%c5_75, %c0_76, %c0_77], %157 {strides = array<i32>} : memref<8x16x128xf32, #tpu.memory_space<vmem>>, vector<1x16x128xf32>,
    %cst_78 = arith.constant dense<0.000000e+00> : vector<16x128xf32>
    %158 = tpu.matmul %154, %10, %cst_78 {dimension_numbers = #tpu.dot_dimension_numbers<[1], [0], [0], [1], [0, 0, 1, 1], [], []>} : vector<16x128xf32>, vector<128x128xf32>, vector<16x128xf32> -> vector<16x128xf32>
    %c96 = arith.constant 96 : index
    %c0_79 = arith.constant 0 : index
    %159 = vector.load %arg10[%c96, %c0_79] : memref<128x128xf32, #tpu.memory_space<vmem>>, vector<16x128xf32>
    %160 = arith.addf %159, %158 : vector<16x128xf32>
    %c6 = arith.constant 6 : index
    %c0_80 = arith.constant 0 : index
    %161 = vector.load %arg5[%c6, %c0_80] : memref<8x128xf32, #tpu.memory_space<vmem>>, vector<1x128xf32>
    %162 = vector.broadcast %161 : vector<1x128xf32> to vector<16x128xf32>
    %163 = arith.mulf %151, %162 : vector<16x128xf32>
    %164 = arith.addf %145, %163 : vector<16x128xf32>
    %cst_81 = arith.constant 3.000000e-01 : f32
    %165 = vector.broadcast %cst_81 : f32 to vector<16x128xf32>
    %166 = arith.subf %145, %165 : vector<16x128xf32>
    %cst_82 = arith.constant 2.000000e-02 : f32
    %167 = vector.broadcast %cst_82 : f32 to vector<16x128xf32>
    %168 = arith.mulf %166, %167 : vector<16x128xf32>
    %169 = arith.subf %164, %168 : vector<16x128xf32>
    %cst_83 = arith.constant 5.000000e-01 : f32
    %170 = vector.broadcast %cst_83 : f32 to vector<16x128xf32>
    %171 = arith.mulf %151, %170 : vector<16x128xf32>
    %cst_84 = arith.constant 1.000000e+00 : f32
    %172 = vector.broadcast %cst_84 : f32 to vector<16x128xf32>
    %173 = arith.subf %172, %154 : vector<16x128xf32>
    %174 = arith.mulf %171, %173 : vector<16x128xf32>
    %175 = arith.addf %174, %160 : vector<16x128xf32>
    %176 = arith.cmpf ogt, %175, %169 : vector<16x128xf32>
    %177 = arith.extui %176 : vector<16x128xi1> to vector<16x128xi32>
    %178 = arith.sitofp %177 : vector<16x128xi32> to vector<16x128xf32>
    %c6_85 = arith.constant 6 : index
    %c0_86 = arith.constant 0 : index
    %c0_87 = arith.constant 0 : index
    %179 = vector.load %arg6[%c6_85, %c0_86, %c0_87] : memref<8x16x128xf32, #tpu.memory_space<vmem>>, vector<1x16x128xf32>
    %180 = vector.shape_cast %179 : vector<1x16x128xf32> to vector<16x128xf32>
    %181 = vector.shape_cast %178 : vector<16x128xf32> to vector<1x16x128xf32>
    tpu.vector_store %arg6[%c6_85, %c0_86, %c0_87], %181 {strides = array<i32>} : memref<8x16x128xf32, #tpu.memory_space<vmem>>, vector<1x16x128xf32>,
    %cst_88 = arith.constant dense<0.000000e+00> : vector<16x128xf32>
    %182 = tpu.matmul %178, %10, %cst_88 {dimension_numbers = #tpu.dot_dimension_numbers<[1], [0], [0], [1], [0, 0, 1, 1], [], []>} : vector<16x128xf32>, vector<128x128xf32>, vector<16x128xf32> -> vector<16x128xf32>
    %c112 = arith.constant 112 : index
    %c0_89 = arith.constant 0 : index
    %183 = vector.load %arg10[%c112, %c0_89] : memref<128x128xf32, #tpu.memory_space<vmem>>, vector<16x128xf32>
    %184 = arith.addf %183, %182 : vector<16x128xf32>
    %c7 = arith.constant 7 : index
    %c0_90 = arith.constant 0 : index
    %185 = vector.load %arg5[%c7, %c0_90] : memref<8x128xf32, #tpu.memory_space<vmem>>, vector<1x128xf32>
    %186 = vector.broadcast %185 : vector<1x128xf32> to vector<16x128xf32>
    %187 = arith.mulf %175, %186 : vector<16x128xf32>
    %188 = arith.addf %169, %187 : vector<16x128xf32>
    %cst_91 = arith.constant 3.000000e-01 : f32
    %189 = vector.broadcast %cst_91 : f32 to vector<16x128xf32>
    %190 = arith.subf %169, %189 : vector<16x128xf32>
    %cst_92 = arith.constant 2.000000e-02 : f32
    %191 = vector.broadcast %cst_92 : f32 to vector<16x128xf32>
    %192 = arith.mulf %190, %191 : vector<16x128xf32>
    %193 = arith.subf %188, %192 : vector<16x128xf32>
    %cst_93 = arith.constant 5.000000e-01 : f32
    %194 = vector.broadcast %cst_93 : f32 to vector<16x128xf32>
    %195 = arith.mulf %175, %194 : vector<16x128xf32>
    %cst_94 = arith.constant 1.000000e+00 : f32
    %196 = vector.broadcast %cst_94 : f32 to vector<16x128xf32>
    %197 = arith.subf %196, %178 : vector<16x128xf32>
    %198 = arith.mulf %195, %197 : vector<16x128xf32>
    %199 = arith.addf %198, %184 : vector<16x128xf32>
    %200 = arith.cmpf ogt, %199, %193 : vector<16x128xf32>
    %201 = arith.extui %200 : vector<16x128xi1> to vector<16x128xi32>
    %202 = arith.sitofp %201 : vector<16x128xi32> to vector<16x128xf32>
    %c7_95 = arith.constant 7 : index
    %c0_96 = arith.constant 0 : index
    %c0_97 = arith.constant 0 : index
    %203 = vector.load %arg6[%c7_95, %c0_96, %c0_97] : memref<8x16x128xf32, #tpu.memory_space<vmem>>, vector<1x16x128xf32>
    %204 = vector.shape_cast %203 : vector<1x16x128xf32> to vector<16x128xf32>
    %205 = vector.shape_cast %202 : vector<16x128xf32> to vector<1x16x128xf32>
    tpu.vector_store %arg6[%c7_95, %c0_96, %c0_97], %205 {strides = array<i32>} : memref<8x16x128xf32, #tpu.memory_space<vmem>>, vector<1x16x128xf32>,
    %c0_98 = arith.constant 0 : index
    %c0_99 = arith.constant 0 : index
    %206 = vector.load %arg7[%c0_98, %c0_99] : memref<16x128xf32, #tpu.memory_space<vmem>>, vector<16x128xf32>
    tpu.vector_store %arg7[%c0_98, %c0_99], %202 {strides = array<i32>} : memref<16x128xf32, #tpu.memory_space<vmem>>, vector<16x128xf32>,
    %c0_100 = arith.constant 0 : index
    %c0_101 = arith.constant 0 : index
    %207 = vector.load %arg8[%c0_100, %c0_101] : memref<16x128xf32, #tpu.memory_space<vmem>>, vector<16x128xf32>
    tpu.vector_store %arg8[%c0_100, %c0_101], %199 {strides = array<i32>} : memref<16x128xf32, #tpu.memory_space<vmem>>, vector<16x128xf32>,
    %c0_102 = arith.constant 0 : index
    %c0_103 = arith.constant 0 : index
    %208 = vector.load %arg9[%c0_102, %c0_103] : memref<16x128xf32, #tpu.memory_space<vmem>>, vector<16x128xf32>
    tpu.vector_store %arg9[%c0_102, %c0_103], %193 {strides = array<i32>} : memref<16x128xf32, #tpu.memory_space<vmem>>, vector<16x128xf32>,
    return
  }
  func.func @transform_0(%arg0: i32) -> (i32, i32) {
    %c0_i32 = arith.constant 0 : i32
    %c0_i32_0 = arith.constant 0 : i32
    return %arg0, %c0_i32 : i32, i32
  }
  func.func @transform_1(%arg0: i32) -> (i32, i32) {
    %c0_i32 = arith.constant 0 : i32
    %c0_i32_0 = arith.constant 0 : i32
    %c0_i32_1 = arith.constant 0 : i32
    return %c0_i32, %c0_i32_0 : i32, i32
  }
  func.func @transform_2(%arg0: i32) -> (i32, i32) {
    %c0_i32 = arith.constant 0 : i32
    %c0_i32_0 = arith.constant 0 : i32
    %c0_i32_1 = arith.constant 0 : i32
    return %c0_i32, %c0_i32_0 : i32, i32
  }
  func.func @transform_3(%arg0: i32) -> (i32, i32) {
    %c0_i32 = arith.constant 0 : i32
    %c0_i32_0 = arith.constant 0 : i32
    %c0_i32_1 = arith.constant 0 : i32
    return %c0_i32, %c0_i32_0 : i32, i32
  }
  func.func @transform_4(%arg0: i32) -> (i32, i32) {
    %c0_i32 = arith.constant 0 : i32
    %c0_i32_0 = arith.constant 0 : i32
    return %arg0, %c0_i32 : i32, i32
  }
  func.func @transform_5(%arg0: i32) -> (i32, i32, i32) {
    %c0_i32 = arith.constant 0 : i32
    %c0_i32_0 = arith.constant 0 : i32
    %c0_i32_1 = arith.constant 0 : i32
    return %arg0, %c0_i32, %c0_i32_0 : i32, i32, i32
  }
  func.func @transform_6(%arg0: i32) -> (i32, i32) {
    %c0_i32 = arith.constant 0 : i32
    %c0_i32_0 = arith.constant 0 : i32
    %c0_i32_1 = arith.constant 0 : i32
    return %c0_i32, %c0_i32_0 : i32, i32
  }
  func.func @transform_7(%arg0: i32) -> (i32, i32) {
    %c0_i32 = arith.constant 0 : i32
    %c0_i32_0 = arith.constant 0 : i32
    %c0_i32_1 = arith.constant 0 : i32
    return %c0_i32, %c0_i32_0 : i32, i32
  }
  func.func @transform_8(%arg0: i32) -> (i32, i32) {
    %c0_i32 = arith.constant 0 : i32
    %c0_i32_0 = arith.constant 0 : i32
    %c0_i32_1 = arith.constant 0 : i32
    return %c0_i32, %c0_i32_0 : i32, i32
  }
}

module attributes {stable_mosaic.version = 11 : i64} {
  func.func @te_sfnn_kernel(%arg0: i32, %arg1: memref<128x16xf32, #tpu.memory_space<vmem>>, %arg2: memref<16x128xf32, #tpu.memory_space<vmem>>, %arg3: memref<128x128xf32, #tpu.memory_space<vmem>>, %arg4: memref<1x128xf32, #tpu.memory_space<vmem>>, %arg5: memref<8x128xf32, #tpu.memory_space<vmem>>, %arg6: memref<8x16x128xf32, #tpu.memory_space<vmem>>, %arg7: memref<16x128xf32, #tpu.memory_space<vmem>>, %arg8: memref<16x128xf32, #tpu.memory_space<vmem>>, %arg9: memref<16x128xf32, #tpu.memory_space<vmem>>, %arg10: memref<128x128xf32, #tpu.memory_space<vmem>>) attributes {dimension_semantics = [#tpu.dimension_semantics<arbitrary>], iteration_bounds = array<i64: 1>, scalar_prefetch = 0 : i64, scratch_operands = 1 : i64, tpu.core_type = #tpu.core_type<tc>, window_params = [{transform_indices = @transform_0, window_bounds = array<i64: 128, 16>}, {pipeline_mode = #tpu.pipeline_mode<synchronous>, transform_indices = @transform_1, window_bounds = array<i64: 16, 128>}, {pipeline_mode = #tpu.pipeline_mode<synchronous>, transform_indices = @transform_2, window_bounds = array<i64: 128, 128>}, {pipeline_mode = #tpu.pipeline_mode<synchronous>, transform_indices = @transform_3, window_bounds = array<i64: 1, 128>}, {transform_indices = @transform_4, window_bounds = array<i64: 8, 128>}, {transform_indices = @transform_5, window_bounds = array<i64: 8, 16, 128>}, {pipeline_mode = #tpu.pipeline_mode<synchronous>, transform_indices = @transform_6, window_bounds = array<i64: 16, 128>}, {pipeline_mode = #tpu.pipeline_mode<synchronous>, transform_indices = @transform_7, window_bounds = array<i64: 16, 128>}, {pipeline_mode = #tpu.pipeline_mode<synchronous>, transform_indices = @transform_8, window_bounds = array<i64: 16, 128>}]} {
    %c0_i32 = arith.constant 0 : i32
    %0 = arith.cmpi eq, %arg0, %c0_i32 : i32
    %1 = arith.extui %0 : i1 to i32
    %c0_i32_0 = arith.constant 0 : i32
    %2 = arith.cmpi ne, %1, %c0_i32_0 : i32
    scf.if %2 {
      %cst_104 = arith.constant 0.000000e+00 : f32
      %209 = vector.broadcast %cst_104 : f32 to vector<16x128xf32>
      %c0_105 = arith.constant 0 : index
      %c0_106 = arith.constant 0 : index
      %210 = vector.load %arg7[%c0_105, %c0_106] : memref<16x128xf32, #tpu.memory_space<vmem>>, vector<16x128xf32>
      tpu.vector_store %arg7[%c0_105, %c0_106], %209 {strides = array<i32>} : memref<16x128xf32, #tpu.memory_space<vmem>>, vector<16x128xf32>,
      %cst_107 = arith.constant 0.000000e+00 : f32
      %211 = vector.broadcast %cst_107 : f32 to vector<16x128xf32>
      %c0_108 = arith.constant 0 : index
      %c0_109 = arith.constant 0 : index
      %212 = vector.load %arg8[%c0_108, %c0_109] : memref<16x128xf32, #tpu.memory_space<vmem>>, vector<16x128xf32>
      tpu.vector_store %arg8[%c0_108, %c0_109], %211 {strides = array<i32>} : memref<16x128xf32, #tpu.memory_space<vmem>>, vector<16x128xf32>,
      %cst_110 = arith.constant 3.000000e-01 : f32
      %213 = vector.broadcast %cst_110 : f32 to vector<16x128xf32>
      %c0_111 = arith.constant 0 : index
      %c0_112 = arith.constant 0 : index
      %214 = vector.load %arg9[%c0_111, %c0_112] : memref<16x128xf32, #tpu.memory_space<vmem>>, vector<16x128xf32>
      tpu.vector_store %arg9[%c0_111, %c0_112], %213 {strides = array<i32>} : memref<16x128xf32, #tpu.memory_space<vmem>>, vector<16x128xf32>,
    } else {
    }
    %c0 = arith.constant 0 : index
    %c0_1 = arith.constant 0 : index
    %3 = vector.load %arg1[%c0, %c0_1] : memref<128x16xf32, #tpu.memory_space<vmem>>, vector<128x16xf32>
    %c0_2 = arith.constant 0 : index
    %c0_3 = arith.constant 0 : index
    %4 = vector.load %arg2[%c0_2, %c0_3] : memref<16x128xf32, #tpu.memory_space<vmem>>, vector<16x128xf32>
    %cst = arith.constant dense<0.000000e+00> : vector<128x128xf32>
    %5 = tpu.matmul %3, %4, %cst {dimension_numbers = #tpu.dot_dimension_numbers<[1], [0], [0], [1], [0, 0, 1, 1], [], []>} : vector<128x16xf32>, vector<16x128xf32>, vector<128x128xf32> -> vector<128x128xf32>
    %c0_4 = arith.constant 0 : index
    %c0_5 = arith.constant 0 : index
    %6 = vector.load %arg4[%c0_4, %c0_5] : memref<1x128xf32, #tpu.memory_space<vmem>>, vector<1x128xf32>
    %7 = vector.broadcast %6 : vector<1x128xf32> to vector<128x128xf32>
    %8 = arith.addf %5, %7 : vector<128x128xf32>
    %c0_6 = arith.constant 0 : index
    %c0_7 = arith.constant 0 : index
    %9 = vector.load %arg10[%c0_6, %c0_7] : memref<128x128xf32, #tpu.memory_space<vmem>>, vector<128x128xf32>
    tpu.vector_store %arg10[%c0_6, %c0_7], %8 {strides = array<i32>} : memref<128x128xf32, #tpu.memory_space<vmem>>, vector<128x128xf32>,
    %c0_8 = arith.constant 0 : index
    %c0_9 = arith.constant 0 : index
    %10 = vector.load %arg3[%c0_8, %c0_9] : memref<128x128xf32, #tpu.memory_space<vmem>>, vector<128x128xf32>
    %c0_10 = arith.constant 0 : index
    %c0_11 = arith.constant 0 : index
    %11 = vector.load %arg7[%c0_10, %c0_11] : memref<16x128xf32, #tpu.memory_space<vmem>>, vector<16x128xf32>
    %c0_12 = arith.constant 0 : index
    %c0_13 = arith.constant 0 : index
    %12 = vector.load %arg8[%c0_12, %c0_13] : memref<16x128xf32, #tpu.memory_space<vmem>>, vector<16x128xf32>
    %c0_14 = arith.constant 0 : index
    %c0_15 = arith.constant 0 : index
    %13 = vector.load %arg9[%c0_14, %c0_15] : memref<16x128xf32, #tpu.memory_space<vmem>>, vector<16x128xf32>
    %cst_16 = arith.constant dense<0.000000e+00> : vector<16x128xf32>
    %14 = tpu.matmul %11, %10, %cst_16 {dimension_numbers = #tpu.dot_dimension_numbers<[1], [0], [0], [1], [0, 0, 1, 1], [], []>} : vector<16x128xf32>, vector<128x128xf32>, vector<16x128xf32> -> vector<16x128xf32>
    %c0_17 = arith.constant 0 : index
    %c0_18 = arith.constant 0 : index
    %15 = vector.load %arg10[%c0_17, %c0_18] : memref<128x128xf32, #tpu.memory_space<vmem>>, vector<16x128xf32>
    %16 = arith.addf %15, %14 : vector<16x128xf32>
    %c0_19 = arith.constant 0 : index
    %c0_20 = arith.constant 0 : index
    %17 = vector.load %arg5[%c0_19, %c0_20] : memref<8x128xf32, #tpu.memory_space<vmem>>, vector<1x128xf32>
    %18 = vector.broadcast %17 : vector<1x128xf32> to vector<16x128xf32>
    %19 = arith.mulf %12, %18 : vector<16x128xf32>
    %20 = arith.addf %13, %19 : vector<16x128xf32>
    %cst_21 = arith.constant 3.000000e-01 : f32
    %21 = vector.broadcast %cst_21 : f32 to vector<16x128xf32>
    %22 = arith.subf %13, %21 : vector<16x128xf32>
    %cst_22 = arith.constant 2.000000e-02 : f32
    %23 = vector.broadcast %cst_22 : f32 to vector<16x128xf32>
    %24 = arith.mulf %22, %23 : vector<16x128xf32>
    %25 = arith.subf %20, %24 : vector<16x128xf32>
    %cst_23 = arith.constant 5.000000e-01 : f32
    %26 = vector.broadcast %cst_23 : f32 to vector<16x128xf32>
    %27 = arith.mulf %12, %26 : vector<16x128xf32>
    %cst_24 = arith.constant 1.000000e+00 : f32
    %28 = vector.broadcast %cst_24 : f32 to vector<16x128xf32>
    %29 = arith.subf %28, %11 : vector<16x128xf32>
    %30 = arith.mulf %27, %29 : vector<16x128xf32>
    %31 = arith.addf %30, %16 : vector<16x128xf32>
    %32 = arith.cmpf ogt, %31, %25 : vector<16x128xf32>
    %33 = arith.extui %32 : vector<16x128xi1> to vector<16x128xi32>
    %34 = arith.sitofp %33 : vector<16x128xi32> to vector<16x128xf32>
    %c0_25 = arith.constant 0 : index
    %c0_26 = arith.constant 0 : index
    %c0_27 = arith.constant 0 : index
    %35 = vector.load %arg6[%c0_25, %c0_26, %c0_27] : memref<8x16x128xf32, #tpu.memory_space<vmem>>, vector<1x16x128xf32>
    %36 = vector.shape_cast %35 : vector<1x16x128xf32> to vector<16x128xf32>
    %37 = vector.shape_cast %34 : vector<16x128xf32> to vector<1x16x128xf32>
    tpu.vector_store %arg6[%c0_25, %c0_26, %c0_27], %37 {strides = array<i32>} : memref<8x16x128xf32, #tpu.memory_space<vmem>>, vector<1x16x128xf32>,
    %cst_28 = arith.constant dense<0.000000e+00> : vector<16x128xf32>
    %38 = tpu.matmul %34, %10, %cst_28 {dimension_numbers = #tpu.dot_dimension_numbers<[1], [0], [0], [1], [0, 0, 1, 1], [], []>} : vector<16x128xf32>, vector<128x128xf32>, vector<16x128xf32> -> vector<16x128xf32>
    %c16 = arith.constant 16 : index
    %c0_29 = arith.constant 0 : index
    %39 = vector.load %arg10[%c16, %c0_29] : memref<128x128xf32, #tpu.memory_space<vmem>>, vector<16x128xf32>
    %40 = arith.addf %39, %38 : vector<16x128xf32>
    %c1 = arith.constant 1 : index
    %c0_30 = arith.constant 0 : index
    %41 = vector.load %arg5[%c1, %c0_30] : memref<8x128xf32, #tpu.memory_space<vmem>>, vector<1x128xf32>
    %42 = vector.broadcast %41 : vector<1x128xf32> to vector<16x128xf32>
    %43 = arith.mulf %31, %42 : vector<16x128xf32>
    %44 = arith.addf %25, %43 : vector<16x128xf32>
    %cst_31 = arith.constant 3.000000e-01 : f32
    %45 = vector.broadcast %cst_31 : f32 to vector<16x128xf32>
    %46 = arith.subf %25, %45 : vector<16x128xf32>
    %cst_32 = arith.constant 2.000000e-02 : f32
    %47 = vector.broadcast %cst_32 : f32 to vector<16x128xf32>
    %48 = arith.mulf %46, %47 : vector<16x128xf32>
    %49 = arith.subf %44, %48 : vector<16x128xf32>
    %cst_33 = arith.constant 5.000000e-01 : f32
    %50 = vector.broadcast %cst_33 : f32 to vector<16x128xf32>
    %51 = arith.mulf %31, %50 : vector<16x128xf32>
    %cst_34 = arith.constant 1.000000e+00 : f32
    %52 = vector.broadcast %cst_34 : f32 to vector<16x128xf32>
    %53 = arith.subf %52, %34 : vector<16x128xf32>
    %54 = arith.mulf %51, %53 : vector<16x128xf32>
    %55 = arith.addf %54, %40 : vector<16x128xf32>
    %56 = arith.cmpf ogt, %55, %49 : vector<16x128xf32>
    %57 = arith.extui %56 : vector<16x128xi1> to vector<16x128xi32>
    %58 = arith.sitofp %57 : vector<16x128xi32> to vector<16x128xf32>
    %c1_35 = arith.constant 1 : index
    %c0_36 = arith.constant 0 : index
    %c0_37 = arith.constant 0 : index
    %59 = vector.load %arg6[%c1_35, %c0_36, %c0_37] : memref<8x16x128xf32, #tpu.memory_space<vmem>>, vector<1x16x128xf32>
    %60 = vector.shape_cast %59 : vector<1x16x128xf32> to vector<16x128xf32>
    %61 = vector.shape_cast %58 : vector<16x128xf32> to vector<1x16x128xf32>
    tpu.vector_store %arg6[%c1_35, %c0_36, %c0_37], %61 {strides = array<i32>} : memref<8x16x128xf32, #tpu.memory_space<vmem>>, vector<1x16x128xf32>,
    %cst_38 = arith.constant dense<0.000000e+00> : vector<16x128xf32>
    %62 = tpu.matmul %58, %10, %cst_38 {dimension_numbers = #tpu.dot_dimension_numbers<[1], [0], [0], [1], [0, 0, 1, 1], [], []>} : vector<16x128xf32>, vector<128x128xf32>, vector<16x128xf32> -> vector<16x128xf32>
    %c32 = arith.constant 32 : index
    %c0_39 = arith.constant 0 : index
    %63 = vector.load %arg10[%c32, %c0_39] : memref<128x128xf32, #tpu.memory_space<vmem>>, vector<16x128xf32>
    %64 = arith.addf %63, %62 : vector<16x128xf32>
    %c2 = arith.constant 2 : index
    %c0_40 = arith.constant 0 : index
    %65 = vector.load %arg5[%c2, %c0_40] : memref<8x128xf32, #tpu.memory_space<vmem>>, vector<1x128xf32>
    %66 = vector.broadcast %65 : vector<1x128xf32> to vector<16x128xf32>
    %67 = arith.mulf %55, %66 : vector<16x128xf32>
    %68 = arith.addf %49, %67 : vector<16x128xf32>
    %cst_41 = arith.constant 3.000000e-01 : f32
    %69 = vector.broadcast %cst_41 : f32 to vector<16x128xf32>
    %70 = arith.subf %49, %69 : vector<16x128xf32>
    %cst_42 = arith.constant 2.000000e-02 : f32
    %71 = vector.broadcast %cst_42 : f32 to vector<16x128xf32>
    %72 = arith.mulf %70, %71 : vector<16x128xf32>
    %73 = arith.subf %68, %72 : vector<16x128xf32>
    %cst_43 = arith.constant 5.000000e-01 : f32
    %74 = vector.broadcast %cst_43 : f32 to vector<16x128xf32>
    %75 = arith.mulf %55, %74 : vector<16x128xf32>
    %cst_44 = arith.constant 1.000000e+00 : f32
    %76 = vector.broadcast %cst_44 : f32 to vector<16x128xf32>
    %77 = arith.subf %76, %58 : vector<16x128xf32>
    %78 = arith.mulf %75, %77 : vector<16x128xf32>
    %79 = arith.addf %78, %64 : vector<16x128xf32>
    %80 = arith.cmpf ogt, %79, %73 : vector<16x128xf32>
    %81 = arith.extui %80 : vector<16x128xi1> to vector<16x128xi32>
    %82 = arith.sitofp %81 : vector<16x128xi32> to vector<16x128xf32>
    %c2_45 = arith.constant 2 : index
    %c0_46 = arith.constant 0 : index
    %c0_47 = arith.constant 0 : index
    %83 = vector.load %arg6[%c2_45, %c0_46, %c0_47] : memref<8x16x128xf32, #tpu.memory_space<vmem>>, vector<1x16x128xf32>
    %84 = vector.shape_cast %83 : vector<1x16x128xf32> to vector<16x128xf32>
    %85 = vector.shape_cast %82 : vector<16x128xf32> to vector<1x16x128xf32>
    tpu.vector_store %arg6[%c2_45, %c0_46, %c0_47], %85 {strides = array<i32>} : memref<8x16x128xf32, #tpu.memory_space<vmem>>, vector<1x16x128xf32>,
    %cst_48 = arith.constant dense<0.000000e+00> : vector<16x128xf32>
    %86 = tpu.matmul %82, %10, %cst_48 {dimension_numbers = #tpu.dot_dimension_numbers<[1], [0], [0], [1], [0, 0, 1, 1], [], []>} : vector<16x128xf32>, vector<128x128xf32>, vector<16x128xf32> -> vector<16x128xf32>
    %c48 = arith.constant 48 : index
    %c0_49 = arith.constant 0 : index
    %87 = vector.load %arg10[%c48, %c0_49] : memref<128x128xf32, #tpu.memory_space<vmem>>, vector<16x128xf32>
    %88 = arith.addf %87, %86 : vector<16x128xf32>
    %c3 = arith.constant 3 : index
    %c0_50 = arith.constant 0 : index
    %89 = vector.load %arg5[%c3, %c0_50] : memref<8x128xf32, #tpu.memory_space<vmem>>, vector<1x128xf32>
    %90 = vector.broadcast %89 : vector<1x128xf32> to vector<16x128xf32>
    %91 = arith.mulf %79, %90 : vector<16x128xf32>
    %92 = arith.addf %73, %91 : vector<16x128xf32>
    %cst_51 = arith.constant 3.000000e-01 : f32
    %93 = vector.broadcast %cst_51 : f32 to vector<16x128xf32>
    %94 = arith.subf %73, %93 : vector<16x128xf32>
    %cst_52 = arith.constant 2.000000e-02 : f32
    %95 = vector.broadcast %cst_52 : f32 to vector<16x128xf32>
    %96 = arith.mulf %94, %95 : vector<16x128xf32>
    %97 = arith.subf %92, %96 : vector<16x128xf32>
    %cst_53 = arith.constant 5.000000e-01 : f32
    %98 = vector.broadcast %cst_53 : f32 to vector<16x128xf32>
    %99 = arith.mulf %79, %98 : vector<16x128xf32>
    %cst_54 = arith.constant 1.000000e+00 : f32
    %100 = vector.broadcast %cst_54 : f32 to vector<16x128xf32>
    %101 = arith.subf %100, %82 : vector<16x128xf32>
    %102 = arith.mulf %99, %101 : vector<16x128xf32>
    %103 = arith.addf %102, %88 : vector<16x128xf32>
    %104 = arith.cmpf ogt, %103, %97 : vector<16x128xf32>
    %105 = arith.extui %104 : vector<16x128xi1> to vector<16x128xi32>
    %106 = arith.sitofp %105 : vector<16x128xi32> to vector<16x128xf32>
    %c3_55 = arith.constant 3 : index
    %c0_56 = arith.constant 0 : index
    %c0_57 = arith.constant 0 : index
    %107 = vector.load %arg6[%c3_55, %c0_56, %c0_57] : memref<8x16x128xf32, #tpu.memory_space<vmem>>, vector<1x16x128xf32>
    %108 = vector.shape_cast %107 : vector<1x16x128xf32> to vector<16x128xf32>
    %109 = vector.shape_cast %106 : vector<16x128xf32> to vector<1x16x128xf32>
    tpu.vector_store %arg6[%c3_55, %c0_56, %c0_57], %109 {strides = array<i32>} : memref<8x16x128xf32, #tpu.memory_space<vmem>>, vector<1x16x128xf32>,
    %cst_58 = arith.constant dense<0.000000e+00> : vector<16x128xf32>
    %110 = tpu.matmul %106, %10, %cst_58 {dimension_numbers = #tpu.dot_dimension_numbers<[1], [0], [0], [1], [0, 0, 1, 1], [], []>} : vector<16x128xf32>, vector<128x128xf32>, vector<16x128xf32> -> vector<16x128xf32>
    %c64 = arith.constant 64 : index
    %c0_59 = arith.constant 0 : index
    %111 = vector.load %arg10[%c64, %c0_59] : memref<128x128xf32, #tpu.memory_space<vmem>>, vector<16x128xf32>
    %112 = arith.addf %111, %110 : vector<16x128xf32>
    %c4 = arith.constant 4 : index
    %c0_60 = arith.constant 0 : index
    %113 = vector.load %arg5[%c4, %c0_60] : memref<8x128xf32, #tpu.memory_space<vmem>>, vector<1x128xf32>
    %114 = vector.broadcast %113 : vector<1x128xf32> to vector<16x128xf32>
    %115 = arith.mulf %103, %114 : vector<16x128xf32>
    %116 = arith.addf %97, %115 : vector<16x128xf32>
    %cst_61 = arith.constant 3.000000e-01 : f32
    %117 = vector.broadcast %cst_61 : f32 to vector<16x128xf32>
    %118 = arith.subf %97, %117 : vector<16x128xf32>
    %cst_62 = arith.constant 2.000000e-02 : f32
    %119 = vector.broadcast %cst_62 : f32 to vector<16x128xf32>
    %120 = arith.mulf %118, %119 : vector<16x128xf32>
    %121 = arith.subf %116, %120 : vector<16x128xf32>
    %cst_63 = arith.constant 5.000000e-01 : f32
    %122 = vector.broadcast %cst_63 : f32 to vector<16x128xf32>
    %123 = arith.mulf %103, %122 : vector<16x128xf32>
    %cst_64 = arith.constant 1.000000e+00 : f32
    %124 = vector.broadcast %cst_64 : f32 to vector<16x128xf32>
    %125 = arith.subf %124, %106 : vector<16x128xf32>
    %126 = arith.mulf %123, %125 : vector<16x128xf32>
    %127 = arith.addf %126, %112 : vector<16x128xf32>
    %128 = arith.cmpf ogt, %127, %121 : vector<16x128xf32>
    %129 = arith.extui %128 : vector<16x128xi1> to vector<16x128xi32>
    %130 = arith.sitofp %129 : vector<16x128xi32> to vector<16x128xf32>
    %c4_65 = arith.constant 4 : index
    %c0_66 = arith.constant 0 : index
    %c0_67 = arith.constant 0 : index
    %131 = vector.load %arg6[%c4_65, %c0_66, %c0_67] : memref<8x16x128xf32, #tpu.memory_space<vmem>>, vector<1x16x128xf32>
    %132 = vector.shape_cast %131 : vector<1x16x128xf32> to vector<16x128xf32>
    %133 = vector.shape_cast %130 : vector<16x128xf32> to vector<1x16x128xf32>
    tpu.vector_store %arg6[%c4_65, %c0_66, %c0_67], %133 {strides = array<i32>} : memref<8x16x128xf32, #tpu.memory_space<vmem>>, vector<1x16x128xf32>,
    %cst_68 = arith.constant dense<0.000000e+00> : vector<16x128xf32>
    %134 = tpu.matmul %130, %10, %cst_68 {dimension_numbers = #tpu.dot_dimension_numbers<[1], [0], [0], [1], [0, 0, 1, 1], [], []>} : vector<16x128xf32>, vector<128x128xf32>, vector<16x128xf32> -> vector<16x128xf32>
    %c80 = arith.constant 80 : index
    %c0_69 = arith.constant 0 : index
    %135 = vector.load %arg10[%c80, %c0_69] : memref<128x128xf32, #tpu.memory_space<vmem>>, vector<16x128xf32>
    %136 = arith.addf %135, %134 : vector<16x128xf32>
    %c5 = arith.constant 5 : index
    %c0_70 = arith.constant 0 : index
    %137 = vector.load %arg5[%c5, %c0_70] : memref<8x128xf32, #tpu.memory_space<vmem>>, vector<1x128xf32>
    %138 = vector.broadcast %137 : vector<1x128xf32> to vector<16x128xf32>
    %139 = arith.mulf %127, %138 : vector<16x128xf32>
    %140 = arith.addf %121, %139 : vector<16x128xf32>
    %cst_71 = arith.constant 3.000000e-01 : f32
    %141 = vector.broadcast %cst_71 : f32 to vector<16x128xf32>
    %142 = arith.subf %121, %141 : vector<16x128xf32>
    %cst_72 = arith.constant 2.000000e-02 : f32
    %143 = vector.broadcast %cst_72 : f32 to vector<16x128xf32>
    %144 = arith.mulf %142, %143 : vector<16x128xf32>
    %145 = arith.subf %140, %144 : vector<16x128xf32>
    %cst_73 = arith.constant 5.000000e-01 : f32
    %146 = vector.broadcast %cst_73 : f32 to vector<16x128xf32>
    %147 = arith.mulf %127, %146 : vector<16x128xf32>
    %cst_74 = arith.constant 1.000000e+00 : f32
    %148 = vector.broadcast %cst_74 : f32 to vector<16x128xf32>
    %149 = arith.subf %148, %130 : vector<16x128xf32>
    %150 = arith.mulf %147, %149 : vector<16x128xf32>
    %151 = arith.addf %150, %136 : vector<16x128xf32>
    %152 = arith.cmpf ogt, %151, %145 : vector<16x128xf32>
    %153 = arith.extui %152 : vector<16x128xi1> to vector<16x128xi32>
    %154 = arith.sitofp %153 : vector<16x128xi32> to vector<16x128xf32>
    %c5_75 = arith.constant 5 : index
    %c0_76 = arith.constant 0 : index
    %c0_77 = arith.constant 0 : index
    %155 = vector.load %arg6[%c5_75, %c0_76, %c0_77] : memref<8x16x128xf32, #tpu.memory_space<vmem>>, vector<1x16x128xf32>
    %156 = vector.shape_cast %155 : vector<1x16x128xf32> to vector<16x128xf32>
    %157 = vector.shape_cast %154 : vector<16x128xf32> to vector<1x16x128xf32>
    tpu.vector_store %arg6[%c5_75, %c0_76, %c0_77], %157 {strides = array<i32>} : memref<8x16x128xf32, #tpu.memory_space<vmem>>, vector<1x16x128xf32>,
    %cst_78 = arith.constant dense<0.000000e+00> : vector<16x128xf32>
    %158 = tpu.matmul %154, %10, %cst_78 {dimension_numbers = #tpu.dot_dimension_numbers<[1], [0], [0], [1], [0, 0, 1, 1], [], []>} : vector<16x128xf32>, vector<128x128xf32>, vector<16x128xf32> -> vector<16x128xf32>
    %c96 = arith.constant 96 : index
    %c0_79 = arith.constant 0 : index
    %159 = vector.load %arg10[%c96, %c0_79] : memref<128x128xf32, #tpu.memory_space<vmem>>, vector<16x128xf32>
    %160 = arith.addf %159, %158 : vector<16x128xf32>
    %c6 = arith.constant 6 : index
    %c0_80 = arith.constant 0 : index
    %161 = vector.load %arg5[%c6, %c0_80] : memref<8x128xf32, #tpu.memory_space<vmem>>, vector<1x128xf32>
    %162 = vector.broadcast %161 : vector<1x128xf32> to vector<16x128xf32>
    %163 = arith.mulf %151, %162 : vector<16x128xf32>
    %164 = arith.addf %145, %163 : vector<16x128xf32>
    %cst_81 = arith.constant 3.000000e-01 : f32
    %165 = vector.broadcast %cst_81 : f32 to vector<16x128xf32>
    %166 = arith.subf %145, %165 : vector<16x128xf32>
    %cst_82 = arith.constant 2.000000e-02 : f32
    %167 = vector.broadcast %cst_82 : f32 to vector<16x128xf32>
    %168 = arith.mulf %166, %167 : vector<16x128xf32>
    %169 = arith.subf %164, %168 : vector<16x128xf32>
    %cst_83 = arith.constant 5.000000e-01 : f32
    %170 = vector.broadcast %cst_83 : f32 to vector<16x128xf32>
    %171 = arith.mulf %151, %170 : vector<16x128xf32>
    %cst_84 = arith.constant 1.000000e+00 : f32
    %172 = vector.broadcast %cst_84 : f32 to vector<16x128xf32>
    %173 = arith.subf %172, %154 : vector<16x128xf32>
    %174 = arith.mulf %171, %173 : vector<16x128xf32>
    %175 = arith.addf %174, %160 : vector<16x128xf32>
    %176 = arith.cmpf ogt, %175, %169 : vector<16x128xf32>
    %177 = arith.extui %176 : vector<16x128xi1> to vector<16x128xi32>
    %178 = arith.sitofp %177 : vector<16x128xi32> to vector<16x128xf32>
    %c6_85 = arith.constant 6 : index
    %c0_86 = arith.constant 0 : index
    %c0_87 = arith.constant 0 : index
    %179 = vector.load %arg6[%c6_85, %c0_86, %c0_87] : memref<8x16x128xf32, #tpu.memory_space<vmem>>, vector<1x16x128xf32>
    %180 = vector.shape_cast %179 : vector<1x16x128xf32> to vector<16x128xf32>
    %181 = vector.shape_cast %178 : vector<16x128xf32> to vector<1x16x128xf32>
    tpu.vector_store %arg6[%c6_85, %c0_86, %c0_87], %181 {strides = array<i32>} : memref<8x16x128xf32, #tpu.memory_space<vmem>>, vector<1x16x128xf32>,
    %cst_88 = arith.constant dense<0.000000e+00> : vector<16x128xf32>
    %182 = tpu.matmul %178, %10, %cst_88 {dimension_numbers = #tpu.dot_dimension_numbers<[1], [0], [0], [1], [0, 0, 1, 1], [], []>} : vector<16x128xf32>, vector<128x128xf32>, vector<16x128xf32> -> vector<16x128xf32>
    %c112 = arith.constant 112 : index
    %c0_89 = arith.constant 0 : index
    %183 = vector.load %arg10[%c112, %c0_89] : memref<128x128xf32, #tpu.memory_space<vmem>>, vector<16x128xf32>
    %184 = arith.addf %183, %182 : vector<16x128xf32>
    %c7 = arith.constant 7 : index
    %c0_90 = arith.constant 0 : index
    %185 = vector.load %arg5[%c7, %c0_90] : memref<8x128xf32, #tpu.memory_space<vmem>>, vector<1x128xf32>
    %186 = vector.broadcast %185 : vector<1x128xf32> to vector<16x128xf32>
    %187 = arith.mulf %175, %186 : vector<16x128xf32>
    %188 = arith.addf %169, %187 : vector<16x128xf32>
    %cst_91 = arith.constant 3.000000e-01 : f32
    %189 = vector.broadcast %cst_91 : f32 to vector<16x128xf32>
    %190 = arith.subf %169, %189 : vector<16x128xf32>
    %cst_92 = arith.constant 2.000000e-02 : f32
    %191 = vector.broadcast %cst_92 : f32 to vector<16x128xf32>
    %192 = arith.mulf %190, %191 : vector<16x128xf32>
    %193 = arith.subf %188, %192 : vector<16x128xf32>
    %cst_93 = arith.constant 5.000000e-01 : f32
    %194 = vector.broadcast %cst_93 : f32 to vector<16x128xf32>
    %195 = arith.mulf %175, %194 : vector<16x128xf32>
    %cst_94 = arith.constant 1.000000e+00 : f32
    %196 = vector.broadcast %cst_94 : f32 to vector<16x128xf32>
    %197 = arith.subf %196, %178 : vector<16x128xf32>
    %198 = arith.mulf %195, %197 : vector<16x128xf32>
    %199 = arith.addf %198, %184 : vector<16x128xf32>
    %200 = arith.cmpf ogt, %199, %193 : vector<16x128xf32>
    %201 = arith.extui %200 : vector<16x128xi1> to vector<16x128xi32>
    %202 = arith.sitofp %201 : vector<16x128xi32> to vector<16x128xf32>
    %c7_95 = arith.constant 7 : index
    %c0_96 = arith.constant 0 : index
    %c0_97 = arith.constant 0 : index
    %203 = vector.load %arg6[%c7_95, %c0_96, %c0_97] : memref<8x16x128xf32, #tpu.memory_space<vmem>>, vector<1x16x128xf32>
    %204 = vector.shape_cast %203 : vector<1x16x128xf32> to vector<16x128xf32>
    %205 = vector.shape_cast %202 : vector<16x128xf32> to vector<1x16x128xf32>
    tpu.vector_store %arg6[%c7_95, %c0_96, %c0_97], %205 {strides = array<i32>} : memref<8x16x128xf32, #tpu.memory_space<vmem>>, vector<1x16x128xf32>,
    %c0_98 = arith.constant 0 : index
    %c0_99 = arith.constant 0 : index
    %206 = vector.load %arg7[%c0_98, %c0_99] : memref<16x128xf32, #tpu.memory_space<vmem>>, vector<16x128xf32>
    tpu.vector_store %arg7[%c0_98, %c0_99], %202 {strides = array<i32>} : memref<16x128xf32, #tpu.memory_space<vmem>>, vector<16x128xf32>,
    %c0_100 = arith.constant 0 : index
    %c0_101 = arith.constant 0 : index
    %207 = vector.load %arg8[%c0_100, %c0_101] : memref<16x128xf32, #tpu.memory_space<vmem>>, vector<16x128xf32>
    tpu.vector_store %arg8[%c0_100, %c0_101], %199 {strides = array<i32>} : memref<16x128xf32, #tpu.memory_space<vmem>>, vector<16x128xf32>,
    %c0_102 = arith.constant 0 : index
    %c0_103 = arith.constant 0 : index
    %208 = vector.load %arg9[%c0_102, %c0_103] : memref<16x128xf32, #tpu.memory_space<vmem>>, vector<16x128xf32>
    tpu.vector_store %arg9[%c0_102, %c0_103], %193 {strides = array<i32>} : memref<16x128xf32, #tpu.memory_space<vmem>>, vector<16x128xf32>,
    return
  }
  func.func @transform_0(%arg0: i32) -> (i32, i32) {
    %c0_i32 = arith.constant 0 : i32
    %c0_i32_0 = arith.constant 0 : i32
    return %arg0, %c0_i32 : i32, i32
  }
  func.func @transform_1(%arg0: i32) -> (i32, i32) {
    %c0_i32 = arith.constant 0 : i32
    %c0_i32_0 = arith.constant 0 : i32
    %c0_i32_1 = arith.constant 0 : i32
    return %c0_i32, %c0_i32_0 : i32, i32
  }
  func.func @transform_2(%arg0: i32) -> (i32, i32) {
    %c0_i32 = arith.constant 0 : i32
    %c0_i32_0 = arith.constant 0 : i32
    %c0_i32_1 = arith.constant 0 : i32
    return %c0_i32, %c0_i32_0 : i32, i32
  }
  func.func @transform_3(%arg0: i32) -> (i32, i32) {
    %c0_i32 = arith.constant 0 : i32
    %c0_i32_0 = arith.constant 0 : i32
    %c0_i32_1 = arith.constant 0 : i32
    return %c0_i32, %c0_i32_0 : i32, i32
  }
  func.func @transform_4(%arg0: i32) -> (i32, i32) {
    %c0_i32 = arith.constant 0 : i32
    %c0_i32_0 = arith.constant 0 : i32
    return %arg0, %c0_i32 : i32, i32
  }
  func.func @transform_5(%arg0: i32) -> (i32, i32, i32) {
    %c0_i32 = arith.constant 0 : i32
    %c0_i32_0 = arith.constant 0 : i32
    %c0_i32_1 = arith.constant 0 : i32
    return %arg0, %c0_i32, %c0_i32_0 : i32, i32, i32
  }
  func.func @transform_6(%arg0: i32) -> (i32, i32) {
    %c0_i32 = arith.constant 0 : i32
    %c0_i32_0 = arith.constant 0 : i32
    %c0_i32_1 = arith.constant 0 : i32
    return %c0_i32, %c0_i32_0 : i32, i32
  }
  func.func @transform_7(%arg0: i32) -> (i32, i32) {
    %c0_i32 = arith.constant 0 : i32
    %c0_i32_0 = arith.constant 0 : i32
    %c0_i32_1 = arith.constant 0 : i32
    return %c0_i32, %c0_i32_0 : i32, i32
  }
  func.func @transform_8(%arg0: i32) -> (i32, i32) {
    %c0_i32 = arith.constant 0 : i32
    %c0_i32_0 = arith.constant 0 : i32
    %c0_i32_1 = arith.constant 0 : i32
    return %c0_i32, %c0_i32_0 : i32, i32
  }
}

</mosaic_0001>

<llo_original>
// kernel: tpu_custom_call.1
$region0: #{tpu_custom_call.1}
  #allocation0 [shape = 'u32[]', space=smem, size = 0x4, offset = 0x4, fixed_abs, tag = 'smem constant byte address 0x4 - core index']
  #allocation1 [shape = 'u32[144,128]{1,0:T(1,128)}', space=vmem, size = 0x12000, scoped, tag = 'internal scratch']
  #allocation2 [shape = 'f32[128,128]{1,0:T(8,128)}', space=vmem, size = 0x10000, scoped, tag = 'scratch operand']
  %s0 = inlined_call_operand.vmem [shape: f32[128,16], index: 0, kind: input, shape index: {}]
  %s1 = inlined_call_operand.vmem [shape: f32[16,128], index: 1, kind: input, shape index: {}]
  %s2 = inlined_call_operand.vmem [shape: f32[128,128], index: 2, kind: input, shape index: {}]
  %s3 = inlined_call_operand.vmem [shape: f32[1,128], index: 3, kind: input, shape index: {}]
  %s4 = inlined_call_operand.hbm [shape: f32[8,128], index: 4, kind: input, shape index: {}]
  %s5 = inlined_call_operand.hbm [shape: f32[8,16,128], index: 5, kind: output, shape index: {0}]
  %s6 = inlined_call_operand.hbm [shape: f32[16,128], index: 6, kind: output, shape index: {1}]
  %s7 = inlined_call_operand.hbm [shape: f32[16,128], index: 7, kind: output, shape index: {2}]
  %s8 = inlined_call_operand.hbm [shape: f32[16,128], index: 8, kind: output, shape index: {3}]
  %9 = xla_tuple %s5, %s6, %s7, %s8
  %s10 = sld [smem:[#allocation0]]
  $region62: #{tpu_custom_call.1} parent=0
    _
  %s12 = ssub.s32 1, %s10
  %s13 = scalar_select 0, %s12, %s10
  $region1: #{tpu_custom_call.1} parent=0
    #allocation3 [shape = 'u8[4096]{0}', space=vmem, size = 0x1000, scoped, tag = 'input window, operand 4, single buffered']
    #allocation4 [shape = 's32[1]{0}', space=sflag, size = 0x4, scoped, tag = 'scoped memory for tpu_custom_call.1']
    #allocation5 [shape = 's32[1]{0}', space=sflag, size = 0x4, scoped, tag = 'scoped memory for tpu_custom_call.1']
    #allocation6 [shape = 'u8[65536]{0}', space=vmem, size = 0x10000, scoped, tag = 'output window, operand 0, single buffered']
    #allocation7 [shape = 'u8[8192]{0}', space=vmem, size = 0x2000, scoped, tag = 'output window, operand 1, single buffered']
    #allocation8 [shape = 's32[1]{0}', space=sflag, size = 0x4, scoped, tag = 'scoped memory for tpu_custom_call.1']
    #allocation9 [shape = 'u8[8192]{0}', space=vmem, size = 0x2000, scoped, tag = 'output window, operand 2, single buffered']
    #allocation10 [shape = 'u8[8192]{0}', space=vmem, size = 0x2000, scoped, tag = 'output window, operand 3, single buffered']
    #allocation11 [shape = 's32[1]{0}', space=sflag, size = 0x4, scoped, tag = 'scoped memory for tpu_custom_call.1']
    %14 = vsyncpa [#allocation4], 0
    %15 = vsyncpa [#allocation5], 0
    %16 = vsyncpa [#allocation8], 0
    %17 = vsyncpa [#allocation11], 0
    // Predicated region
    $region2: #{tpu_custom_call.1} parent=1 // pred_check
      _
    $region3: #{tpu_custom_call.1} parent=1 // pred_check_branch
      %19 = sbr.rel (0) target = $region5
    $region4: #{tpu_custom_call.1} parent=1 // pred_region
      _
    $region5: #{tpu_custom_call.1} parent=1 // pred_fallthru
      _
    // Predicated region
    $region6: #{tpu_custom_call.1} parent=1 // pred_check
      _
    $region7: #{tpu_custom_call.1} parent=1 // pred_check_branch
      %21 = sbr.rel (0) target = $region9
    $region8: #{tpu_custom_call.1} parent=1 // pred_region
      _
    $region9: #{tpu_custom_call.1} parent=1 // pred_fallthru
      _
    // Predicated region
    $region10: #{tpu_custom_call.1} parent=1 // pred_check
      _
    $region11: #{tpu_custom_call.1} parent=1 // pred_check_branch
      %23 = sbr.rel (0) target = $region13
    $region12: #{tpu_custom_call.1} parent=1 // pred_region
      _
    $region13: #{tpu_custom_call.1} parent=1 // pred_fallthru
      _
    // Predicated region
    $region14: #{tpu_custom_call.1} parent=1 // pred_check
      _
    $region15: #{tpu_custom_call.1} parent=1 // pred_check_branch
      %25 = sbr.rel (0) target = $region17
    $region16: #{tpu_custom_call.1} parent=1 // pred_region
      _
    $region17: #{tpu_custom_call.1} parent=1 // pred_fallthru
      _
    // Predicated region
    $region18: #{tpu_custom_call.1} parent=1 // pred_check
      _
    $region19: #{tpu_custom_call.1} parent=1 // pred_check_branch
      %27 = sbr.rel (0) target = $region21
    $region20: #{tpu_custom_call.1} parent=1 // pred_region
      %s29 = ssub.s32 128, 128
      %30 = vsyncadd [#allocation4], %s29
      %s32 = sshll.u32 [#allocation3], 4
      %s33 = int_to_ptr.vmem [resolvable:$true] %s32
      %35 = dma.hbm_to_vmem [thread:$0]  %s4, 128, %s33, [#allocation4]
    $region21: #{tpu_custom_call.1} parent=1 // pred_fallthru
      _
    // Predicated region
    $region22: #{tpu_custom_call.1} parent=1 // pred_check
      _
    $region23: #{tpu_custom_call.1} parent=1 // pred_check_branch
      %37 = sbr.rel (0) target = $region25
    $region24: #{tpu_custom_call.1} parent=1 // pred_region
      %38 = dma.done [#allocation4], 128
    $region25: #{tpu_custom_call.1} parent=1 // pred_fallthru
      _
    %p39 = scmp.eq.s32.totalorder 0, 0
    // Predicated region
    $region26: #{tpu_custom_call.1} parent=1 // pred_check
      %p40 = pneg %p39
    $region27: #{tpu_custom_call.1} parent=1 // pred_check_branch
      %42 = sbr.rel (%p40) target = $region29
    $region28: #{tpu_custom_call.1} parent=1 // pred_region
      %43 = vst [vmem:[#allocation7] sm:$0xff] 0.0
      %44 = vst [vmem:[#allocation7 + $0x8] sm:$0xff] 0.0
      %45 = vst [vmem:[#allocation9] sm:$0xff] 0.0
      %46 = vst [vmem:[#allocation9 + $0x8] sm:$0xff] 0.0
      %47 = vst [vmem:[#allocation10] sm:$0xff] 0.3
      %48 = vst [vmem:[#allocation10 + $0x8] sm:$0xff] 0.3
    $region29: #{tpu_custom_call.1} parent=1 // pred_fallthru
      _
    %v49 = vld [vmem:[%s0] sm:$0xff]
    %v50 = vld [vmem:[%s0 + $0x8] sm:$0xff]
    %v51 = vld [vmem:[%s0 + $0x10] sm:$0xff]
    %v52 = vld [vmem:[%s0 + $0x18] sm:$0xff]
    %v53 = vld [vmem:[%s0 + $0x20] sm:$0xff]
    %v54 = vld [vmem:[%s0 + $0x28] sm:$0xff]
    %v55 = vld [vmem:[%s0 + $0x30] sm:$0xff]
    %v56 = vld [vmem:[%s0 + $0x38] sm:$0xff]
    %v57 = vld [vmem:[%s0 + $0x40] sm:$0xff]
    %v58 = vld [vmem:[%s0 + $0x48] sm:$0xff]
    %v59 = vld [vmem:[%s0 + $0x50] sm:$0xff]
    %v60 = vld [vmem:[%s0 + $0x58] sm:$0xff]
    %v61 = vld [vmem:[%s0 + $0x60] sm:$0xff]
    %v62 = vld [vmem:[%s0 + $0x68] sm:$0xff]
    %v63 = vld [vmem:[%s0 + $0x70] sm:$0xff]
    %v64 = vld [vmem:[%s0 + $0x78] sm:$0xff]
    %v65 = vld [vmem:[%s1] sm:$0xff]
    %v66 = vld [vmem:[%s1 + $0x8] sm:$0xff]
    %v67 = vld [vmem:[%s3] sm:$0x1]
    %v69 = vlaneseq
    %v70 = vshrl.u32 %v69, 7
    %v71 = vsub.s32 0, %v70
    %v72 = vrot.slane %v67, %v71
    %vm74 = vcmask 130048
    %v76 = vsel %vm74, %v49, 0
    %v79 = vsel %vm74, %v50, 0
    %v82 = vsel %vm74, %v51, 0
    %v85 = vsel %vm74, %v52, 0
    %v88 = vsel %vm74, %v53, 0
    %v91 = vsel %vm74, %v54, 0
    %v94 = vsel %vm74, %v55, 0
    %v97 = vsel %vm74, %v56, 0
    %v100 = vsel %vm74, %v57, 0
    %v103 = vsel %vm74, %v58, 0
    %v106 = vsel %vm74, %v59, 0
    %v109 = vsel %vm74, %v60, 0
    %v112 = vsel %vm74, %v61, 0
    %v115 = vsel %vm74, %v62, 0
    %v118 = vsel %vm74, %v63, 0
    %v121 = vsel %vm74, %v64, 0
    %123 = vmatprep.subr.mxu0 0.0
    %124 = vmatpush1.msra.mxu0 0.0
    %125 = vmatprep.subr.mxu0 0.0
    %126 = vmatpush1.msra.mxu0 0.0
    %127 = vmatprep.subr.mxu0 0.0
    %128 = vmatpush1.msra.mxu0 0.0
    %129 = vmatprep.subr.mxu0 0.0
    %130 = vmatpush1.msra.mxu0 0.0
    %131 = vmatprep.subr.mxu0 0.0
    %132 = vmatpush1.msra.mxu0 0.0
    %133 = vmatprep.subr.mxu0 0.0
    %134 = vmatpush1.msra.mxu0 0.0
    %135 = vmatprep.subr.mxu0 0.0
    %136 = vmatpush1.msra.mxu0 0.0
    %137 = vmatprep.subr.mxu0 0.0
    %138 = vmatpush1.msra.mxu0 0.0
    %139 = vmatprep.subr.mxu0 0.0
    %140 = vmatpush1.msra.mxu0 0.0
    %141 = vmatprep.subr.mxu0 0.0
    %142 = vmatpush1.msra.mxu0 0.0
    %143 = vmatprep.subr.mxu0 0.0
    %144 = vmatpush1.msra.mxu0 0.0
    %145 = vmatprep.subr.mxu0 0.0
    %146 = vmatpush1.msra.mxu0 0.0
    %147 = vmatprep.subr.mxu0 0.0
    %148 = vmatpush1.msra.mxu0 0.0
    %149 = vmatprep.subr.mxu0 0.0
    %150 = vmatpush1.msra.mxu0 0.0
    %151 = vmatprep.subr.mxu0 0.0
    %152 = vmatpush1.msra.mxu0 %v66
    %153 = vmatprep.subr.mxu0 0.0
    %154 = vmatpush1.msra.mxu0 %v65
    %155 = vmatprep.subr.mxu0 0.0
    %156 = vmatpush2.msra.mxu0 0.0
    %157 = vmatprep.subr.mxu0 0.0
    %158 = vmatpush2.msra.mxu0 0.0
    %159 = vmatprep.subr.mxu0 0.0
    %160 = vmatpush2.msra.mxu0 0.0
    %161 = vmatprep.subr.mxu0 0.0
    %162 = vmatpush2.msra.mxu0 0.0
    %163 = vmatprep.subr.mxu0 0.0
    %164 = vmatpush2.msra.mxu0 0.0
    %165 = vmatprep.subr.mxu0 0.0
    %166 = vmatpush2.msra.mxu0 0.0
    %167 = vmatprep.subr.mxu0 0.0
    %168 = vmatpush2.msra.mxu0 0.0
    %169 = vmatprep.subr.mxu0 0.0
    %170 = vmatpush2.msra.mxu0 0.0
    %171 = vmatprep.subr.mxu0 0.0
    %172 = vmatpush2.msra.mxu0 0.0
    %173 = vmatprep.subr.mxu0 0.0
    %174 = vmatpush2.msra.mxu0 0.0
    %175 = vmatprep.subr.mxu0 0.0
    %176 = vmatpush2.msra.mxu0 0.0
    %177 = vmatprep.subr.mxu0 0.0
    %178 = vmatpush2.msra.mxu0 0.0
    %179 = vmatprep.subr.mxu0 0.0
    %180 = vmatpush2.msra.mxu0 0.0
    %181 = vmatprep.subr.mxu0 0.0
    %182 = vmatpush2.msra.mxu0 0.0
    %183 = vmatprep.subr.mxu0 0.0
    %184 = vmatpush2.msra.mxu0 0.0
    %185 = vmatprep.subr.mxu0 0.0
    %186 = vmatpush2.msra.mxu0 0.0
    %187 = vmatprep.mubr.f32.mxu0 0.0
    %188 = vmatmul.mubr.f32.gmra.mxu0 %v76
    %v189 = vpop.f32.mrf.mxu0
    %v190 = vadd.f32 %v72, %v189
    %v191 = vpop.f32.mrf.mxu0
    %192 = vmatprep.mubr.f32.mxu0 0.0
    %193 = vmatmul.mubr.f32.gmra.mxu0 %v79
    %v194 = vpop.f32.mrf.mxu0
    %v195 = vadd.f32 %v72, %v194
    %v196 = vpop.f32.mrf.mxu0
    %197 = vmatprep.mubr.f32.mxu0 0.0
    %198 = vmatmul.mubr.f32.gmra.mxu0 %v82
    %v199 = vpop.f32.mrf.mxu0
    %v200 = vadd.f32 %v72, %v199
    %v201 = vpop.f32.mrf.mxu0
    %202 = vmatprep.mubr.f32.mxu0 0.0
    %203 = vmatmul.mubr.f32.gmra.mxu0 %v85
    %v204 = vpop.f32.mrf.mxu0
    %v205 = vadd.f32 %v72, %v204
    %v206 = vpop.f32.mrf.mxu0
    %207 = vmatprep.mubr.f32.mxu0 0.0
    %208 = vmatmul.mubr.f32.gmra.mxu0 %v88
    %v209 = vpop.f32.mrf.mxu0
    %v210 = vadd.f32 %v72, %v209
    %v211 = vpop.f32.mrf.mxu0
    %212 = vmatprep.mubr.f32.mxu0 0.0
    %213 = vmatmul.mubr.f32.gmra.mxu0 %v91
    %v214 = vpop.f32.mrf.mxu0
    %v215 = vadd.f32 %v72, %v214
    %v216 = vpop.f32.mrf.mxu0
    %217 = vmatprep.mubr.f32.mxu0 0.0
    %218 = vmatmul.mubr.f32.gmra.mxu0 %v94
    %v219 = vpop.f32.mrf.mxu0
    %v220 = vadd.f32 %v72, %v219
    %v221 = vpop.f32.mrf.mxu0
    %222 = vmatprep.mubr.f32.mxu0 0.0
    %223 = vmatmul.mubr.f32.gmra.mxu0 %v97
    %v224 = vpop.f32.mrf.mxu0
    %v225 = vadd.f32 %v72, %v224
    %v226 = vpop.f32.mrf.mxu0
    %227 = vmatprep.mubr.f32.mxu0 0.0
    %228 = vmatmul.mubr.f32.gmra.mxu0 %v100
    %v229 = vpop.f32.mrf.mxu0
    %v230 = vadd.f32 %v72, %v229
    %v231 = vpop.f32.mrf.mxu0
    %232 = vmatprep.mubr.f32.mxu0 0.0
    %233 = vmatmul.mubr.f32.gmra.mxu0 %v103
    %v234 = vpop.f32.mrf.mxu0
    %v235 = vadd.f32 %v72, %v234
    %v236 = vpop.f32.mrf.mxu0
    %237 = vmatprep.mubr.f32.mxu0 0.0
    %238 = vmatmul.mubr.f32.gmra.mxu0 %v106
    %v239 = vpop.f32.mrf.mxu0
    %v240 = vadd.f32 %v72, %v239
    %v241 = vpop.f32.mrf.mxu0
    %242 = vmatprep.mubr.f32.mxu0 0.0
    %243 = vmatmul.mubr.f32.gmra.mxu0 %v109
    %v244 = vpop.f32.mrf.mxu0
    %v245 = vadd.f32 %v72, %v244
    %v246 = vpop.f32.mrf.mxu0
    %247 = vmatprep.mubr.f32.mxu0 0.0
    %248 = vmatmul.mubr.f32.gmra.mxu0 %v112
    %v249 = vpop.f32.mrf.mxu0
    %v250 = vadd.f32 %v72, %v249
    %v251 = vpop.f32.mrf.mxu0
    %252 = vmatprep.mubr.f32.mxu0 0.0
    %253 = vmatmul.mubr.f32.gmra.mxu0 %v115
    %v254 = vpop.f32.mrf.mxu0
    %v255 = vadd.f32 %v72, %v254
    %v256 = vpop.f32.mrf.mxu0
    %257 = vmatprep.mubr.f32.mxu0 0.0
    %258 = vmatmul.mubr.f32.gmra.mxu0 %v118
    %v259 = vpop.f32.mrf.mxu0
    %v260 = vadd.f32 %v72, %v259
    %v261 = vpop.f32.mrf.mxu0
    %262 = vmatprep.mubr.f32.mxu0 0.0
    %263 = vmatmul.mubr.f32.gmra.mxu0 %v121
    %v264 = vpop.f32.mrf.mxu0
    %v265 = vadd.f32 %v72, %v264
    %v266 = vpop.f32.mrf.mxu0
    %267 = vdwg.mxu0
    %268 = vst [vmem:[#allocation2] sm:$0xff] %v190
    %269 = vst [vmem:[#allocation2 + $0x8] sm:$0xff] %v195
    %270 = vst [vmem:[#allocation2 + $0x10] sm:$0xff] %v200
    %271 = vst [vmem:[#allocation2 + $0x18] sm:$0xff] %v205
    %272 = vst [vmem:[#allocation2 + $0x20] sm:$0xff] %v210
    %273 = vst [vmem:[#allocation2 + $0x28] sm:$0xff] %v215
    %274 = vst [vmem:[#allocation2 + $0x30] sm:$0xff] %v220
    %275 = vst [vmem:[#allocation2 + $0x38] sm:$0xff] %v225
    %276 = vst [vmem:[#allocation2 + $0x40] sm:$0xff] %v230
    %277 = vst [vmem:[#allocation2 + $0x48] sm:$0xff] %v235
    %278 = vst [vmem:[#allocation2 + $0x50] sm:$0xff] %v240
    %279 = vst [vmem:[#allocation2 + $0x58] sm:$0xff] %v245
    %280 = vst [vmem:[#allocation2 + $0x60] sm:$0xff] %v250
    %281 = vst [vmem:[#allocation2 + $0x68] sm:$0xff] %v255
    %282 = vst [vmem:[#allocation2 + $0x70] sm:$0xff] %v260
    %283 = vst [vmem:[#allocation2 + $0x78] sm:$0xff] %v265
    %v284 = vld [vmem:[%s2] sm:$0xff]
    %v285 = vld [vmem:[%s2 + $0x8] sm:$0xff]
    %v286 = vld [vmem:[%s2 + $0x10] sm:$0xff]
    %v287 = vld [vmem:[%s2 + $0x18] sm:$0xff]
    %v288 = vld [vmem:[%s2 + $0x20] sm:$0xff]
    %v289 = vld [vmem:[%s2 + $0x28] sm:$0xff]
    %v290 = vld [vmem:[%s2 + $0x30] sm:$0xff]
    %v291 = vld [vmem:[%s2 + $0x38] sm:$0xff]
    %v292 = vld [vmem:[%s2 + $0x40] sm:$0xff]
    %v293 = vld [vmem:[%s2 + $0x48] sm:$0xff]
    %v294 = vld [vmem:[%s2 + $0x50] sm:$0xff]
    %v295 = vld [vmem:[%s2 + $0x58] sm:$0xff]
    %v296 = vld [vmem:[%s2 + $0x60] sm:$0xff]
    %v297 = vld [vmem:[%s2 + $0x68] sm:$0xff]
    %v298 = vld [vmem:[%s2 + $0x70] sm:$0xff]
    %v299 = vld [vmem:[%s2 + $0x78] sm:$0xff]
    %v300 = vld [vmem:[#allocation7] sm:$0xff]
    %v301 = vld [vmem:[#allocation7 + $0x8] sm:$0xff]
    %v302 = vld [vmem:[#allocation9] sm:$0xff]
    %v303 = vld [vmem:[#allocation9 + $0x8] sm:$0xff]
    %v304 = vld [vmem:[#allocation10] sm:$0xff]
    %v305 = vld [vmem:[#allocation10 + $0x8] sm:$0xff]
    %306 = vmatprep.subr.mxu0 0.0
    %307 = vmatpush1.msra.mxu0 %v299
    %308 = vmatprep.subr.mxu0 0.0
    %309 = vmatpush1.msra.mxu0 %v298
    %310 = vmatprep.subr.mxu0 0.0
    %311 = vmatpush1.msra.mxu0 %v297
    %312 = vmatprep.subr.mxu0 0.0
    %313 = vmatpush1.msra.mxu0 %v296
    %314 = vmatprep.subr.mxu0 0.0
    %315 = vmatpush1.msra.mxu0 %v295
    %316 = vmatprep.subr.mxu0 0.0
    %317 = vmatpush1.msra.mxu0 %v294
    %318 = vmatprep.subr.mxu0 0.0
    %319 = vmatpush1.msra.mxu0 %v293
    %320 = vmatprep.subr.mxu0 0.0
    %321 = vmatpush1.msra.mxu0 %v292
    %322 = vmatprep.subr.mxu0 0.0
    %323 = vmatpush1.msra.mxu0 %v291
    %324 = vmatprep.subr.mxu0 0.0
    %325 = vmatpush1.msra.mxu0 %v290
    %326 = vmatprep.subr.mxu0 0.0
    %327 = vmatpush1.msra.mxu0 %v289
    %328 = vmatprep.subr.mxu0 0.0
    %329 = vmatpush1.msra.mxu0 %v288
    %330 = vmatprep.subr.mxu0 0.0
    %331 = vmatpush1.msra.mxu0 %v287
    %332 = vmatprep.subr.mxu0 0.0
    %333 = vmatpush1.msra.mxu0 %v286
    %334 = vmatprep.subr.mxu0 0.0
    %335 = vmatpush1.msra.mxu0 %v285
    %336 = vmatprep.subr.mxu0 0.0
    %337 = vmatpush1.msra.mxu0 %v284
    %338 = vmatprep.subr.mxu0 0.0
    %339 = vmatpush2.msra.mxu0 0.0
    %340 = vmatprep.subr.mxu0 0.0
    %341 = vmatpush2.msra.mxu0 0.0
    %342 = vmatprep.subr.mxu0 0.0
    %343 = vmatpush2.msra.mxu0 0.0
    %344 = vmatprep.subr.mxu0 0.0
    %345 = vmatpush2.msra.mxu0 0.0
    %346 = vmatprep.subr.mxu0 0.0
    %347 = vmatpush2.msra.mxu0 0.0
    %348 = vmatprep.subr.mxu0 0.0
    %349 = vmatpush2.msra.mxu0 0.0
    %350 = vmatprep.subr.mxu0 0.0
    %351 = vmatpush2.msra.mxu0 0.0
    %352 = vmatprep.subr.mxu0 0.0
    %353 = vmatpush2.msra.mxu0 0.0
    %354 = vmatprep.subr.mxu0 0.0
    %355 = vmatpush2.msra.mxu0 0.0
    %356 = vmatprep.subr.mxu0 0.0
    %357 = vmatpush2.msra.mxu0 0.0
    %358 = vmatprep.subr.mxu0 0.0
    %359 = vmatpush2.msra.mxu0 0.0
    %360 = vmatprep.subr.mxu0 0.0
    %361 = vmatpush2.msra.mxu0 0.0
    %362 = vmatprep.subr.mxu0 0.0
    %363 = vmatpush2.msra.mxu0 0.0
    %364 = vmatprep.subr.mxu0 0.0
    %365 = vmatpush2.msra.mxu0 0.0
    %366 = vmatprep.subr.mxu0 0.0
    %367 = vmatpush2.msra.mxu0 0.0
    %368 = vmatprep.subr.mxu0 0.0
    %369 = vmatpush2.msra.mxu0 0.0
    %370 = vmatprep.mubr.f32.mxu0 0.0
    %371 = vmatmul.mubr.f32.gmra.mxu0 %v300
    %v372 = vpop.f32.mrf.mxu0
    %v373 = vadd.f32 0.0, %v372
    %v374 = vpop.f32.mrf.mxu0
    %375 = vmatprep.mubr.f32.mxu0 0.0
    %376 = vmatmul.mubr.f32.gmra.mxu0 %v301
    %v377 = vpop.f32.mrf.mxu0
    %v378 = vadd.f32 0.0, %v377
    %v379 = vpop.f32.mrf.mxu0
    %380 = vdwg.mxu0
    %v381 = vld [vmem:[#allocation2] sm:$0xff]
    %v382 = vld [vmem:[#allocation2 + $0x8] sm:$0xff]
    %v383 = vadd.f32 %v381, %v373
    %v384 = vadd.f32 %v382, %v378
    %v385 = vld [vmem:[#allocation3] sm:$0x1]
    %v386 = vlaneseq
    %v387 = vshrl.u32 %v386, 7
    %v388 = vsub.s32 0, %v387
    %v389 = vrot.slane %v385, %v388
    %v390 = vmul.f32 %v302, %v389
    %v391 = vmul.f32 %v303, %v389
    %v392 = vadd.f32 %v304, %v390
    %v393 = vadd.f32 %v305, %v391
    %v394 = vsub.f32 %v304, 0.3
    %v395 = vsub.f32 %v305, 0.3
    %v396 = vmul.f32 %v394, 0.02
    %v397 = vmul.f32 %v395, 0.02
    %v398 = vsub.f32 %v392, %v396
    %v399 = vsub.f32 %v393, %v397
    %v400 = vmul.f32 %v302, 0.5
    %v401 = vmul.f32 %v303, 0.5
    %v402 = vsub.f32 1.0, %v300
    %v403 = vsub.f32 1.0, %v301
    %v404 = vmul.f32 %v400, %v402
    %v405 = vmul.f32 %v401, %v403
    %v406 = vadd.f32 %v404, %v383
    %v407 = vadd.f32 %v405, %v384
    %vm408 = vcmp.gt.f32.partialorder %v406, %v398
    %vm409 = vcmp.gt.f32.partialorder %v407, %v399
    %v410 = vsel %vm408, 1, 0
    %v411 = vsel %vm409, 1, 0
    %v412 = vcvt.s32.f32 %v410
    %v413 = vcvt.s32.f32 %v411
    %414 = vst [vmem:[#allocation6] sm:$0xff] %v412
    %415 = vst [vmem:[#allocation6 + $0x8] sm:$0xff] %v413
    %416 = vmatprep.subr.mxu0 0.0
    %417 = vmatpush1.msra.mxu0 %v299
    %418 = vmatprep.subr.mxu0 0.0
    %419 = vmatpush1.msra.mxu0 %v298
    %420 = vmatprep.subr.mxu0 0.0
    %421 = vmatpush1.msra.mxu0 %v297
    %422 = vmatprep.subr.mxu0 0.0
    %423 = vmatpush1.msra.mxu0 %v296
    %424 = vmatprep.subr.mxu0 0.0
    %425 = vmatpush1.msra.mxu0 %v295
    %426 = vmatprep.subr.mxu0 0.0
    %427 = vmatpush1.msra.mxu0 %v294
    %428 = vmatprep.subr.mxu0 0.0
    %429 = vmatpush1.msra.mxu0 %v293
    %430 = vmatprep.subr.mxu0 0.0
    %431 = vmatpush1.msra.mxu0 %v292
    %432 = vmatprep.subr.mxu0 0.0
    %433 = vmatpush1.msra.mxu0 %v291
    %434 = vmatprep.subr.mxu0 0.0
    %435 = vmatpush1.msra.mxu0 %v290
    %436 = vmatprep.subr.mxu0 0.0
    %437 = vmatpush1.msra.mxu0 %v289
    %438 = vmatprep.subr.mxu0 0.0
    %439 = vmatpush1.msra.mxu0 %v288
    %440 = vmatprep.subr.mxu0 0.0
    %441 = vmatpush1.msra.mxu0 %v287
    %442 = vmatprep.subr.mxu0 0.0
    %443 = vmatpush1.msra.mxu0 %v286
    %444 = vmatprep.subr.mxu0 0.0
    %445 = vmatpush1.msra.mxu0 %v285
    %446 = vmatprep.subr.mxu0 0.0
    %447 = vmatpush1.msra.mxu0 %v284
    %448 = vmatprep.subr.mxu0 0.0
    %449 = vmatpush2.msra.mxu0 0.0
    %450 = vmatprep.subr.mxu0 0.0
    %451 = vmatpush2.msra.mxu0 0.0
    %452 = vmatprep.subr.mxu0 0.0
    %453 = vmatpush2.msra.mxu0 0.0
    %454 = vmatprep.subr.mxu0 0.0
    %455 = vmatpush2.msra.mxu0 0.0
    %456 = vmatprep.subr.mxu0 0.0
    %457 = vmatpush2.msra.mxu0 0.0
    %458 = vmatprep.subr.mxu0 0.0
    %459 = vmatpush2.msra.mxu0 0.0
    %460 = vmatprep.subr.mxu0 0.0
    %461 = vmatpush2.msra.mxu0 0.0
    %462 = vmatprep.subr.mxu0 0.0
    %463 = vmatpush2.msra.mxu0 0.0
    %464 = vmatprep.subr.mxu0 0.0
    %465 = vmatpush2.msra.mxu0 0.0
    %466 = vmatprep.subr.mxu0 0.0
    %467 = vmatpush2.msra.mxu0 0.0
    %468 = vmatprep.subr.mxu0 0.0
    %469 = vmatpush2.msra.mxu0 0.0
    %470 = vmatprep.subr.mxu0 0.0
    %471 = vmatpush2.msra.mxu0 0.0
    %472 = vmatprep.subr.mxu0 0.0
    %473 = vmatpush2.msra.mxu0 0.0
    %474 = vmatprep.subr.mxu0 0.0
    %475 = vmatpush2.msra.mxu0 0.0
    %476 = vmatprep.subr.mxu0 0.0
    %477 = vmatpush2.msra.mxu0 0.0
    %478 = vmatprep.subr.mxu0 0.0
    %479 = vmatpush2.msra.mxu0 0.0
    %480 = vmatprep.mubr.f32.mxu0 0.0
    %481 = vmatmul.mubr.f32.gmra.mxu0 %v412
    %v482 = vpop.f32.mrf.mxu0
    %v483 = vadd.f32 0.0, %v482
    %v484 = vpop.f32.mrf.mxu0
    %485 = vmatprep.mubr.f32.mxu0 0.0
    %486 = vmatmul.mubr.f32.gmra.mxu0 %v413
    %v487 = vpop.f32.mrf.mxu0
    %v488 = vadd.f32 0.0, %v487
    %v489 = vpop.f32.mrf.mxu0
    %490 = vdwg.mxu0
    %v491 = vld [vmem:[#allocation2 + $0x10] sm:$0xff]
    %v492 = vld [vmem:[#allocation2 + $0x18] sm:$0xff]
    %v493 = vadd.f32 %v491, %v483
    %v494 = vadd.f32 %v492, %v488
    %v495 = vld [vmem:[#allocation3 + $0x1] sm:$0x1]
    %v496 = vlaneseq
    %v497 = vshrl.u32 %v496, 7
    %v498 = vsub.s32 0, %v497
    %v499 = vrot.slane %v495, %v498
    %v500 = vmul.f32 %v406, %v499
    %v501 = vmul.f32 %v407, %v499
    %v502 = vadd.f32 %v398, %v500
    %v503 = vadd.f32 %v399, %v501
    %v504 = vsub.f32 %v398, 0.3
    %v505 = vsub.f32 %v399, 0.3
    %v506 = vmul.f32 %v504, 0.02
    %v507 = vmul.f32 %v505, 0.02
    %v508 = vsub.f32 %v502, %v506
    %v509 = vsub.f32 %v503, %v507
    %v510 = vmul.f32 %v406, 0.5
    %v511 = vmul.f32 %v407, 0.5
    %v512 = vsub.f32 1.0, %v412
    %v513 = vsub.f32 1.0, %v413
    %v514 = vmul.f32 %v510, %v512
    %v515 = vmul.f32 %v511, %v513
    %v516 = vadd.f32 %v514, %v493
    %v517 = vadd.f32 %v515, %v494
    %vm518 = vcmp.gt.f32.partialorder %v516, %v508
    %vm519 = vcmp.gt.f32.partialorder %v517, %v509
    %v520 = vsel %vm518, 1, 0
    %v521 = vsel %vm519, 1, 0
    %v522 = vcvt.s32.f32 %v520
    %v523 = vcvt.s32.f32 %v521
    %s524 = scalar_lea.vmem [#allocation6], 16
    %525 = vst [vmem:[%s524] sm:$0xff] %v522
    %526 = vst [vmem:[%s524 + $0x8] sm:$0xff] %v523
    %527 = vmatprep.subr.mxu0 0.0
    %528 = vmatpush1.msra.mxu0 %v299
    %529 = vmatprep.subr.mxu0 0.0
    %530 = vmatpush1.msra.mxu0 %v298
    %531 = vmatprep.subr.mxu0 0.0
    %532 = vmatpush1.msra.mxu0 %v297
    %533 = vmatprep.subr.mxu0 0.0
    %534 = vmatpush1.msra.mxu0 %v296
    %535 = vmatprep.subr.mxu0 0.0
    %536 = vmatpush1.msra.mxu0 %v295
    %537 = vmatprep.subr.mxu0 0.0
    %538 = vmatpush1.msra.mxu0 %v294
    %539 = vmatprep.subr.mxu0 0.0
    %540 = vmatpush1.msra.mxu0 %v293
    %541 = vmatprep.subr.mxu0 0.0
    %542 = vmatpush1.msra.mxu0 %v292
    %543 = vmatprep.subr.mxu0 0.0
    %544 = vmatpush1.msra.mxu0 %v291
    %545 = vmatprep.subr.mxu0 0.0
    %546 = vmatpush1.msra.mxu0 %v290
    %547 = vmatprep.subr.mxu0 0.0
    %548 = vmatpush1.msra.mxu0 %v289
    %549 = vmatprep.subr.mxu0 0.0
    %550 = vmatpush1.msra.mxu0 %v288
    %551 = vmatprep.subr.mxu0 0.0
    %552 = vmatpush1.msra.mxu0 %v287
    %553 = vmatprep.subr.mxu0 0.0
    %554 = vmatpush1.msra.mxu0 %v286
    %555 = vmatprep.subr.mxu0 0.0
    %556 = vmatpush1.msra.mxu0 %v285
    %557 = vmatprep.subr.mxu0 0.0
    %558 = vmatpush1.msra.mxu0 %v284
    %559 = vmatprep.subr.mxu0 0.0
    %560 = vmatpush2.msra.mxu0 0.0
    %561 = vmatprep.subr.mxu0 0.0
    %562 = vmatpush2.msra.mxu0 0.0
    %563 = vmatprep.subr.mxu0 0.0
    %564 = vmatpush2.msra.mxu0 0.0
    %565 = vmatprep.subr.mxu0 0.0
    %566 = vmatpush2.msra.mxu0 0.0
    %567 = vmatprep.subr.mxu0 0.0
    %568 = vmatpush2.msra.mxu0 0.0
    %569 = vmatprep.subr.mxu0 0.0
    %570 = vmatpush2.msra.mxu0 0.0
    %571 = vmatprep.subr.mxu0 0.0
    %572 = vmatpush2.msra.mxu0 0.0
    %573 = vmatprep.subr.mxu0 0.0
    %574 = vmatpush2.msra.mxu0 0.0
    %575 = vmatprep.subr.mxu0 0.0
    %576 = vmatpush2.msra.mxu0 0.0
    %577 = vmatprep.subr.mxu0 0.0
    %578 = vmatpush2.msra.mxu0 0.0
    %579 = vmatprep.subr.mxu0 0.0
    %580 = vmatpush2.msra.mxu0 0.0
    %581 = vmatprep.subr.mxu0 0.0
    %582 = vmatpush2.msra.mxu0 0.0
    %583 = vmatprep.subr.mxu0 0.0
    %584 = vmatpush2.msra.mxu0 0.0
    %585 = vmatprep.subr.mxu0 0.0
    %586 = vmatpush2.msra.mxu0 0.0
    %587 = vmatprep.subr.mxu0 0.0
    %588 = vmatpush2.msra.mxu0 0.0
    %589 = vmatprep.subr.mxu0 0.0
    %590 = vmatpush2.msra.mxu0 0.0
    %591 = vmatprep.mubr.f32.mxu0 0.0
    %592 = vmatmul.mubr.f32.gmra.mxu0 %v522
    %v593 = vpop.f32.mrf.mxu0
    %v594 = vadd.f32 0.0, %v593
    %v595 = vpop.f32.mrf.mxu0
    %596 = vmatprep.mubr.f32.mxu0 0.0
    %597 = vmatmul.mubr.f32.gmra.mxu0 %v523
    %v598 = vpop.f32.mrf.mxu0
    %v599 = vadd.f32 0.0, %v598
    %v600 = vpop.f32.mrf.mxu0
    %601 = vdwg.mxu0
    %v602 = vld [vmem:[#allocation2 + $0x20] sm:$0xff]
    %v603 = vld [vmem:[#allocation2 + $0x28] sm:$0xff]
    %v604 = vadd.f32 %v602, %v594
    %v605 = vadd.f32 %v603, %v599
    %v606 = vld [vmem:[#allocation3 + $0x2] sm:$0x1]
    %v607 = vlaneseq
    %v608 = vshrl.u32 %v607, 7
    %v609 = vsub.s32 0, %v608
    %v610 = vrot.slane %v606, %v609
    %v611 = vmul.f32 %v516, %v610
    %v612 = vmul.f32 %v517, %v610
    %v613 = vadd.f32 %v508, %v611
    %v614 = vadd.f32 %v509, %v612
    %v615 = vsub.f32 %v508, 0.3
    %v616 = vsub.f32 %v509, 0.3
    %v617 = vmul.f32 %v615, 0.02
    %v618 = vmul.f32 %v616, 0.02
    %v619 = vsub.f32 %v613, %v617
    %v620 = vsub.f32 %v614, %v618
    %v621 = vmul.f32 %v516, 0.5
    %v622 = vmul.f32 %v517, 0.5
    %v623 = vsub.f32 1.0, %v522
    %v624 = vsub.f32 1.0, %v523
    %v625 = vmul.f32 %v621, %v623
    %v626 = vmul.f32 %v622, %v624
    %v627 = vadd.f32 %v625, %v604
    %v628 = vadd.f32 %v626, %v605
    %vm629 = vcmp.gt.f32.partialorder %v627, %v619
    %vm630 = vcmp.gt.f32.partialorder %v628, %v620
    %v631 = vsel %vm629, 1, 0
    %v632 = vsel %vm630, 1, 0
    %v633 = vcvt.s32.f32 %v631
    %v634 = vcvt.s32.f32 %v632
    %s635 = scalar_lea.vmem [#allocation6], 32
    %636 = vst [vmem:[%s635] sm:$0xff] %v633
    %637 = vst [vmem:[%s635 + $0x8] sm:$0xff] %v634
    %638 = vmatprep.subr.mxu0 0.0
    %639 = vmatpush1.msra.mxu0 %v299
    %640 = vmatprep.subr.mxu0 0.0
    %641 = vmatpush1.msra.mxu0 %v298
    %642 = vmatprep.subr.mxu0 0.0
    %643 = vmatpush1.msra.mxu0 %v297
    %644 = vmatprep.subr.mxu0 0.0
    %645 = vmatpush1.msra.mxu0 %v296
    %646 = vmatprep.subr.mxu0 0.0
    %647 = vmatpush1.msra.mxu0 %v295
    %648 = vmatprep.subr.mxu0 0.0
    %649 = vmatpush1.msra.mxu0 %v294
    %650 = vmatprep.subr.mxu0 0.0
    %651 = vmatpush1.msra.mxu0 %v293
    %652 = vmatprep.subr.mxu0 0.0
    %653 = vmatpush1.msra.mxu0 %v292
    %654 = vmatprep.subr.mxu0 0.0
    %655 = vmatpush1.msra.mxu0 %v291
    %656 = vmatprep.subr.mxu0 0.0
    %657 = vmatpush1.msra.mxu0 %v290
    %658 = vmatprep.subr.mxu0 0.0
    %659 = vmatpush1.msra.mxu0 %v289
    %660 = vmatprep.subr.mxu0 0.0
    %661 = vmatpush1.msra.mxu0 %v288
    %662 = vmatprep.subr.mxu0 0.0
    %663 = vmatpush1.msra.mxu0 %v287
    %664 = vmatprep.subr.mxu0 0.0
    %665 = vmatpush1.msra.mxu0 %v286
    %666 = vmatprep.subr.mxu0 0.0
    %667 = vmatpush1.msra.mxu0 %v285
    %668 = vmatprep.subr.mxu0 0.0
    %669 = vmatpush1.msra.mxu0 %v284
    %670 = vmatprep.subr.mxu0 0.0
    %671 = vmatpush2.msra.mxu0 0.0
    %672 = vmatprep.subr.mxu0 0.0
    %673 = vmatpush2.msra.mxu0 0.0
    %674 = vmatprep.subr.mxu0 0.0
    %675 = vmatpush2.msra.mxu0 0.0
    %676 = vmatprep.subr.mxu0 0.0
    %677 = vmatpush2.msra.mxu0 0.0
    %678 = vmatprep.subr.mxu0 0.0
    %679 = vmatpush2.msra.mxu0 0.0
    %680 = vmatprep.subr.mxu0 0.0
    %681 = vmatpush2.msra.mxu0 0.0
    %682 = vmatprep.subr.mxu0 0.0
    %683 = vmatpush2.msra.mxu0 0.0
    %684 = vmatprep.subr.mxu0 0.0
    %685 = vmatpush2.msra.mxu0 0.0
    %686 = vmatprep.subr.mxu0 0.0
    %687 = vmatpush2.msra.mxu0 0.0
    %688 = vmatprep.subr.mxu0 0.0
    %689 = vmatpush2.msra.mxu0 0.0
    %690 = vmatprep.subr.mxu0 0.0
    %691 = vmatpush2.msra.mxu0 0.0
    %692 = vmatprep.subr.mxu0 0.0
    %693 = vmatpush2.msra.mxu0 0.0
    %694 = vmatprep.subr.mxu0 0.0
    %695 = vmatpush2.msra.mxu0 0.0
    %696 = vmatprep.subr.mxu0 0.0
    %697 = vmatpush2.msra.mxu0 0.0
    %698 = vmatprep.subr.mxu0 0.0
    %699 = vmatpush2.msra.mxu0 0.0
    %700 = vmatprep.subr.mxu0 0.0
    %701 = vmatpush2.msra.mxu0 0.0
    %702 = vmatprep.mubr.f32.mxu0 0.0
    %703 = vmatmul.mubr.f32.gmra.mxu0 %v633
    %v704 = vpop.f32.mrf.mxu0
    %v705 = vadd.f32 0.0, %v704
    %v706 = vpop.f32.mrf.mxu0
    %707 = vmatprep.mubr.f32.mxu0 0.0
    %708 = vmatmul.mubr.f32.gmra.mxu0 %v634
    %v709 = vpop.f32.mrf.mxu0
    %v710 = vadd.f32 0.0, %v709
    %v711 = vpop.f32.mrf.mxu0
    %712 = vdwg.mxu0
    %v713 = vld [vmem:[#allocation2 + $0x30] sm:$0xff]
    %v714 = vld [vmem:[#allocation2 + $0x38] sm:$0xff]
    %v715 = vadd.f32 %v713, %v705
    %v716 = vadd.f32 %v714, %v710
    %v717 = vld [vmem:[#allocation3 + $0x3] sm:$0x1]
    %v718 = vlaneseq
    %v719 = vshrl.u32 %v718, 7
    %v720 = vsub.s32 0, %v719
    %v721 = vrot.slane %v717, %v720
    %v722 = vmul.f32 %v627, %v721
    %v723 = vmul.f32 %v628, %v721
    %v724 = vadd.f32 %v619, %v722
    %v725 = vadd.f32 %v620, %v723
    %v726 = vsub.f32 %v619, 0.3
    %v727 = vsub.f32 %v620, 0.3
    %v728 = vmul.f32 %v726, 0.02
    %v729 = vmul.f32 %v727, 0.02
    %v730 = vsub.f32 %v724, %v728
    %v731 = vsub.f32 %v725, %v729
    %v732 = vmul.f32 %v627, 0.5
    %v733 = vmul.f32 %v628, 0.5
    %v734 = vsub.f32 1.0, %v633
    %v735 = vsub.f32 1.0, %v634
    %v736 = vmul.f32 %v732, %v734
    %v737 = vmul.f32 %v733, %v735
    %v738 = vadd.f32 %v736, %v715
    %v739 = vadd.f32 %v737, %v716
    %vm740 = vcmp.gt.f32.partialorder %v738, %v730
    %vm741 = vcmp.gt.f32.partialorder %v739, %v731
    %v742 = vsel %vm740, 1, 0
    %v743 = vsel %vm741, 1, 0
    %v744 = vcvt.s32.f32 %v742
    %v745 = vcvt.s32.f32 %v743
    %s746 = scalar_lea.vmem [#allocation6], 48
    %747 = vst [vmem:[%s746] sm:$0xff] %v744
    %748 = vst [vmem:[%s746 + $0x8] sm:$0xff] %v745
    %749 = vmatprep.subr.mxu0 0.0
    %750 = vmatpush1.msra.mxu0 %v299
    %751 = vmatprep.subr.mxu0 0.0
    %752 = vmatpush1.msra.mxu0 %v298
    %753 = vmatprep.subr.mxu0 0.0
    %754 = vmatpush1.msra.mxu0 %v297
    %755 = vmatprep.subr.mxu0 0.0
    %756 = vmatpush1.msra.mxu0 %v296
    %757 = vmatprep.subr.mxu0 0.0
    %758 = vmatpush1.msra.mxu0 %v295
    %759 = vmatprep.subr.mxu0 0.0
    %760 = vmatpush1.msra.mxu0 %v294
    %761 = vmatprep.subr.mxu0 0.0
    %762 = vmatpush1.msra.mxu0 %v293
    %763 = vmatprep.subr.mxu0 0.0
    %764 = vmatpush1.msra.mxu0 %v292
    %765 = vmatprep.subr.mxu0 0.0
    %766 = vmatpush1.msra.mxu0 %v291
    %767 = vmatprep.subr.mxu0 0.0
    %768 = vmatpush1.msra.mxu0 %v290
    %769 = vmatprep.subr.mxu0 0.0
    %770 = vmatpush1.msra.mxu0 %v289
    %771 = vmatprep.subr.mxu0 0.0
    %772 = vmatpush1.msra.mxu0 %v288
    %773 = vmatprep.subr.mxu0 0.0
    %774 = vmatpush1.msra.mxu0 %v287
    %775 = vmatprep.subr.mxu0 0.0
    %776 = vmatpush1.msra.mxu0 %v286
    %777 = vmatprep.subr.mxu0 0.0
    %778 = vmatpush1.msra.mxu0 %v285
    %779 = vmatprep.subr.mxu0 0.0
    %780 = vmatpush1.msra.mxu0 %v284
    %781 = vmatprep.subr.mxu0 0.0
    %782 = vmatpush2.msra.mxu0 0.0
    %783 = vmatprep.subr.mxu0 0.0
    %784 = vmatpush2.msra.mxu0 0.0
    %785 = vmatprep.subr.mxu0 0.0
    %786 = vmatpush2.msra.mxu0 0.0
    %787 = vmatprep.subr.mxu0 0.0
    %788 = vmatpush2.msra.mxu0 0.0
    %789 = vmatprep.subr.mxu0 0.0
    %790 = vmatpush2.msra.mxu0 0.0
    %791 = vmatprep.subr.mxu0 0.0
    %792 = vmatpush2.msra.mxu0 0.0
    %793 = vmatprep.subr.mxu0 0.0
    %794 = vmatpush2.msra.mxu0 0.0
    %795 = vmatprep.subr.mxu0 0.0
    %796 = vmatpush2.msra.mxu0 0.0
    %797 = vmatprep.subr.mxu0 0.0
    %798 = vmatpush2.msra.mxu0 0.0
    %799 = vmatprep.subr.mxu0 0.0
    %800 = vmatpush2.msra.mxu0 0.0
    %801 = vmatprep.subr.mxu0 0.0
    %802 = vmatpush2.msra.mxu0 0.0
    %803 = vmatprep.subr.mxu0 0.0
    %804 = vmatpush2.msra.mxu0 0.0
    %805 = vmatprep.subr.mxu0 0.0
    %806 = vmatpush2.msra.mxu0 0.0
    %807 = vmatprep.subr.mxu0 0.0
    %808 = vmatpush2.msra.mxu0 0.0
    %809 = vmatprep.subr.mxu0 0.0
    %810 = vmatpush2.msra.mxu0 0.0
    %811 = vmatprep.subr.mxu0 0.0
    %812 = vmatpush2.msra.mxu0 0.0
    %813 = vmatprep.mubr.f32.mxu0 0.0
    %814 = vmatmul.mubr.f32.gmra.mxu0 %v744
    %v815 = vpop.f32.mrf.mxu0
    %v816 = vadd.f32 0.0, %v815
    %v817 = vpop.f32.mrf.mxu0
    %818 = vmatprep.mubr.f32.mxu0 0.0
    %819 = vmatmul.mubr.f32.gmra.mxu0 %v745
    %v820 = vpop.f32.mrf.mxu0
    %v821 = vadd.f32 0.0, %v820
    %v822 = vpop.f32.mrf.mxu0
    %823 = vdwg.mxu0
    %v824 = vld [vmem:[#allocation2 + $0x40] sm:$0xff]
    %v825 = vld [vmem:[#allocation2 + $0x48] sm:$0xff]
    %v826 = vadd.f32 %v824, %v816
    %v827 = vadd.f32 %v825, %v821
    %v828 = vld [vmem:[#allocation3 + $0x4] sm:$0x1]
    %v829 = vlaneseq
    %v830 = vshrl.u32 %v829, 7
    %v831 = vsub.s32 0, %v830
    %v832 = vrot.slane %v828, %v831
    %v833 = vmul.f32 %v738, %v832
    %v834 = vmul.f32 %v739, %v832
    %v835 = vadd.f32 %v730, %v833
    %v836 = vadd.f32 %v731, %v834
    %v837 = vsub.f32 %v730, 0.3
    %v838 = vsub.f32 %v731, 0.3
    %v839 = vmul.f32 %v837, 0.02
    %v840 = vmul.f32 %v838, 0.02
    %v841 = vsub.f32 %v835, %v839
    %v842 = vsub.f32 %v836, %v840
    %v843 = vmul.f32 %v738, 0.5
    %v844 = vmul.f32 %v739, 0.5
    %v845 = vsub.f32 1.0, %v744
    %v846 = vsub.f32 1.0, %v745
    %v847 = vmul.f32 %v843, %v845
    %v848 = vmul.f32 %v844, %v846
    %v849 = vadd.f32 %v847, %v826
    %v850 = vadd.f32 %v848, %v827
    %vm851 = vcmp.gt.f32.partialorder %v849, %v841
    %vm852 = vcmp.gt.f32.partialorder %v850, %v842
    %v853 = vsel %vm851, 1, 0
    %v854 = vsel %vm852, 1, 0
    %v855 = vcvt.s32.f32 %v853
    %v856 = vcvt.s32.f32 %v854
    %s857 = scalar_lea.vmem [#allocation6], 64
    %858 = vst [vmem:[%s857] sm:$0xff] %v855
    %859 = vst [vmem:[%s857 + $0x8] sm:$0xff] %v856
    %860 = vmatprep.subr.mxu0 0.0
    %861 = vmatpush1.msra.mxu0 %v299
    %862 = vmatprep.subr.mxu0 0.0
    %863 = vmatpush1.msra.mxu0 %v298
    %864 = vmatprep.subr.mxu0 0.0
    %865 = vmatpush1.msra.mxu0 %v297
    %866 = vmatprep.subr.mxu0 0.0
    %867 = vmatpush1.msra.mxu0 %v296
    %868 = vmatprep.subr.mxu0 0.0
    %869 = vmatpush1.msra.mxu0 %v295
    %870 = vmatprep.subr.mxu0 0.0
    %871 = vmatpush1.msra.mxu0 %v294
    %872 = vmatprep.subr.mxu0 0.0
    %873 = vmatpush1.msra.mxu0 %v293
    %874 = vmatprep.subr.mxu0 0.0
    %875 = vmatpush1.msra.mxu0 %v292
    %876 = vmatprep.subr.mxu0 0.0
    %877 = vmatpush1.msra.mxu0 %v291
    %878 = vmatprep.subr.mxu0 0.0
    %879 = vmatpush1.msra.mxu0 %v290
    %880 = vmatprep.subr.mxu0 0.0
    %881 = vmatpush1.msra.mxu0 %v289
    %882 = vmatprep.subr.mxu0 0.0
    %883 = vmatpush1.msra.mxu0 %v288
    %884 = vmatprep.subr.mxu0 0.0
    %885 = vmatpush1.msra.mxu0 %v287
    %886 = vmatprep.subr.mxu0 0.0
    %887 = vmatpush1.msra.mxu0 %v286
    %888 = vmatprep.subr.mxu0 0.0
    %889 = vmatpush1.msra.mxu0 %v285
    %890 = vmatprep.subr.mxu0 0.0
    %891 = vmatpush1.msra.mxu0 %v284
    %892 = vmatprep.subr.mxu0 0.0
    %893 = vmatpush2.msra.mxu0 0.0
    %894 = vmatprep.subr.mxu0 0.0
    %895 = vmatpush2.msra.mxu0 0.0
    %896 = vmatprep.subr.mxu0 0.0
    %897 = vmatpush2.msra.mxu0 0.0
    %898 = vmatprep.subr.mxu0 0.0
    %899 = vmatpush2.msra.mxu0 0.0
    %900 = vmatprep.subr.mxu0 0.0
    %901 = vmatpush2.msra.mxu0 0.0
    %902 = vmatprep.subr.mxu0 0.0
    %903 = vmatpush2.msra.mxu0 0.0
    %904 = vmatprep.subr.mxu0 0.0
    %905 = vmatpush2.msra.mxu0 0.0
    %906 = vmatprep.subr.mxu0 0.0
    %907 = vmatpush2.msra.mxu0 0.0
    %908 = vmatprep.subr.mxu0 0.0
    %909 = vmatpush2.msra.mxu0 0.0
    %910 = vmatprep.subr.mxu0 0.0
    %911 = vmatpush2.msra.mxu0 0.0
    %912 = vmatprep.subr.mxu0 0.0
    %913 = vmatpush2.msra.mxu0 0.0
    %914 = vmatprep.subr.mxu0 0.0
    %915 = vmatpush2.msra.mxu0 0.0
    %916 = vmatprep.subr.mxu0 0.0
    %917 = vmatpush2.msra.mxu0 0.0
    %918 = vmatprep.subr.mxu0 0.0
    %919 = vmatpush2.msra.mxu0 0.0
    %920 = vmatprep.subr.mxu0 0.0
    %921 = vmatpush2.msra.mxu0 0.0
    %922 = vmatprep.subr.mxu0 0.0
    %923 = vmatpush2.msra.mxu0 0.0
    %924 = vmatprep.mubr.f32.mxu0 0.0
    %925 = vmatmul.mubr.f32.gmra.mxu0 %v855
    %v926 = vpop.f32.mrf.mxu0
    %v927 = vadd.f32 0.0, %v926
    %v928 = vpop.f32.mrf.mxu0
    %929 = vmatprep.mubr.f32.mxu0 0.0
    %930 = vmatmul.mubr.f32.gmra.mxu0 %v856
    %v931 = vpop.f32.mrf.mxu0
    %v932 = vadd.f32 0.0, %v931
    %v933 = vpop.f32.mrf.mxu0
    %934 = vdwg.mxu0
    %v935 = vld [vmem:[#allocation2 + $0x50] sm:$0xff]
    %v936 = vld [vmem:[#allocation2 + $0x58] sm:$0xff]
    %v937 = vadd.f32 %v935, %v927
    %v938 = vadd.f32 %v936, %v932
    %v939 = vld [vmem:[#allocation3 + $0x5] sm:$0x1]
    %v940 = vlaneseq
    %v941 = vshrl.u32 %v940, 7
    %v942 = vsub.s32 0, %v941
    %v943 = vrot.slane %v939, %v942
    %v944 = vmul.f32 %v849, %v943
    %v945 = vmul.f32 %v850, %v943
    %v946 = vadd.f32 %v841, %v944
    %v947 = vadd.f32 %v842, %v945
    %v948 = vsub.f32 %v841, 0.3
    %v949 = vsub.f32 %v842, 0.3
    %v950 = vmul.f32 %v948, 0.02
    %v951 = vmul.f32 %v949, 0.02
    %v952 = vsub.f32 %v946, %v950
    %v953 = vsub.f32 %v947, %v951
    %v954 = vmul.f32 %v849, 0.5
    %v955 = vmul.f32 %v850, 0.5
    %v956 = vsub.f32 1.0, %v855
    %v957 = vsub.f32 1.0, %v856
    %v958 = vmul.f32 %v954, %v956
    %v959 = vmul.f32 %v955, %v957
    %v960 = vadd.f32 %v958, %v937
    %v961 = vadd.f32 %v959, %v938
    %vm962 = vcmp.gt.f32.partialorder %v960, %v952
    %vm963 = vcmp.gt.f32.partialorder %v961, %v953
    %v964 = vsel %vm962, 1, 0
    %v965 = vsel %vm963, 1, 0
    %v966 = vcvt.s32.f32 %v964
    %v967 = vcvt.s32.f32 %v965
    %s968 = scalar_lea.vmem [#allocation6], 80
    %969 = vst [vmem:[%s968] sm:$0xff] %v966
    %970 = vst [vmem:[%s968 + $0x8] sm:$0xff] %v967
    %971 = vmatprep.subr.mxu0 0.0
    %972 = vmatpush1.msra.mxu0 %v299
    %973 = vmatprep.subr.mxu0 0.0
    %974 = vmatpush1.msra.mxu0 %v298
    %975 = vmatprep.subr.mxu0 0.0
    %976 = vmatpush1.msra.mxu0 %v297
    %977 = vmatprep.subr.mxu0 0.0
    %978 = vmatpush1.msra.mxu0 %v296
    %979 = vmatprep.subr.mxu0 0.0
    %980 = vmatpush1.msra.mxu0 %v295
    %981 = vmatprep.subr.mxu0 0.0
    %982 = vmatpush1.msra.mxu0 %v294
    %983 = vmatprep.subr.mxu0 0.0
    %984 = vmatpush1.msra.mxu0 %v293
    %985 = vmatprep.subr.mxu0 0.0
    %986 = vmatpush1.msra.mxu0 %v292
    %987 = vmatprep.subr.mxu0 0.0
    %988 = vmatpush1.msra.mxu0 %v291
    %989 = vmatprep.subr.mxu0 0.0
    %990 = vmatpush1.msra.mxu0 %v290
    %991 = vmatprep.subr.mxu0 0.0
    %992 = vmatpush1.msra.mxu0 %v289
    %993 = vmatprep.subr.mxu0 0.0
    %994 = vmatpush1.msra.mxu0 %v288
    %995 = vmatprep.subr.mxu0 0.0
    %996 = vmatpush1.msra.mxu0 %v287
    %997 = vmatprep.subr.mxu0 0.0
    %998 = vmatpush1.msra.mxu0 %v286
    %999 = vmatprep.subr.mxu0 0.0
    %1000 = vmatpush1.msra.mxu0 %v285
    %1001 = vmatprep.subr.mxu0 0.0
    %1002 = vmatpush1.msra.mxu0 %v284
    %1003 = vmatprep.subr.mxu0 0.0
    %1004 = vmatpush2.msra.mxu0 0.0
    %1005 = vmatprep.subr.mxu0 0.0
    %1006 = vmatpush2.msra.mxu0 0.0
    %1007 = vmatprep.subr.mxu0 0.0
    %1008 = vmatpush2.msra.mxu0 0.0
    %1009 = vmatprep.subr.mxu0 0.0
    %1010 = vmatpush2.msra.mxu0 0.0
    %1011 = vmatprep.subr.mxu0 0.0
    %1012 = vmatpush2.msra.mxu0 0.0
    %1013 = vmatprep.subr.mxu0 0.0
    %1014 = vmatpush2.msra.mxu0 0.0
    %1015 = vmatprep.subr.mxu0 0.0
    %1016 = vmatpush2.msra.mxu0 0.0
    %1017 = vmatprep.subr.mxu0 0.0
    %1018 = vmatpush2.msra.mxu0 0.0
    %1019 = vmatprep.subr.mxu0 0.0
    %1020 = vmatpush2.msra.mxu0 0.0
    %1021 = vmatprep.subr.mxu0 0.0
    %1022 = vmatpush2.msra.mxu0 0.0
    %1023 = vmatprep.subr.mxu0 0.0
    %1024 = vmatpush2.msra.mxu0 0.0
    %1025 = vmatprep.subr.mxu0 0.0
    %1026 = vmatpush2.msra.mxu0 0.0
    %1027 = vmatprep.subr.mxu0 0.0
    %1028 = vmatpush2.msra.mxu0 0.0
    %1029 = vmatprep.subr.mxu0 0.0
    %1030 = vmatpush2.msra.mxu0 0.0
    %1031 = vmatprep.subr.mxu0 0.0
    %1032 = vmatpush2.msra.mxu0 0.0
    %1033 = vmatprep.subr.mxu0 0.0
    %1034 = vmatpush2.msra.mxu0 0.0
    %1035 = vmatprep.mubr.f32.mxu0 0.0
    %1036 = vmatmul.mubr.f32.gmra.mxu0 %v966
    %v1037 = vpop.f32.mrf.mxu0
    %v1038 = vadd.f32 0.0, %v1037
    %v1039 = vpop.f32.mrf.mxu0
    %1040 = vmatprep.mubr.f32.mxu0 0.0
    %1041 = vmatmul.mubr.f32.gmra.mxu0 %v967
    %v1042 = vpop.f32.mrf.mxu0
    %v1043 = vadd.f32 0.0, %v1042
    %v1044 = vpop.f32.mrf.mxu0
    %1045 = vdwg.mxu0
    %v1046 = vld [vmem:[#allocation2 + $0x60] sm:$0xff]
    %v1047 = vld [vmem:[#allocation2 + $0x68] sm:$0xff]
    %v1048 = vadd.f32 %v1046, %v1038
    %v1049 = vadd.f32 %v1047, %v1043
    %v1050 = vld [vmem:[#allocation3 + $0x6] sm:$0x1]
    %v1051 = vlaneseq
    %v1052 = vshrl.u32 %v1051, 7
    %v1053 = vsub.s32 0, %v1052
    %v1054 = vrot.slane %v1050, %v1053
    %v1055 = vmul.f32 %v960, %v1054
    %v1056 = vmul.f32 %v961, %v1054
    %v1057 = vadd.f32 %v952, %v1055
    %v1058 = vadd.f32 %v953, %v1056
    %v1059 = vsub.f32 %v952, 0.3
    %v1060 = vsub.f32 %v953, 0.3
    %v1061 = vmul.f32 %v1059, 0.02
    %v1062 = vmul.f32 %v1060, 0.02
    %v1063 = vsub.f32 %v1057, %v1061
    %v1064 = vsub.f32 %v1058, %v1062
    %v1065 = vmul.f32 %v960, 0.5
    %v1066 = vmul.f32 %v961, 0.5
    %v1067 = vsub.f32 1.0, %v966
    %v1068 = vsub.f32 1.0, %v967
    %v1069 = vmul.f32 %v1065, %v1067
    %v1070 = vmul.f32 %v1066, %v1068
    %v1071 = vadd.f32 %v1069, %v1048
    %v1072 = vadd.f32 %v1070, %v1049
    %vm1073 = vcmp.gt.f32.partialorder %v1071, %v1063
    %vm1074 = vcmp.gt.f32.partialorder %v1072, %v1064
    %v1075 = vsel %vm1073, 1, 0
    %v1076 = vsel %vm1074, 1, 0
    %v1077 = vcvt.s32.f32 %v1075
    %v1078 = vcvt.s32.f32 %v1076
    %s1079 = scalar_lea.vmem [#allocation6], 96
    %1080 = vst [vmem:[%s1079] sm:$0xff] %v1077
    %1081 = vst [vmem:[%s1079 + $0x8] sm:$0xff] %v1078
    %1082 = vmatprep.subr.mxu0 0.0
    %1083 = vmatpush1.msra.mxu0 %v299
    %1084 = vmatprep.subr.mxu0 0.0
    %1085 = vmatpush1.msra.mxu0 %v298
    %1086 = vmatprep.subr.mxu0 0.0
    %1087 = vmatpush1.msra.mxu0 %v297
    %1088 = vmatprep.subr.mxu0 0.0
    %1089 = vmatpush1.msra.mxu0 %v296
    %1090 = vmatprep.subr.mxu0 0.0
    %1091 = vmatpush1.msra.mxu0 %v295
    %1092 = vmatprep.subr.mxu0 0.0
    %1093 = vmatpush1.msra.mxu0 %v294
    %1094 = vmatprep.subr.mxu0 0.0
    %1095 = vmatpush1.msra.mxu0 %v293
    %1096 = vmatprep.subr.mxu0 0.0
    %1097 = vmatpush1.msra.mxu0 %v292
    %1098 = vmatprep.subr.mxu0 0.0
    %1099 = vmatpush1.msra.mxu0 %v291
    %1100 = vmatprep.subr.mxu0 0.0
    %1101 = vmatpush1.msra.mxu0 %v290
    %1102 = vmatprep.subr.mxu0 0.0
    %1103 = vmatpush1.msra.mxu0 %v289
    %1104 = vmatprep.subr.mxu0 0.0
    %1105 = vmatpush1.msra.mxu0 %v288
    %1106 = vmatprep.subr.mxu0 0.0
    %1107 = vmatpush1.msra.mxu0 %v287
    %1108 = vmatprep.subr.mxu0 0.0
    %1109 = vmatpush1.msra.mxu0 %v286
    %1110 = vmatprep.subr.mxu0 0.0
    %1111 = vmatpush1.msra.mxu0 %v285
    %1112 = vmatprep.subr.mxu0 0.0
    %1113 = vmatpush1.msra.mxu0 %v284
    %1114 = vmatprep.subr.mxu0 0.0
    %1115 = vmatpush2.msra.mxu0 0.0
    %1116 = vmatprep.subr.mxu0 0.0
    %1117 = vmatpush2.msra.mxu0 0.0
    %1118 = vmatprep.subr.mxu0 0.0
    %1119 = vmatpush2.msra.mxu0 0.0
    %1120 = vmatprep.subr.mxu0 0.0
    %1121 = vmatpush2.msra.mxu0 0.0
    %1122 = vmatprep.subr.mxu0 0.0
    %1123 = vmatpush2.msra.mxu0 0.0
    %1124 = vmatprep.subr.mxu0 0.0
    %1125 = vmatpush2.msra.mxu0 0.0
    %1126 = vmatprep.subr.mxu0 0.0
    %1127 = vmatpush2.msra.mxu0 0.0
    %1128 = vmatprep.subr.mxu0 0.0
    %1129 = vmatpush2.msra.mxu0 0.0
    %1130 = vmatprep.subr.mxu0 0.0
    %1131 = vmatpush2.msra.mxu0 0.0
    %1132 = vmatprep.subr.mxu0 0.0
    %1133 = vmatpush2.msra.mxu0 0.0
    %1134 = vmatprep.subr.mxu0 0.0
    %1135 = vmatpush2.msra.mxu0 0.0
    %1136 = vmatprep.subr.mxu0 0.0
    %1137 = vmatpush2.msra.mxu0 0.0
    %1138 = vmatprep.subr.mxu0 0.0
    %1139 = vmatpush2.msra.mxu0 0.0
    %1140 = vmatprep.subr.mxu0 0.0
    %1141 = vmatpush2.msra.mxu0 0.0
    %1142 = vmatprep.subr.mxu0 0.0
    %1143 = vmatpush2.msra.mxu0 0.0
    %1144 = vmatprep.subr.mxu0 0.0
    %1145 = vmatpush2.msra.mxu0 0.0
    %1146 = vmatprep.mubr.f32.mxu0 0.0
    %1147 = vmatmul.mubr.f32.gmra.mxu0 %v1077
    %v1148 = vpop.f32.mrf.mxu0
    %v1149 = vadd.f32 0.0, %v1148
    %v1150 = vpop.f32.mrf.mxu0
    %1151 = vmatprep.mubr.f32.mxu0 0.0
    %1152 = vmatmul.mubr.f32.gmra.mxu0 %v1078
    %v1153 = vpop.f32.mrf.mxu0
    %v1154 = vadd.f32 0.0, %v1153
    %v1155 = vpop.f32.mrf.mxu0
    %1156 = vdwg.mxu0
    %v1157 = vld [vmem:[#allocation2 + $0x70] sm:$0xff]
    %v1158 = vld [vmem:[#allocation2 + $0x78] sm:$0xff]
    %v1159 = vadd.f32 %v1157, %v1149
    %v1160 = vadd.f32 %v1158, %v1154
    %v1161 = vld [vmem:[#allocation3 + $0x7] sm:$0x1]
    %v1162 = vlaneseq
    %v1163 = vshrl.u32 %v1162, 7
    %v1164 = vsub.s32 0, %v1163
    %v1165 = vrot.slane %v1161, %v1164
    %v1166 = vmul.f32 %v1071, %v1165
    %v1167 = vmul.f32 %v1072, %v1165
    %v1168 = vadd.f32 %v1063, %v1166
    %v1169 = vadd.f32 %v1064, %v1167
    %v1170 = vsub.f32 %v1063, 0.3
    %v1171 = vsub.f32 %v1064, 0.3
    %v1172 = vmul.f32 %v1170, 0.02
    %v1173 = vmul.f32 %v1171, 0.02
    %v1174 = vsub.f32 %v1168, %v1172
    %v1175 = vsub.f32 %v1169, %v1173
    %v1176 = vmul.f32 %v1071, 0.5
    %v1177 = vmul.f32 %v1072, 0.5
    %v1178 = vsub.f32 1.0, %v1077
    %v1179 = vsub.f32 1.0, %v1078
    %v1180 = vmul.f32 %v1176, %v1178
    %v1181 = vmul.f32 %v1177, %v1179
    %v1182 = vadd.f32 %v1180, %v1159
    %v1183 = vadd.f32 %v1181, %v1160
    %vm1184 = vcmp.gt.f32.partialorder %v1182, %v1174
    %vm1185 = vcmp.gt.f32.partialorder %v1183, %v1175
    %v1186 = vsel %vm1184, 1, 0
    %v1187 = vsel %vm1185, 1, 0
    %v1188 = vcvt.s32.f32 %v1186
    %v1189 = vcvt.s32.f32 %v1187
    %s1190 = scalar_lea.vmem [#allocation6], 112
    %1191 = vst [vmem:[%s1190] sm:$0xff] %v1188
    %1192 = vst [vmem:[%s1190 + $0x8] sm:$0xff] %v1189
    %1193 = vst [vmem:[#allocation7] sm:$0xff] %v1188
    %1194 = vst [vmem:[#allocation7 + $0x8] sm:$0xff] %v1189
    %1195 = vst [vmem:[#allocation9] sm:$0xff] %v1182
    %1196 = vst [vmem:[#allocation9 + $0x8] sm:$0xff] %v1183
    %1197 = vst [vmem:[#allocation10] sm:$0xff] %v1174
    %1198 = vst [vmem:[#allocation10 + $0x8] sm:$0xff] %v1175
    // Predicated region
    $region30: #{tpu_custom_call.1} parent=1 // pred_check
      _
    $region31: #{tpu_custom_call.1} parent=1 // pred_check_branch
      %1200 = sbr.rel (0) target = $region33
    $region32: #{tpu_custom_call.1} parent=1 // pred_region
      %s1202 = ssub.s32 2048, 2048
      %1203 = vsyncadd [#allocation5], %s1202
      %s1204 = sshll.u32 [#allocation6], 4
      %s1205 = int_to_ptr.vmem [resolvable:$true] %s1204
      %1210 = dma.vmem_to_hbm [thread:$0]  %s1205, 2048, %s5, [#allocation5], 128, 128, 8
    $region33: #{tpu_custom_call.1} parent=1 // pred_fallthru
      _
    // Predicated region
    $region34: #{tpu_custom_call.1} parent=1 // pred_check
      _
    $region35: #{tpu_custom_call.1} parent=1 // pred_check_branch
      %1212 = sbr.rel (0) target = $region37
    $region36: #{tpu_custom_call.1} parent=1 // pred_region
      %s1214 = ssub.s32 256, 256
      %1215 = vsyncadd [#allocation8], %s1214
      %s1216 = sshll.u32 [#allocation7], 4
      %s1217 = int_to_ptr.vmem [resolvable:$true] %s1216
      %1222 = dma.vmem_to_hbm [thread:$0]  %s1217, 256, %s6, [#allocation8], 128, 128, 8
    $region37: #{tpu_custom_call.1} parent=1 // pred_fallthru
      _
    // Predicated region
    $region38: #{tpu_custom_call.1} parent=1 // pred_check
      _
    $region39: #{tpu_custom_call.1} parent=1 // pred_check_branch
      %1224 = sbr.rel (0) target = $region41
    $region40: #{tpu_custom_call.1} parent=1 // pred_region
      %s1226 = ssub.s32 256, 256
      %1227 = vsyncadd [#allocation8], %s1226
      %s1228 = sshll.u32 [#allocation9], 4
      %s1229 = int_to_ptr.vmem [resolvable:$true] %s1228
      %1234 = dma.vmem_to_hbm [thread:$0]  %s1229, 256, %s7, [#allocation8], 128, 128, 8
    $region41: #{tpu_custom_call.1} parent=1 // pred_fallthru
      _
    // Predicated region
    $region42: #{tpu_custom_call.1} parent=1 // pred_check
      _
    $region43: #{tpu_custom_call.1} parent=1 // pred_check_branch
      %1236 = sbr.rel (0) target = $region45
    $region44: #{tpu_custom_call.1} parent=1 // pred_region
      %s1238 = ssub.s32 256, 256
      %1239 = vsyncadd [#allocation11], %s1238
      %s1240 = sshll.u32 [#allocation10], 4
      %s1241 = int_to_ptr.vmem [resolvable:$true] %s1240
      %1246 = dma.vmem_to_hbm [thread:$0]  %s1241, 256, %s8, [#allocation11], 128, 128, 8
    $region45: #{tpu_custom_call.1} parent=1 // pred_fallthru
      _
    // Predicated region
    $region46: #{tpu_custom_call.1} parent=1 // pred_check
      _
    $region47: #{tpu_custom_call.1} parent=1 // pred_check_branch
      %1248 = sbr.rel (0) target = $region49
    $region48: #{tpu_custom_call.1} parent=1 // pred_region
      %1249 = dma.done [#allocation5], 2048
    $region49: #{tpu_custom_call.1} parent=1 // pred_fallthru
      _
    // Predicated region
    $region50: #{tpu_custom_call.1} parent=1 // pred_check
      _
    $region51: #{tpu_custom_call.1} parent=1 // pred_check_branch
      %1251 = sbr.rel (0) target = $region53
    $region52: #{tpu_custom_call.1} parent=1 // pred_region
      %1252 = dma.done [#allocation8], 256
    $region53: #{tpu_custom_call.1} parent=1 // pred_fallthru
      _
    // Predicated region
    $region54: #{tpu_custom_call.1} parent=1 // pred_check
      _
    $region55: #{tpu_custom_call.1} parent=1 // pred_check_branch
      %1254 = sbr.rel (0) target = $region57
    $region56: #{tpu_custom_call.1} parent=1 // pred_region
      %1255 = dma.done [#allocation8], 256
    $region57: #{tpu_custom_call.1} parent=1 // pred_fallthru
      _
    // Predicated region
    $region58: #{tpu_custom_call.1} parent=1 // pred_check
      _
    $region59: #{tpu_custom_call.1} parent=1 // pred_check_branch
      %1257 = sbr.rel (0) target = $region61
    $region60: #{tpu_custom_call.1} parent=1 // pred_region
      %1258 = dma.done [#allocation11], 256
    $region61: #{tpu_custom_call.1} parent=1 // pred_fallthru
      _
    %1259 = vsyncpa [#allocation4], 1
    %1260 = vsyncpa [#allocation5], 1
    %1261 = vsyncpa [#allocation8], 1
    %1262 = vsyncpa [#allocation11], 1

// kernel: tpu_custom_call.1
$region0: #{tpu_custom_call.1}
  #allocation0 [shape = 'u32[]', space=smem, size = 0x4, offset = 0x4, fixed_abs, tag = 'smem constant byte address 0x4 - core index']
  #allocation1 [shape = 'u32[144,128]{1,0:T(1,128)}', space=vmem, size = 0x12000, scoped, tag = 'internal scratch']
  #allocation2 [shape = 'f32[128,128]{1,0:T(8,128)}', space=vmem, size = 0x10000, scoped, tag = 'scratch operand']
  %s0 = inlined_call_operand.vmem [shape: f32[128,16], index: 0, kind: input, shape index: {}]
  %s1 = inlined_call_operand.vmem [shape: f32[16,128], index: 1, kind: input, shape index: {}]
  %s2 = inlined_call_operand.vmem [shape: f32[128,128], index: 2, kind: input, shape index: {}]
  %s3 = inlined_call_operand.vmem [shape: f32[1,128], index: 3, kind: input, shape index: {}]
  %s4 = inlined_call_operand.hbm [shape: f32[8,128], index: 4, kind: input, shape index: {}]
  %s5 = inlined_call_operand.hbm [shape: f32[8,16,128], index: 5, kind: output, shape index: {0}]
  %s6 = inlined_call_operand.hbm [shape: f32[16,128], index: 6, kind: output, shape index: {1}]
  %s7 = inlined_call_operand.hbm [shape: f32[16,128], index: 7, kind: output, shape index: {2}]
  %s8 = inlined_call_operand.hbm [shape: f32[16,128], index: 8, kind: output, shape index: {3}]
  %9 = xla_tuple %s5, %s6, %s7, %s8
  %s10 = sld [smem:[#allocation0]]
  $region62: #{tpu_custom_call.1} parent=0
    _
  %s12 = ssub.s32 1, %s10
  %s13 = scalar_select 0, %s12, %s10
  $region1: #{tpu_custom_call.1} parent=0
    #allocation3 [shape = 'u8[4096]{0}', space=vmem, size = 0x1000, scoped, tag = 'input window, operand 4, single buffered']
    #allocation4 [shape = 's32[1]{0}', space=sflag, size = 0x4, scoped, tag = 'scoped memory for tpu_custom_call.1']
    #allocation5 [shape = 's32[1]{0}', space=sflag, size = 0x4, scoped, tag = 'scoped memory for tpu_custom_call.1']
    #allocation6 [shape = 'u8[65536]{0}', space=vmem, size = 0x10000, scoped, tag = 'output window, operand 0, single buffered']
    #allocation7 [shape = 'u8[8192]{0}', space=vmem, size = 0x2000, scoped, tag = 'output window, operand 1, single buffered']
    #allocation8 [shape = 's32[1]{0}', space=sflag, size = 0x4, scoped, tag = 'scoped memory for tpu_custom_call.1']
    #allocation9 [shape = 'u8[8192]{0}', space=vmem, size = 0x2000, scoped, tag = 'output window, operand 2, single buffered']
    #allocation10 [shape = 'u8[8192]{0}', space=vmem, size = 0x2000, scoped, tag = 'output window, operand 3, single buffered']
    #allocation11 [shape = 's32[1]{0}', space=sflag, size = 0x4, scoped, tag = 'scoped memory for tpu_custom_call.1']
    %14 = vsyncpa [#allocation4], 0
    %15 = vsyncpa [#allocation5], 0
    %16 = vsyncpa [#allocation8], 0
    %17 = vsyncpa [#allocation11], 0
    // Predicated region
    $region2: #{tpu_custom_call.1} parent=1 // pred_check
      _
    $region3: #{tpu_custom_call.1} parent=1 // pred_check_branch
      %19 = sbr.rel (0) target = $region5
    $region4: #{tpu_custom_call.1} parent=1 // pred_region
      _
    $region5: #{tpu_custom_call.1} parent=1 // pred_fallthru
      _
    // Predicated region
    $region6: #{tpu_custom_call.1} parent=1 // pred_check
      _
    $region7: #{tpu_custom_call.1} parent=1 // pred_check_branch
      %21 = sbr.rel (0) target = $region9
    $region8: #{tpu_custom_call.1} parent=1 // pred_region
      _
    $region9: #{tpu_custom_call.1} parent=1 // pred_fallthru
      _
    // Predicated region
    $region10: #{tpu_custom_call.1} parent=1 // pred_check
      _
    $region11: #{tpu_custom_call.1} parent=1 // pred_check_branch
      %23 = sbr.rel (0) target = $region13
    $region12: #{tpu_custom_call.1} parent=1 // pred_region
      _
    $region13: #{tpu_custom_call.1} parent=1 // pred_fallthru
      _
    // Predicated region
    $region14: #{tpu_custom_call.1} parent=1 // pred_check
      _
    $region15: #{tpu_custom_call.1} parent=1 // pred_check_branch
      %25 = sbr.rel (0) target = $region17
    $region16: #{tpu_custom_call.1} parent=1 // pred_region
      _
    $region17: #{tpu_custom_call.1} parent=1 // pred_fallthru
      _
    // Predicated region
    $region18: #{tpu_custom_call.1} parent=1 // pred_check
      _
    $region19: #{tpu_custom_call.1} parent=1 // pred_check_branch
      %27 = sbr.rel (0) target = $region21
    $region20: #{tpu_custom_call.1} parent=1 // pred_region
      %s29 = ssub.s32 128, 128
      %30 = vsyncadd [#allocation4], %s29
      %s32 = sshll.u32 [#allocation3], 4
      %s33 = int_to_ptr.vmem [resolvable:$true] %s32
      %35 = dma.hbm_to_vmem [thread:$0]  %s4, 128, %s33, [#allocation4]
    $region21: #{tpu_custom_call.1} parent=1 // pred_fallthru
      _
    // Predicated region
    $region22: #{tpu_custom_call.1} parent=1 // pred_check
      _
    $region23: #{tpu_custom_call.1} parent=1 // pred_check_branch
      %37 = sbr.rel (0) target = $region25
    $region24: #{tpu_custom_call.1} parent=1 // pred_region
      %38 = dma.done [#allocation4], 128
    $region25: #{tpu_custom_call.1} parent=1 // pred_fallthru
      _
    %p39 = scmp.eq.s32.totalorder 0, 0
    // Predicated region
    $region26: #{tpu_custom_call.1} parent=1 // pred_check
      %p40 = pneg %p39
    $region27: #{tpu_custom_call.1} parent=1 // pred_check_branch
      %42 = sbr.rel (%p40) target = $region29
    $region28: #{tpu_custom_call.1} parent=1 // pred_region
      %43 = vst [vmem:[#allocation7] sm:$0xff] 0.0
      %44 = vst [vmem:[#allocation7 + $0x8] sm:$0xff] 0.0
      %45 = vst [vmem:[#allocation9] sm:$0xff] 0.0
      %46 = vst [vmem:[#allocation9 + $0x8] sm:$0xff] 0.0
      %47 = vst [vmem:[#allocation10] sm:$0xff] 0.3
      %48 = vst [vmem:[#allocation10 + $0x8] sm:$0xff] 0.3
    $region29: #{tpu_custom_call.1} parent=1 // pred_fallthru
      _
    %v49 = vld [vmem:[%s0] sm:$0xff]
    %v50 = vld [vmem:[%s0 + $0x8] sm:$0xff]
    %v51 = vld [vmem:[%s0 + $0x10] sm:$0xff]
    %v52 = vld [vmem:[%s0 + $0x18] sm:$0xff]
    %v53 = vld [vmem:[%s0 + $0x20] sm:$0xff]
    %v54 = vld [vmem:[%s0 + $0x28] sm:$0xff]
    %v55 = vld [vmem:[%s0 + $0x30] sm:$0xff]
    %v56 = vld [vmem:[%s0 + $0x38] sm:$0xff]
    %v57 = vld [vmem:[%s0 + $0x40] sm:$0xff]
    %v58 = vld [vmem:[%s0 + $0x48] sm:$0xff]
    %v59 = vld [vmem:[%s0 + $0x50] sm:$0xff]
    %v60 = vld [vmem:[%s0 + $0x58] sm:$0xff]
    %v61 = vld [vmem:[%s0 + $0x60] sm:$0xff]
    %v62 = vld [vmem:[%s0 + $0x68] sm:$0xff]
    %v63 = vld [vmem:[%s0 + $0x70] sm:$0xff]
    %v64 = vld [vmem:[%s0 + $0x78] sm:$0xff]
    %v65 = vld [vmem:[%s1] sm:$0xff]
    %v66 = vld [vmem:[%s1 + $0x8] sm:$0xff]
    %v67 = vld [vmem:[%s3] sm:$0x1]
    %v69 = vlaneseq
    %v70 = vshrl.u32 %v69, 7
    %v71 = vsub.s32 0, %v70
    %v72 = vrot.slane %v67, %v71
    %vm74 = vcmask 130048
    %v76 = vsel %vm74, %v49, 0
    %v79 = vsel %vm74, %v50, 0
    %v82 = vsel %vm74, %v51, 0
    %v85 = vsel %vm74, %v52, 0
    %v88 = vsel %vm74, %v53, 0
    %v91 = vsel %vm74, %v54, 0
    %v94 = vsel %vm74, %v55, 0
    %v97 = vsel %vm74, %v56, 0
    %v100 = vsel %vm74, %v57, 0
    %v103 = vsel %vm74, %v58, 0
    %v106 = vsel %vm74, %v59, 0
    %v109 = vsel %vm74, %v60, 0
    %v112 = vsel %vm74, %v61, 0
    %v115 = vsel %vm74, %v62, 0
    %v118 = vsel %vm74, %v63, 0
    %v121 = vsel %vm74, %v64, 0
    %123 = vmatprep.subr.mxu0 0.0
    %124 = vmatpush1.msra.mxu0 0.0
    %125 = vmatprep.subr.mxu0 0.0
    %126 = vmatpush1.msra.mxu0 0.0
    %127 = vmatprep.subr.mxu0 0.0
    %128 = vmatpush1.msra.mxu0 0.0
    %129 = vmatprep.subr.mxu0 0.0
    %130 = vmatpush1.msra.mxu0 0.0
    %131 = vmatprep.subr.mxu0 0.0
    %132 = vmatpush1.msra.mxu0 0.0
    %133 = vmatprep.subr.mxu0 0.0
    %134 = vmatpush1.msra.mxu0 0.0
    %135 = vmatprep.subr.mxu0 0.0
    %136 = vmatpush1.msra.mxu0 0.0
    %137 = vmatprep.subr.mxu0 0.0
    %138 = vmatpush1.msra.mxu0 0.0
    %139 = vmatprep.subr.mxu0 0.0
    %140 = vmatpush1.msra.mxu0 0.0
    %141 = vmatprep.subr.mxu0 0.0
    %142 = vmatpush1.msra.mxu0 0.0
    %143 = vmatprep.subr.mxu0 0.0
    %144 = vmatpush1.msra.mxu0 0.0
    %145 = vmatprep.subr.mxu0 0.0
    %146 = vmatpush1.msra.mxu0 0.0
    %147 = vmatprep.subr.mxu0 0.0
    %148 = vmatpush1.msra.mxu0 0.0
    %149 = vmatprep.subr.mxu0 0.0
    %150 = vmatpush1.msra.mxu0 0.0
    %151 = vmatprep.subr.mxu0 0.0
    %152 = vmatpush1.msra.mxu0 %v66
    %153 = vmatprep.subr.mxu0 0.0
    %154 = vmatpush1.msra.mxu0 %v65
    %155 = vmatprep.subr.mxu0 0.0
    %156 = vmatpush2.msra.mxu0 0.0
    %157 = vmatprep.subr.mxu0 0.0
    %158 = vmatpush2.msra.mxu0 0.0
    %159 = vmatprep.subr.mxu0 0.0
    %160 = vmatpush2.msra.mxu0 0.0
    %161 = vmatprep.subr.mxu0 0.0
    %162 = vmatpush2.msra.mxu0 0.0
    %163 = vmatprep.subr.mxu0 0.0
    %164 = vmatpush2.msra.mxu0 0.0
    %165 = vmatprep.subr.mxu0 0.0
    %166 = vmatpush2.msra.mxu0 0.0
    %167 = vmatprep.subr.mxu0 0.0
    %168 = vmatpush2.msra.mxu0 0.0
    %169 = vmatprep.subr.mxu0 0.0
    %170 = vmatpush2.msra.mxu0 0.0
    %171 = vmatprep.subr.mxu0 0.0
    %172 = vmatpush2.msra.mxu0 0.0
    %173 = vmatprep.subr.mxu0 0.0
    %174 = vmatpush2.msra.mxu0 0.0
    %175 = vmatprep.subr.mxu0 0.0
    %176 = vmatpush2.msra.mxu0 0.0
    %177 = vmatprep.subr.mxu0 0.0
    %178 = vmatpush2.msra.mxu0 0.0
    %179 = vmatprep.subr.mxu0 0.0
    %180 = vmatpush2.msra.mxu0 0.0
    %181 = vmatprep.subr.mxu0 0.0
    %182 = vmatpush2.msra.mxu0 0.0
    %183 = vmatprep.subr.mxu0 0.0
    %184 = vmatpush2.msra.mxu0 0.0
    %185 = vmatprep.subr.mxu0 0.0
    %186 = vmatpush2.msra.mxu0 0.0
    %187 = vmatprep.mubr.f32.mxu0 0.0
    %188 = vmatmul.mubr.f32.gmra.mxu0 %v76
    %v189 = vpop.f32.mrf.mxu0
    %v190 = vadd.f32 %v72, %v189
    %v191 = vpop.f32.mrf.mxu0
    %192 = vmatprep.mubr.f32.mxu0 0.0
    %193 = vmatmul.mubr.f32.gmra.mxu0 %v79
    %v194 = vpop.f32.mrf.mxu0
    %v195 = vadd.f32 %v72, %v194
    %v196 = vpop.f32.mrf.mxu0
    %197 = vmatprep.mubr.f32.mxu0 0.0
    %198 = vmatmul.mubr.f32.gmra.mxu0 %v82
    %v199 = vpop.f32.mrf.mxu0
    %v200 = vadd.f32 %v72, %v199
    %v201 = vpop.f32.mrf.mxu0
    %202 = vmatprep.mubr.f32.mxu0 0.0
    %203 = vmatmul.mubr.f32.gmra.mxu0 %v85
    %v204 = vpop.f32.mrf.mxu0
    %v205 = vadd.f32 %v72, %v204
    %v206 = vpop.f32.mrf.mxu0
    %207 = vmatprep.mubr.f32.mxu0 0.0
    %208 = vmatmul.mubr.f32.gmra.mxu0 %v88
    %v209 = vpop.f32.mrf.mxu0
    %v210 = vadd.f32 %v72, %v209
    %v211 = vpop.f32.mrf.mxu0
    %212 = vmatprep.mubr.f32.mxu0 0.0
    %213 = vmatmul.mubr.f32.gmra.mxu0 %v91
    %v214 = vpop.f32.mrf.mxu0
    %v215 = vadd.f32 %v72, %v214
    %v216 = vpop.f32.mrf.mxu0
    %217 = vmatprep.mubr.f32.mxu0 0.0
    %218 = vmatmul.mubr.f32.gmra.mxu0 %v94
    %v219 = vpop.f32.mrf.mxu0
    %v220 = vadd.f32 %v72, %v219
    %v221 = vpop.f32.mrf.mxu0
    %222 = vmatprep.mubr.f32.mxu0 0.0
    %223 = vmatmul.mubr.f32.gmra.mxu0 %v97
    %v224 = vpop.f32.mrf.mxu0
    %v225 = vadd.f32 %v72, %v224
    %v226 = vpop.f32.mrf.mxu0
    %227 = vmatprep.mubr.f32.mxu0 0.0
    %228 = vmatmul.mubr.f32.gmra.mxu0 %v100
    %v229 = vpop.f32.mrf.mxu0
    %v230 = vadd.f32 %v72, %v229
    %v231 = vpop.f32.mrf.mxu0
    %232 = vmatprep.mubr.f32.mxu0 0.0
    %233 = vmatmul.mubr.f32.gmra.mxu0 %v103
    %v234 = vpop.f32.mrf.mxu0
    %v235 = vadd.f32 %v72, %v234
    %v236 = vpop.f32.mrf.mxu0
    %237 = vmatprep.mubr.f32.mxu0 0.0
    %238 = vmatmul.mubr.f32.gmra.mxu0 %v106
    %v239 = vpop.f32.mrf.mxu0
    %v240 = vadd.f32 %v72, %v239
    %v241 = vpop.f32.mrf.mxu0
    %242 = vmatprep.mubr.f32.mxu0 0.0
    %243 = vmatmul.mubr.f32.gmra.mxu0 %v109
    %v244 = vpop.f32.mrf.mxu0
    %v245 = vadd.f32 %v72, %v244
    %v246 = vpop.f32.mrf.mxu0
    %247 = vmatprep.mubr.f32.mxu0 0.0
    %248 = vmatmul.mubr.f32.gmra.mxu0 %v112
    %v249 = vpop.f32.mrf.mxu0
    %v250 = vadd.f32 %v72, %v249
    %v251 = vpop.f32.mrf.mxu0
    %252 = vmatprep.mubr.f32.mxu0 0.0
    %253 = vmatmul.mubr.f32.gmra.mxu0 %v115
    %v254 = vpop.f32.mrf.mxu0
    %v255 = vadd.f32 %v72, %v254
    %v256 = vpop.f32.mrf.mxu0
    %257 = vmatprep.mubr.f32.mxu0 0.0
    %258 = vmatmul.mubr.f32.gmra.mxu0 %v118
    %v259 = vpop.f32.mrf.mxu0
    %v260 = vadd.f32 %v72, %v259
    %v261 = vpop.f32.mrf.mxu0
    %262 = vmatprep.mubr.f32.mxu0 0.0
    %263 = vmatmul.mubr.f32.gmra.mxu0 %v121
    %v264 = vpop.f32.mrf.mxu0
    %v265 = vadd.f32 %v72, %v264
    %v266 = vpop.f32.mrf.mxu0
    %267 = vdwg.mxu0
    %268 = vst [vmem:[#allocation2] sm:$0xff] %v190
    %269 = vst [vmem:[#allocation2 + $0x8] sm:$0xff] %v195
    %270 = vst [vmem:[#allocation2 + $0x10] sm:$0xff] %v200
    %271 = vst [vmem:[#allocation2 + $0x18] sm:$0xff] %v205
    %272 = vst [vmem:[#allocation2 + $0x20] sm:$0xff] %v210
    %273 = vst [vmem:[#allocation2 + $0x28] sm:$0xff] %v215
    %274 = vst [vmem:[#allocation2 + $0x30] sm:$0xff] %v220
    %275 = vst [vmem:[#allocation2 + $0x38] sm:$0xff] %v225
    %276 = vst [vmem:[#allocation2 + $0x40] sm:$0xff] %v230
    %277 = vst [vmem:[#allocation2 + $0x48] sm:$0xff] %v235
    %278 = vst [vmem:[#allocation2 + $0x50] sm:$0xff] %v240
    %279 = vst [vmem:[#allocation2 + $0x58] sm:$0xff] %v245
    %280 = vst [vmem:[#allocation2 + $0x60] sm:$0xff] %v250
    %281 = vst [vmem:[#allocation2 + $0x68] sm:$0xff] %v255
    %282 = vst [vmem:[#allocation2 + $0x70] sm:$0xff] %v260
    %283 = vst [vmem:[#allocation2 + $0x78] sm:$0xff] %v265
    %v284 = vld [vmem:[%s2] sm:$0xff]
    %v285 = vld [vmem:[%s2 + $0x8] sm:$0xff]
    %v286 = vld [vmem:[%s2 + $0x10] sm:$0xff]
    %v287 = vld [vmem:[%s2 + $0x18] sm:$0xff]
    %v288 = vld [vmem:[%s2 + $0x20] sm:$0xff]
    %v289 = vld [vmem:[%s2 + $0x28] sm:$0xff]
    %v290 = vld [vmem:[%s2 + $0x30] sm:$0xff]
    %v291 = vld [vmem:[%s2 + $0x38] sm:$0xff]
    %v292 = vld [vmem:[%s2 + $0x40] sm:$0xff]
    %v293 = vld [vmem:[%s2 + $0x48] sm:$0xff]
    %v294 = vld [vmem:[%s2 + $0x50] sm:$0xff]
    %v295 = vld [vmem:[%s2 + $0x58] sm:$0xff]
    %v296 = vld [vmem:[%s2 + $0x60] sm:$0xff]
    %v297 = vld [vmem:[%s2 + $0x68] sm:$0xff]
    %v298 = vld [vmem:[%s2 + $0x70] sm:$0xff]
    %v299 = vld [vmem:[%s2 + $0x78] sm:$0xff]
    %v300 = vld [vmem:[#allocation7] sm:$0xff]
    %v301 = vld [vmem:[#allocation7 + $0x8] sm:$0xff]
    %v302 = vld [vmem:[#allocation9] sm:$0xff]
    %v303 = vld [vmem:[#allocation9 + $0x8] sm:$0xff]
    %v304 = vld [vmem:[#allocation10] sm:$0xff]
    %v305 = vld [vmem:[#allocation10 + $0x8] sm:$0xff]
    %306 = vmatprep.subr.mxu0 0.0
    %307 = vmatpush1.msra.mxu0 %v299
    %308 = vmatprep.subr.mxu0 0.0
    %309 = vmatpush1.msra.mxu0 %v298
    %310 = vmatprep.subr.mxu0 0.0
    %311 = vmatpush1.msra.mxu0 %v297
    %312 = vmatprep.subr.mxu0 0.0
    %313 = vmatpush1.msra.mxu0 %v296
    %314 = vmatprep.subr.mxu0 0.0
    %315 = vmatpush1.msra.mxu0 %v295
    %316 = vmatprep.subr.mxu0 0.0
    %317 = vmatpush1.msra.mxu0 %v294
    %318 = vmatprep.subr.mxu0 0.0
    %319 = vmatpush1.msra.mxu0 %v293
    %320 = vmatprep.subr.mxu0 0.0
    %321 = vmatpush1.msra.mxu0 %v292
    %322 = vmatprep.subr.mxu0 0.0
    %323 = vmatpush1.msra.mxu0 %v291
    %324 = vmatprep.subr.mxu0 0.0
    %325 = vmatpush1.msra.mxu0 %v290
    %326 = vmatprep.subr.mxu0 0.0
    %327 = vmatpush1.msra.mxu0 %v289
    %328 = vmatprep.subr.mxu0 0.0
    %329 = vmatpush1.msra.mxu0 %v288
    %330 = vmatprep.subr.mxu0 0.0
    %331 = vmatpush1.msra.mxu0 %v287
    %332 = vmatprep.subr.mxu0 0.0
    %333 = vmatpush1.msra.mxu0 %v286
    %334 = vmatprep.subr.mxu0 0.0
    %335 = vmatpush1.msra.mxu0 %v285
    %336 = vmatprep.subr.mxu0 0.0
    %337 = vmatpush1.msra.mxu0 %v284
    %338 = vmatprep.subr.mxu0 0.0
    %339 = vmatpush2.msra.mxu0 0.0
    %340 = vmatprep.subr.mxu0 0.0
    %341 = vmatpush2.msra.mxu0 0.0
    %342 = vmatprep.subr.mxu0 0.0
    %343 = vmatpush2.msra.mxu0 0.0
    %344 = vmatprep.subr.mxu0 0.0
    %345 = vmatpush2.msra.mxu0 0.0
    %346 = vmatprep.subr.mxu0 0.0
    %347 = vmatpush2.msra.mxu0 0.0
    %348 = vmatprep.subr.mxu0 0.0
    %349 = vmatpush2.msra.mxu0 0.0
    %350 = vmatprep.subr.mxu0 0.0
    %351 = vmatpush2.msra.mxu0 0.0
    %352 = vmatprep.subr.mxu0 0.0
    %353 = vmatpush2.msra.mxu0 0.0
    %354 = vmatprep.subr.mxu0 0.0
    %355 = vmatpush2.msra.mxu0 0.0
    %356 = vmatprep.subr.mxu0 0.0
    %357 = vmatpush2.msra.mxu0 0.0
    %358 = vmatprep.subr.mxu0 0.0
    %359 = vmatpush2.msra.mxu0 0.0
    %360 = vmatprep.subr.mxu0 0.0
    %361 = vmatpush2.msra.mxu0 0.0
    %362 = vmatprep.subr.mxu0 0.0
    %363 = vmatpush2.msra.mxu0 0.0
    %364 = vmatprep.subr.mxu0 0.0
    %365 = vmatpush2.msra.mxu0 0.0
    %366 = vmatprep.subr.mxu0 0.0
    %367 = vmatpush2.msra.mxu0 0.0
    %368 = vmatprep.subr.mxu0 0.0
    %369 = vmatpush2.msra.mxu0 0.0
    %370 = vmatprep.mubr.f32.mxu0 0.0
    %371 = vmatmul.mubr.f32.gmra.mxu0 %v300
    %v372 = vpop.f32.mrf.mxu0
    %v373 = vadd.f32 0.0, %v372
    %v374 = vpop.f32.mrf.mxu0
    %375 = vmatprep.mubr.f32.mxu0 0.0
    %376 = vmatmul.mubr.f32.gmra.mxu0 %v301
    %v377 = vpop.f32.mrf.mxu0
    %v378 = vadd.f32 0.0, %v377
    %v379 = vpop.f32.mrf.mxu0
    %380 = vdwg.mxu0
    %v381 = vld [vmem:[#allocation2] sm:$0xff]
    %v382 = vld [vmem:[#allocation2 + $0x8] sm:$0xff]
    %v383 = vadd.f32 %v381, %v373
    %v384 = vadd.f32 %v382, %v378
    %v385 = vld [vmem:[#allocation3] sm:$0x1]
    %v386 = vlaneseq
    %v387 = vshrl.u32 %v386, 7
    %v388 = vsub.s32 0, %v387
    %v389 = vrot.slane %v385, %v388
    %v390 = vmul.f32 %v302, %v389
    %v391 = vmul.f32 %v303, %v389
    %v392 = vadd.f32 %v304, %v390
    %v393 = vadd.f32 %v305, %v391
    %v394 = vsub.f32 %v304, 0.3
    %v395 = vsub.f32 %v305, 0.3
    %v396 = vmul.f32 %v394, 0.02
    %v397 = vmul.f32 %v395, 0.02
    %v398 = vsub.f32 %v392, %v396
    %v399 = vsub.f32 %v393, %v397
    %v400 = vmul.f32 %v302, 0.5
    %v401 = vmul.f32 %v303, 0.5
    %v402 = vsub.f32 1.0, %v300
    %v403 = vsub.f32 1.0, %v301
    %v404 = vmul.f32 %v400, %v402
    %v405 = vmul.f32 %v401, %v403
    %v406 = vadd.f32 %v404, %v383
    %v407 = vadd.f32 %v405, %v384
    %vm408 = vcmp.gt.f32.partialorder %v406, %v398
    %vm409 = vcmp.gt.f32.partialorder %v407, %v399
    %v410 = vsel %vm408, 1, 0
    %v411 = vsel %vm409, 1, 0
    %v412 = vcvt.s32.f32 %v410
    %v413 = vcvt.s32.f32 %v411
    %414 = vst [vmem:[#allocation6] sm:$0xff] %v412
    %415 = vst [vmem:[#allocation6 + $0x8] sm:$0xff] %v413
    %416 = vmatprep.subr.mxu0 0.0
    %417 = vmatpush1.msra.mxu0 %v299
    %418 = vmatprep.subr.mxu0 0.0
    %419 = vmatpush1.msra.mxu0 %v298
    %420 = vmatprep.subr.mxu0 0.0
    %421 = vmatpush1.msra.mxu0 %v297
    %422 = vmatprep.subr.mxu0 0.0
    %423 = vmatpush1.msra.mxu0 %v296
    %424 = vmatprep.subr.mxu0 0.0
    %425 = vmatpush1.msra.mxu0 %v295
    %426 = vmatprep.subr.mxu0 0.0
    %427 = vmatpush1.msra.mxu0 %v294
    %428 = vmatprep.subr.mxu0 0.0
    %429 = vmatpush1.msra.mxu0 %v293
    %430 = vmatprep.subr.mxu0 0.0
    %431 = vmatpush1.msra.mxu0 %v292
    %432 = vmatprep.subr.mxu0 0.0
    %433 = vmatpush1.msra.mxu0 %v291
    %434 = vmatprep.subr.mxu0 0.0
    %435 = vmatpush1.msra.mxu0 %v290
    %436 = vmatprep.subr.mxu0 0.0
    %437 = vmatpush1.msra.mxu0 %v289
    %438 = vmatprep.subr.mxu0 0.0
    %439 = vmatpush1.msra.mxu0 %v288
    %440 = vmatprep.subr.mxu0 0.0
    %441 = vmatpush1.msra.mxu0 %v287
    %442 = vmatprep.subr.mxu0 0.0
    %443 = vmatpush1.msra.mxu0 %v286
    %444 = vmatprep.subr.mxu0 0.0
    %445 = vmatpush1.msra.mxu0 %v285
    %446 = vmatprep.subr.mxu0 0.0
    %447 = vmatpush1.msra.mxu0 %v284
    %448 = vmatprep.subr.mxu0 0.0
    %449 = vmatpush2.msra.mxu0 0.0
    %450 = vmatprep.subr.mxu0 0.0
    %451 = vmatpush2.msra.mxu0 0.0
    %452 = vmatprep.subr.mxu0 0.0
    %453 = vmatpush2.msra.mxu0 0.0
    %454 = vmatprep.subr.mxu0 0.0
    %455 = vmatpush2.msra.mxu0 0.0
    %456 = vmatprep.subr.mxu0 0.0
    %457 = vmatpush2.msra.mxu0 0.0
    %458 = vmatprep.subr.mxu0 0.0
    %459 = vmatpush2.msra.mxu0 0.0
    %460 = vmatprep.subr.mxu0 0.0
    %461 = vmatpush2.msra.mxu0 0.0
    %462 = vmatprep.subr.mxu0 0.0
    %463 = vmatpush2.msra.mxu0 0.0
    %464 = vmatprep.subr.mxu0 0.0
    %465 = vmatpush2.msra.mxu0 0.0
    %466 = vmatprep.subr.mxu0 0.0
    %467 = vmatpush2.msra.mxu0 0.0
    %468 = vmatprep.subr.mxu0 0.0
    %469 = vmatpush2.msra.mxu0 0.0
    %470 = vmatprep.subr.mxu0 0.0
    %471 = vmatpush2.msra.mxu0 0.0
    %472 = vmatprep.subr.mxu0 0.0
    %473 = vmatpush2.msra.mxu0 0.0
    %474 = vmatprep.subr.mxu0 0.0
    %475 = vmatpush2.msra.mxu0 0.0
    %476 = vmatprep.subr.mxu0 0.0
    %477 = vmatpush2.msra.mxu0 0.0
    %478 = vmatprep.subr.mxu0 0.0
    %479 = vmatpush2.msra.mxu0 0.0
    %480 = vmatprep.mubr.f32.mxu0 0.0
    %481 = vmatmul.mubr.f32.gmra.mxu0 %v412
    %v482 = vpop.f32.mrf.mxu0
    %v483 = vadd.f32 0.0, %v482
    %v484 = vpop.f32.mrf.mxu0
    %485 = vmatprep.mubr.f32.mxu0 0.0
    %486 = vmatmul.mubr.f32.gmra.mxu0 %v413
    %v487 = vpop.f32.mrf.mxu0
    %v488 = vadd.f32 0.0, %v487
    %v489 = vpop.f32.mrf.mxu0
    %490 = vdwg.mxu0
    %v491 = vld [vmem:[#allocation2 + $0x10] sm:$0xff]
    %v492 = vld [vmem:[#allocation2 + $0x18] sm:$0xff]
    %v493 = vadd.f32 %v491, %v483
    %v494 = vadd.f32 %v492, %v488
    %v495 = vld [vmem:[#allocation3 + $0x1] sm:$0x1]
    %v496 = vlaneseq
    %v497 = vshrl.u32 %v496, 7
    %v498 = vsub.s32 0, %v497
    %v499 = vrot.slane %v495, %v498
    %v500 = vmul.f32 %v406, %v499
    %v501 = vmul.f32 %v407, %v499
    %v502 = vadd.f32 %v398, %v500
    %v503 = vadd.f32 %v399, %v501
    %v504 = vsub.f32 %v398, 0.3
    %v505 = vsub.f32 %v399, 0.3
    %v506 = vmul.f32 %v504, 0.02
    %v507 = vmul.f32 %v505, 0.02
    %v508 = vsub.f32 %v502, %v506
    %v509 = vsub.f32 %v503, %v507
    %v510 = vmul.f32 %v406, 0.5
    %v511 = vmul.f32 %v407, 0.5
    %v512 = vsub.f32 1.0, %v412
    %v513 = vsub.f32 1.0, %v413
    %v514 = vmul.f32 %v510, %v512
    %v515 = vmul.f32 %v511, %v513
    %v516 = vadd.f32 %v514, %v493
    %v517 = vadd.f32 %v515, %v494
    %vm518 = vcmp.gt.f32.partialorder %v516, %v508
    %vm519 = vcmp.gt.f32.partialorder %v517, %v509
    %v520 = vsel %vm518, 1, 0
    %v521 = vsel %vm519, 1, 0
    %v522 = vcvt.s32.f32 %v520
    %v523 = vcvt.s32.f32 %v521
    %s524 = scalar_lea.vmem [#allocation6], 16
    %525 = vst [vmem:[%s524] sm:$0xff] %v522
    %526 = vst [vmem:[%s524 + $0x8] sm:$0xff] %v523
    %527 = vmatprep.subr.mxu0 0.0
    %528 = vmatpush1.msra.mxu0 %v299
    %529 = vmatprep.subr.mxu0 0.0
    %530 = vmatpush1.msra.mxu0 %v298
    %531 = vmatprep.subr.mxu0 0.0
    %532 = vmatpush1.msra.mxu0 %v297
    %533 = vmatprep.subr.mxu0 0.0
    %534 = vmatpush1.msra.mxu0 %v296
    %535 = vmatprep.subr.mxu0 0.0
    %536 = vmatpush1.msra.mxu0 %v295
    %537 = vmatprep.subr.mxu0 0.0
    %538 = vmatpush1.msra.mxu0 %v294
    %539 = vmatprep.subr.mxu0 0.0
    %540 = vmatpush1.msra.mxu0 %v293
    %541 = vmatprep.subr.mxu0 0.0
    %542 = vmatpush1.msra.mxu0 %v292
    %543 = vmatprep.subr.mxu0 0.0
    %544 = vmatpush1.msra.mxu0 %v291
    %545 = vmatprep.subr.mxu0 0.0
    %546 = vmatpush1.msra.mxu0 %v290
    %547 = vmatprep.subr.mxu0 0.0
    %548 = vmatpush1.msra.mxu0 %v289
    %549 = vmatprep.subr.mxu0 0.0
    %550 = vmatpush1.msra.mxu0 %v288
    %551 = vmatprep.subr.mxu0 0.0
    %552 = vmatpush1.msra.mxu0 %v287
    %553 = vmatprep.subr.mxu0 0.0
    %554 = vmatpush1.msra.mxu0 %v286
    %555 = vmatprep.subr.mxu0 0.0
    %556 = vmatpush1.msra.mxu0 %v285
    %557 = vmatprep.subr.mxu0 0.0
    %558 = vmatpush1.msra.mxu0 %v284
    %559 = vmatprep.subr.mxu0 0.0
    %560 = vmatpush2.msra.mxu0 0.0
    %561 = vmatprep.subr.mxu0 0.0
    %562 = vmatpush2.msra.mxu0 0.0
    %563 = vmatprep.subr.mxu0 0.0
    %564 = vmatpush2.msra.mxu0 0.0
    %565 = vmatprep.subr.mxu0 0.0
    %566 = vmatpush2.msra.mxu0 0.0
    %567 = vmatprep.subr.mxu0 0.0
    %568 = vmatpush2.msra.mxu0 0.0
    %569 = vmatprep.subr.mxu0 0.0
    %570 = vmatpush2.msra.mxu0 0.0
    %571 = vmatprep.subr.mxu0 0.0
    %572 = vmatpush2.msra.mxu0 0.0
    %573 = vmatprep.subr.mxu0 0.0
    %574 = vmatpush2.msra.mxu0 0.0
    %575 = vmatprep.subr.mxu0 0.0
    %576 = vmatpush2.msra.mxu0 0.0
    %577 = vmatprep.subr.mxu0 0.0
    %578 = vmatpush2.msra.mxu0 0.0
    %579 = vmatprep.subr.mxu0 0.0
    %580 = vmatpush2.msra.mxu0 0.0
    %581 = vmatprep.subr.mxu0 0.0
    %582 = vmatpush2.msra.mxu0 0.0
    %583 = vmatprep.subr.mxu0 0.0
    %584 = vmatpush2.msra.mxu0 0.0
    %585 = vmatprep.subr.mxu0 0.0
    %586 = vmatpush2.msra.mxu0 0.0
    %587 = vmatprep.subr.mxu0 0.0
    %588 = vmatpush2.msra.mxu0 0.0
    %589 = vmatprep.subr.mxu0 0.0
    %590 = vmatpush2.msra.mxu0 0.0
    %591 = vmatprep.mubr.f32.mxu0 0.0
    %592 = vmatmul.mubr.f32.gmra.mxu0 %v522
    %v593 = vpop.f32.mrf.mxu0
    %v594 = vadd.f32 0.0, %v593
    %v595 = vpop.f32.mrf.mxu0
    %596 = vmatprep.mubr.f32.mxu0 0.0
    %597 = vmatmul.mubr.f32.gmra.mxu0 %v523
    %v598 = vpop.f32.mrf.mxu0
    %v599 = vadd.f32 0.0, %v598
    %v600 = vpop.f32.mrf.mxu0
    %601 = vdwg.mxu0
    %v602 = vld [vmem:[#allocation2 + $0x20] sm:$0xff]
    %v603 = vld [vmem:[#allocation2 + $0x28] sm:$0xff]
    %v604 = vadd.f32 %v602, %v594
    %v605 = vadd.f32 %v603, %v599
    %v606 = vld [vmem:[#allocation3 + $0x2] sm:$0x1]
    %v607 = vlaneseq
    %v608 = vshrl.u32 %v607, 7
    %v609 = vsub.s32 0, %v608
    %v610 = vrot.slane %v606, %v609
    %v611 = vmul.f32 %v516, %v610
    %v612 = vmul.f32 %v517, %v610
    %v613 = vadd.f32 %v508, %v611
    %v614 = vadd.f32 %v509, %v612
    %v615 = vsub.f32 %v508, 0.3
    %v616 = vsub.f32 %v509, 0.3
    %v617 = vmul.f32 %v615, 0.02
    %v618 = vmul.f32 %v616, 0.02
    %v619 = vsub.f32 %v613, %v617
    %v620 = vsub.f32 %v614, %v618
    %v621 = vmul.f32 %v516, 0.5
    %v622 = vmul.f32 %v517, 0.5
    %v623 = vsub.f32 1.0, %v522
    %v624 = vsub.f32 1.0, %v523
    %v625 = vmul.f32 %v621, %v623
    %v626 = vmul.f32 %v622, %v624
    %v627 = vadd.f32 %v625, %v604
    %v628 = vadd.f32 %v626, %v605
    %vm629 = vcmp.gt.f32.partialorder %v627, %v619
    %vm630 = vcmp.gt.f32.partialorder %v628, %v620
    %v631 = vsel %vm629, 1, 0
    %v632 = vsel %vm630, 1, 0
    %v633 = vcvt.s32.f32 %v631
    %v634 = vcvt.s32.f32 %v632
    %s635 = scalar_lea.vmem [#allocation6], 32
    %636 = vst [vmem:[%s635] sm:$0xff] %v633
    %637 = vst [vmem:[%s635 + $0x8] sm:$0xff] %v634
    %638 = vmatprep.subr.mxu0 0.0
    %639 = vmatpush1.msra.mxu0 %v299
    %640 = vmatprep.subr.mxu0 0.0
    %641 = vmatpush1.msra.mxu0 %v298
    %642 = vmatprep.subr.mxu0 0.0
    %643 = vmatpush1.msra.mxu0 %v297
    %644 = vmatprep.subr.mxu0 0.0
    %645 = vmatpush1.msra.mxu0 %v296
    %646 = vmatprep.subr.mxu0 0.0
    %647 = vmatpush1.msra.mxu0 %v295
    %648 = vmatprep.subr.mxu0 0.0
    %649 = vmatpush1.msra.mxu0 %v294
    %650 = vmatprep.subr.mxu0 0.0
    %651 = vmatpush1.msra.mxu0 %v293
    %652 = vmatprep.subr.mxu0 0.0
    %653 = vmatpush1.msra.mxu0 %v292
    %654 = vmatprep.subr.mxu0 0.0
    %655 = vmatpush1.msra.mxu0 %v291
    %656 = vmatprep.subr.mxu0 0.0
    %657 = vmatpush1.msra.mxu0 %v290
    %658 = vmatprep.subr.mxu0 0.0
    %659 = vmatpush1.msra.mxu0 %v289
    %660 = vmatprep.subr.mxu0 0.0
    %661 = vmatpush1.msra.mxu0 %v288
    %662 = vmatprep.subr.mxu0 0.0
    %663 = vmatpush1.msra.mxu0 %v287
    %664 = vmatprep.subr.mxu0 0.0
    %665 = vmatpush1.msra.mxu0 %v286
    %666 = vmatprep.subr.mxu0 0.0
    %667 = vmatpush1.msra.mxu0 %v285
    %668 = vmatprep.subr.mxu0 0.0
    %669 = vmatpush1.msra.mxu0 %v284
    %670 = vmatprep.subr.mxu0 0.0
    %671 = vmatpush2.msra.mxu0 0.0
    %672 = vmatprep.subr.mxu0 0.0
    %673 = vmatpush2.msra.mxu0 0.0
    %674 = vmatprep.subr.mxu0 0.0
    %675 = vmatpush2.msra.mxu0 0.0
    %676 = vmatprep.subr.mxu0 0.0
    %677 = vmatpush2.msra.mxu0 0.0
    %678 = vmatprep.subr.mxu0 0.0
    %679 = vmatpush2.msra.mxu0 0.0
    %680 = vmatprep.subr.mxu0 0.0
    %681 = vmatpush2.msra.mxu0 0.0
    %682 = vmatprep.subr.mxu0 0.0
    %683 = vmatpush2.msra.mxu0 0.0
    %684 = vmatprep.subr.mxu0 0.0
    %685 = vmatpush2.msra.mxu0 0.0
    %686 = vmatprep.subr.mxu0 0.0
    %687 = vmatpush2.msra.mxu0 0.0
    %688 = vmatprep.subr.mxu0 0.0
    %689 = vmatpush2.msra.mxu0 0.0
    %690 = vmatprep.subr.mxu0 0.0
    %691 = vmatpush2.msra.mxu0 0.0
    %692 = vmatprep.subr.mxu0 0.0
    %693 = vmatpush2.msra.mxu0 0.0
    %694 = vmatprep.subr.mxu0 0.0
    %695 = vmatpush2.msra.mxu0 0.0
    %696 = vmatprep.subr.mxu0 0.0
    %697 = vmatpush2.msra.mxu0 0.0
    %698 = vmatprep.subr.mxu0 0.0
    %699 = vmatpush2.msra.mxu0 0.0
    %700 = vmatprep.subr.mxu0 0.0
    %701 = vmatpush2.msra.mxu0 0.0
    %702 = vmatprep.mubr.f32.mxu0 0.0
    %703 = vmatmul.mubr.f32.gmra.mxu0 %v633
    %v704 = vpop.f32.mrf.mxu0
    %v705 = vadd.f32 0.0, %v704
    %v706 = vpop.f32.mrf.mxu0
    %707 = vmatprep.mubr.f32.mxu0 0.0
    %708 = vmatmul.mubr.f32.gmra.mxu0 %v634
    %v709 = vpop.f32.mrf.mxu0
    %v710 = vadd.f32 0.0, %v709
    %v711 = vpop.f32.mrf.mxu0
    %712 = vdwg.mxu0
    %v713 = vld [vmem:[#allocation2 + $0x30] sm:$0xff]
    %v714 = vld [vmem:[#allocation2 + $0x38] sm:$0xff]
    %v715 = vadd.f32 %v713, %v705
    %v716 = vadd.f32 %v714, %v710
    %v717 = vld [vmem:[#allocation3 + $0x3] sm:$0x1]
    %v718 = vlaneseq
    %v719 = vshrl.u32 %v718, 7
    %v720 = vsub.s32 0, %v719
    %v721 = vrot.slane %v717, %v720
    %v722 = vmul.f32 %v627, %v721
    %v723 = vmul.f32 %v628, %v721
    %v724 = vadd.f32 %v619, %v722
    %v725 = vadd.f32 %v620, %v723
    %v726 = vsub.f32 %v619, 0.3
    %v727 = vsub.f32 %v620, 0.3
    %v728 = vmul.f32 %v726, 0.02
    %v729 = vmul.f32 %v727, 0.02
    %v730 = vsub.f32 %v724, %v728
    %v731 = vsub.f32 %v725, %v729
    %v732 = vmul.f32 %v627, 0.5
    %v733 = vmul.f32 %v628, 0.5
    %v734 = vsub.f32 1.0, %v633
    %v735 = vsub.f32 1.0, %v634
    %v736 = vmul.f32 %v732, %v734
    %v737 = vmul.f32 %v733, %v735
    %v738 = vadd.f32 %v736, %v715
    %v739 = vadd.f32 %v737, %v716
    %vm740 = vcmp.gt.f32.partialorder %v738, %v730
    %vm741 = vcmp.gt.f32.partialorder %v739, %v731
    %v742 = vsel %vm740, 1, 0
    %v743 = vsel %vm741, 1, 0
    %v744 = vcvt.s32.f32 %v742
    %v745 = vcvt.s32.f32 %v743
    %s746 = scalar_lea.vmem [#allocation6], 48
    %747 = vst [vmem:[%s746] sm:$0xff] %v744
    %748 = vst [vmem:[%s746 + $0x8] sm:$0xff] %v745
    %749 = vmatprep.subr.mxu0 0.0
    %750 = vmatpush1.msra.mxu0 %v299
    %751 = vmatprep.subr.mxu0 0.0
    %752 = vmatpush1.msra.mxu0 %v298
    %753 = vmatprep.subr.mxu0 0.0
    %754 = vmatpush1.msra.mxu0 %v297
    %755 = vmatprep.subr.mxu0 0.0
    %756 = vmatpush1.msra.mxu0 %v296
    %757 = vmatprep.subr.mxu0 0.0
    %758 = vmatpush1.msra.mxu0 %v295
    %759 = vmatprep.subr.mxu0 0.0
    %760 = vmatpush1.msra.mxu0 %v294
    %761 = vmatprep.subr.mxu0 0.0
    %762 = vmatpush1.msra.mxu0 %v293
    %763 = vmatprep.subr.mxu0 0.0
    %764 = vmatpush1.msra.mxu0 %v292
    %765 = vmatprep.subr.mxu0 0.0
    %766 = vmatpush1.msra.mxu0 %v291
    %767 = vmatprep.subr.mxu0 0.0
    %768 = vmatpush1.msra.mxu0 %v290
    %769 = vmatprep.subr.mxu0 0.0
    %770 = vmatpush1.msra.mxu0 %v289
    %771 = vmatprep.subr.mxu0 0.0
    %772 = vmatpush1.msra.mxu0 %v288
    %773 = vmatprep.subr.mxu0 0.0
    %774 = vmatpush1.msra.mxu0 %v287
    %775 = vmatprep.subr.mxu0 0.0
    %776 = vmatpush1.msra.mxu0 %v286
    %777 = vmatprep.subr.mxu0 0.0
    %778 = vmatpush1.msra.mxu0 %v285
    %779 = vmatprep.subr.mxu0 0.0
    %780 = vmatpush1.msra.mxu0 %v284
    %781 = vmatprep.subr.mxu0 0.0
    %782 = vmatpush2.msra.mxu0 0.0
    %783 = vmatprep.subr.mxu0 0.0
    %784 = vmatpush2.msra.mxu0 0.0
    %785 = vmatprep.subr.mxu0 0.0
    %786 = vmatpush2.msra.mxu0 0.0
    %787 = vmatprep.subr.mxu0 0.0
    %788 = vmatpush2.msra.mxu0 0.0
    %789 = vmatprep.subr.mxu0 0.0
    %790 = vmatpush2.msra.mxu0 0.0
    %791 = vmatprep.subr.mxu0 0.0
    %792 = vmatpush2.msra.mxu0 0.0
    %793 = vmatprep.subr.mxu0 0.0
    %794 = vmatpush2.msra.mxu0 0.0
    %795 = vmatprep.subr.mxu0 0.0
    %796 = vmatpush2.msra.mxu0 0.0
    %797 = vmatprep.subr.mxu0 0.0
    %798 = vmatpush2.msra.mxu0 0.0
    %799 = vmatprep.subr.mxu0 0.0
    %800 = vmatpush2.msra.mxu0 0.0
    %801 = vmatprep.subr.mxu0 0.0
    %802 = vmatpush2.msra.mxu0 0.0
    %803 = vmatprep.subr.mxu0 0.0
    %804 = vmatpush2.msra.mxu0 0.0
    %805 = vmatprep.subr.mxu0 0.0
    %806 = vmatpush2.msra.mxu0 0.0
    %807 = vmatprep.subr.mxu0 0.0
    %808 = vmatpush2.msra.mxu0 0.0
    %809 = vmatprep.subr.mxu0 0.0
    %810 = vmatpush2.msra.mxu0 0.0
    %811 = vmatprep.subr.mxu0 0.0
    %812 = vmatpush2.msra.mxu0 0.0
    %813 = vmatprep.mubr.f32.mxu0 0.0
    %814 = vmatmul.mubr.f32.gmra.mxu0 %v744
    %v815 = vpop.f32.mrf.mxu0
    %v816 = vadd.f32 0.0, %v815
    %v817 = vpop.f32.mrf.mxu0
    %818 = vmatprep.mubr.f32.mxu0 0.0
    %819 = vmatmul.mubr.f32.gmra.mxu0 %v745
    %v820 = vpop.f32.mrf.mxu0
    %v821 = vadd.f32 0.0, %v820
    %v822 = vpop.f32.mrf.mxu0
    %823 = vdwg.mxu0
    %v824 = vld [vmem:[#allocation2 + $0x40] sm:$0xff]
    %v825 = vld [vmem:[#allocation2 + $0x48] sm:$0xff]
    %v826 = vadd.f32 %v824, %v816
    %v827 = vadd.f32 %v825, %v821
    %v828 = vld [vmem:[#allocation3 + $0x4] sm:$0x1]
    %v829 = vlaneseq
    %v830 = vshrl.u32 %v829, 7
    %v831 = vsub.s32 0, %v830
    %v832 = vrot.slane %v828, %v831
    %v833 = vmul.f32 %v738, %v832
    %v834 = vmul.f32 %v739, %v832
    %v835 = vadd.f32 %v730, %v833
    %v836 = vadd.f32 %v731, %v834
    %v837 = vsub.f32 %v730, 0.3
    %v838 = vsub.f32 %v731, 0.3
    %v839 = vmul.f32 %v837, 0.02
    %v840 = vmul.f32 %v838, 0.02
    %v841 = vsub.f32 %v835, %v839
    %v842 = vsub.f32 %v836, %v840
    %v843 = vmul.f32 %v738, 0.5
    %v844 = vmul.f32 %v739, 0.5
    %v845 = vsub.f32 1.0, %v744
    %v846 = vsub.f32 1.0, %v745
    %v847 = vmul.f32 %v843, %v845
    %v848 = vmul.f32 %v844, %v846
    %v849 = vadd.f32 %v847, %v826
    %v850 = vadd.f32 %v848, %v827
    %vm851 = vcmp.gt.f32.partialorder %v849, %v841
    %vm852 = vcmp.gt.f32.partialorder %v850, %v842
    %v853 = vsel %vm851, 1, 0
    %v854 = vsel %vm852, 1, 0
    %v855 = vcvt.s32.f32 %v853
    %v856 = vcvt.s32.f32 %v854
    %s857 = scalar_lea.vmem [#allocation6], 64
    %858 = vst [vmem:[%s857] sm:$0xff] %v855
    %859 = vst [vmem:[%s857 + $0x8] sm:$0xff] %v856
    %860 = vmatprep.subr.mxu0 0.0
    %861 = vmatpush1.msra.mxu0 %v299
    %862 = vmatprep.subr.mxu0 0.0
    %863 = vmatpush1.msra.mxu0 %v298
    %864 = vmatprep.subr.mxu0 0.0
    %865 = vmatpush1.msra.mxu0 %v297
    %866 = vmatprep.subr.mxu0 0.0
    %867 = vmatpush1.msra.mxu0 %v296
    %868 = vmatprep.subr.mxu0 0.0
    %869 = vmatpush1.msra.mxu0 %v295
    %870 = vmatprep.subr.mxu0 0.0
    %871 = vmatpush1.msra.mxu0 %v294
    %872 = vmatprep.subr.mxu0 0.0
    %873 = vmatpush1.msra.mxu0 %v293
    %874 = vmatprep.subr.mxu0 0.0
    %875 = vmatpush1.msra.mxu0 %v292
    %876 = vmatprep.subr.mxu0 0.0
    %877 = vmatpush1.msra.mxu0 %v291
    %878 = vmatprep.subr.mxu0 0.0
    %879 = vmatpush1.msra.mxu0 %v290
    %880 = vmatprep.subr.mxu0 0.0
    %881 = vmatpush1.msra.mxu0 %v289
    %882 = vmatprep.subr.mxu0 0.0
    %883 = vmatpush1.msra.mxu0 %v288
    %884 = vmatprep.subr.mxu0 0.0
    %885 = vmatpush1.msra.mxu0 %v287
    %886 = vmatprep.subr.mxu0 0.0
    %887 = vmatpush1.msra.mxu0 %v286
    %888 = vmatprep.subr.mxu0 0.0
    %889 = vmatpush1.msra.mxu0 %v285
    %890 = vmatprep.subr.mxu0 0.0
    %891 = vmatpush1.msra.mxu0 %v284
    %892 = vmatprep.subr.mxu0 0.0
    %893 = vmatpush2.msra.mxu0 0.0
    %894 = vmatprep.subr.mxu0 0.0
    %895 = vmatpush2.msra.mxu0 0.0
    %896 = vmatprep.subr.mxu0 0.0
    %897 = vmatpush2.msra.mxu0 0.0
    %898 = vmatprep.subr.mxu0 0.0
    %899 = vmatpush2.msra.mxu0 0.0
    %900 = vmatprep.subr.mxu0 0.0
    %901 = vmatpush2.msra.mxu0 0.0
    %902 = vmatprep.subr.mxu0 0.0
    %903 = vmatpush2.msra.mxu0 0.0
    %904 = vmatprep.subr.mxu0 0.0
    %905 = vmatpush2.msra.mxu0 0.0
    %906 = vmatprep.subr.mxu0 0.0
    %907 = vmatpush2.msra.mxu0 0.0
    %908 = vmatprep.subr.mxu0 0.0
    %909 = vmatpush2.msra.mxu0 0.0
    %910 = vmatprep.subr.mxu0 0.0
    %911 = vmatpush2.msra.mxu0 0.0
    %912 = vmatprep.subr.mxu0 0.0
    %913 = vmatpush2.msra.mxu0 0.0
    %914 = vmatprep.subr.mxu0 0.0
    %915 = vmatpush2.msra.mxu0 0.0
    %916 = vmatprep.subr.mxu0 0.0
    %917 = vmatpush2.msra.mxu0 0.0
    %918 = vmatprep.subr.mxu0 0.0
    %919 = vmatpush2.msra.mxu0 0.0
    %920 = vmatprep.subr.mxu0 0.0
    %921 = vmatpush2.msra.mxu0 0.0
    %922 = vmatprep.subr.mxu0 0.0
    %923 = vmatpush2.msra.mxu0 0.0
    %924 = vmatprep.mubr.f32.mxu0 0.0
    %925 = vmatmul.mubr.f32.gmra.mxu0 %v855
    %v926 = vpop.f32.mrf.mxu0
    %v927 = vadd.f32 0.0, %v926
    %v928 = vpop.f32.mrf.mxu0
    %929 = vmatprep.mubr.f32.mxu0 0.0
    %930 = vmatmul.mubr.f32.gmra.mxu0 %v856
    %v931 = vpop.f32.mrf.mxu0
    %v932 = vadd.f32 0.0, %v931
    %v933 = vpop.f32.mrf.mxu0
    %934 = vdwg.mxu0
    %v935 = vld [vmem:[#allocation2 + $0x50] sm:$0xff]
    %v936 = vld [vmem:[#allocation2 + $0x58] sm:$0xff]
    %v937 = vadd.f32 %v935, %v927
    %v938 = vadd.f32 %v936, %v932
    %v939 = vld [vmem:[#allocation3 + $0x5] sm:$0x1]
    %v940 = vlaneseq
    %v941 = vshrl.u32 %v940, 7
    %v942 = vsub.s32 0, %v941
    %v943 = vrot.slane %v939, %v942
    %v944 = vmul.f32 %v849, %v943
    %v945 = vmul.f32 %v850, %v943
    %v946 = vadd.f32 %v841, %v944
    %v947 = vadd.f32 %v842, %v945
    %v948 = vsub.f32 %v841, 0.3
    %v949 = vsub.f32 %v842, 0.3
    %v950 = vmul.f32 %v948, 0.02
    %v951 = vmul.f32 %v949, 0.02
    %v952 = vsub.f32 %v946, %v950
    %v953 = vsub.f32 %v947, %v951
    %v954 = vmul.f32 %v849, 0.5
    %v955 = vmul.f32 %v850, 0.5
    %v956 = vsub.f32 1.0, %v855
    %v957 = vsub.f32 1.0, %v856
    %v958 = vmul.f32 %v954, %v956
    %v959 = vmul.f32 %v955, %v957
    %v960 = vadd.f32 %v958, %v937
    %v961 = vadd.f32 %v959, %v938
    %vm962 = vcmp.gt.f32.partialorder %v960, %v952
    %vm963 = vcmp.gt.f32.partialorder %v961, %v953
    %v964 = vsel %vm962, 1, 0
    %v965 = vsel %vm963, 1, 0
    %v966 = vcvt.s32.f32 %v964
    %v967 = vcvt.s32.f32 %v965
    %s968 = scalar_lea.vmem [#allocation6], 80
    %969 = vst [vmem:[%s968] sm:$0xff] %v966
    %970 = vst [vmem:[%s968 + $0x8] sm:$0xff] %v967
    %971 = vmatprep.subr.mxu0 0.0
    %972 = vmatpush1.msra.mxu0 %v299
    %973 = vmatprep.subr.mxu0 0.0
    %974 = vmatpush1.msra.mxu0 %v298
    %975 = vmatprep.subr.mxu0 0.0
    %976 = vmatpush1.msra.mxu0 %v297
    %977 = vmatprep.subr.mxu0 0.0
    %978 = vmatpush1.msra.mxu0 %v296
    %979 = vmatprep.subr.mxu0 0.0
    %980 = vmatpush1.msra.mxu0 %v295
    %981 = vmatprep.subr.mxu0 0.0
    %982 = vmatpush1.msra.mxu0 %v294
    %983 = vmatprep.subr.mxu0 0.0
    %984 = vmatpush1.msra.mxu0 %v293
    %985 = vmatprep.subr.mxu0 0.0
    %986 = vmatpush1.msra.mxu0 %v292
    %987 = vmatprep.subr.mxu0 0.0
    %988 = vmatpush1.msra.mxu0 %v291
    %989 = vmatprep.subr.mxu0 0.0
    %990 = vmatpush1.msra.mxu0 %v290
    %991 = vmatprep.subr.mxu0 0.0
    %992 = vmatpush1.msra.mxu0 %v289
    %993 = vmatprep.subr.mxu0 0.0
    %994 = vmatpush1.msra.mxu0 %v288
    %995 = vmatprep.subr.mxu0 0.0
    %996 = vmatpush1.msra.mxu0 %v287
    %997 = vmatprep.subr.mxu0 0.0
    %998 = vmatpush1.msra.mxu0 %v286
    %999 = vmatprep.subr.mxu0 0.0
    %1000 = vmatpush1.msra.mxu0 %v285
    %1001 = vmatprep.subr.mxu0 0.0
    %1002 = vmatpush1.msra.mxu0 %v284
    %1003 = vmatprep.subr.mxu0 0.0
    %1004 = vmatpush2.msra.mxu0 0.0
    %1005 = vmatprep.subr.mxu0 0.0
    %1006 = vmatpush2.msra.mxu0 0.0
    %1007 = vmatprep.subr.mxu0 0.0
    %1008 = vmatpush2.msra.mxu0 0.0
    %1009 = vmatprep.subr.mxu0 0.0
    %1010 = vmatpush2.msra.mxu0 0.0
    %1011 = vmatprep.subr.mxu0 0.0
    %1012 = vmatpush2.msra.mxu0 0.0
    %1013 = vmatprep.subr.mxu0 0.0
    %1014 = vmatpush2.msra.mxu0 0.0
    %1015 = vmatprep.subr.mxu0 0.0
    %1016 = vmatpush2.msra.mxu0 0.0
    %1017 = vmatprep.subr.mxu0 0.0
    %1018 = vmatpush2.msra.mxu0 0.0
    %1019 = vmatprep.subr.mxu0 0.0
    %1020 = vmatpush2.msra.mxu0 0.0
    %1021 = vmatprep.subr.mxu0 0.0
    %1022 = vmatpush2.msra.mxu0 0.0
    %1023 = vmatprep.subr.mxu0 0.0
    %1024 = vmatpush2.msra.mxu0 0.0
    %1025 = vmatprep.subr.mxu0 0.0
    %1026 = vmatpush2.msra.mxu0 0.0
    %1027 = vmatprep.subr.mxu0 0.0
    %1028 = vmatpush2.msra.mxu0 0.0
    %1029 = vmatprep.subr.mxu0 0.0
    %1030 = vmatpush2.msra.mxu0 0.0
    %1031 = vmatprep.subr.mxu0 0.0
    %1032 = vmatpush2.msra.mxu0 0.0
    %1033 = vmatprep.subr.mxu0 0.0
    %1034 = vmatpush2.msra.mxu0 0.0
    %1035 = vmatprep.mubr.f32.mxu0 0.0
    %1036 = vmatmul.mubr.f32.gmra.mxu0 %v966
    %v1037 = vpop.f32.mrf.mxu0
    %v1038 = vadd.f32 0.0, %v1037
    %v1039 = vpop.f32.mrf.mxu0
    %1040 = vmatprep.mubr.f32.mxu0 0.0
    %1041 = vmatmul.mubr.f32.gmra.mxu0 %v967
    %v1042 = vpop.f32.mrf.mxu0
    %v1043 = vadd.f32 0.0, %v1042
    %v1044 = vpop.f32.mrf.mxu0
    %1045 = vdwg.mxu0
    %v1046 = vld [vmem:[#allocation2 + $0x60] sm:$0xff]
    %v1047 = vld [vmem:[#allocation2 + $0x68] sm:$0xff]
    %v1048 = vadd.f32 %v1046, %v1038
    %v1049 = vadd.f32 %v1047, %v1043
    %v1050 = vld [vmem:[#allocation3 + $0x6] sm:$0x1]
    %v1051 = vlaneseq
    %v1052 = vshrl.u32 %v1051, 7
    %v1053 = vsub.s32 0, %v1052
    %v1054 = vrot.slane %v1050, %v1053
    %v1055 = vmul.f32 %v960, %v1054
    %v1056 = vmul.f32 %v961, %v1054
    %v1057 = vadd.f32 %v952, %v1055
    %v1058 = vadd.f32 %v953, %v1056
    %v1059 = vsub.f32 %v952, 0.3
    %v1060 = vsub.f32 %v953, 0.3
    %v1061 = vmul.f32 %v1059, 0.02
    %v1062 = vmul.f32 %v1060, 0.02
    %v1063 = vsub.f32 %v1057, %v1061
    %v1064 = vsub.f32 %v1058, %v1062
    %v1065 = vmul.f32 %v960, 0.5
    %v1066 = vmul.f32 %v961, 0.5
    %v1067 = vsub.f32 1.0, %v966
    %v1068 = vsub.f32 1.0, %v967
    %v1069 = vmul.f32 %v1065, %v1067
    %v1070 = vmul.f32 %v1066, %v1068
    %v1071 = vadd.f32 %v1069, %v1048
    %v1072 = vadd.f32 %v1070, %v1049
    %vm1073 = vcmp.gt.f32.partialorder %v1071, %v1063
    %vm1074 = vcmp.gt.f32.partialorder %v1072, %v1064
    %v1075 = vsel %vm1073, 1, 0
    %v1076 = vsel %vm1074, 1, 0
    %v1077 = vcvt.s32.f32 %v1075
    %v1078 = vcvt.s32.f32 %v1076
    %s1079 = scalar_lea.vmem [#allocation6], 96
    %1080 = vst [vmem:[%s1079] sm:$0xff] %v1077
    %1081 = vst [vmem:[%s1079 + $0x8] sm:$0xff] %v1078
    %1082 = vmatprep.subr.mxu0 0.0
    %1083 = vmatpush1.msra.mxu0 %v299
    %1084 = vmatprep.subr.mxu0 0.0
    %1085 = vmatpush1.msra.mxu0 %v298
    %1086 = vmatprep.subr.mxu0 0.0
    %1087 = vmatpush1.msra.mxu0 %v297
    %1088 = vmatprep.subr.mxu0 0.0
    %1089 = vmatpush1.msra.mxu0 %v296
    %1090 = vmatprep.subr.mxu0 0.0
    %1091 = vmatpush1.msra.mxu0 %v295
    %1092 = vmatprep.subr.mxu0 0.0
    %1093 = vmatpush1.msra.mxu0 %v294
    %1094 = vmatprep.subr.mxu0 0.0
    %1095 = vmatpush1.msra.mxu0 %v293
    %1096 = vmatprep.subr.mxu0 0.0
    %1097 = vmatpush1.msra.mxu0 %v292
    %1098 = vmatprep.subr.mxu0 0.0
    %1099 = vmatpush1.msra.mxu0 %v291
    %1100 = vmatprep.subr.mxu0 0.0
    %1101 = vmatpush1.msra.mxu0 %v290
    %1102 = vmatprep.subr.mxu0 0.0
    %1103 = vmatpush1.msra.mxu0 %v289
    %1104 = vmatprep.subr.mxu0 0.0
    %1105 = vmatpush1.msra.mxu0 %v288
    %1106 = vmatprep.subr.mxu0 0.0
    %1107 = vmatpush1.msra.mxu0 %v287
    %1108 = vmatprep.subr.mxu0 0.0
    %1109 = vmatpush1.msra.mxu0 %v286
    %1110 = vmatprep.subr.mxu0 0.0
    %1111 = vmatpush1.msra.mxu0 %v285
    %1112 = vmatprep.subr.mxu0 0.0
    %1113 = vmatpush1.msra.mxu0 %v284
    %1114 = vmatprep.subr.mxu0 0.0
    %1115 = vmatpush2.msra.mxu0 0.0
    %1116 = vmatprep.subr.mxu0 0.0
    %1117 = vmatpush2.msra.mxu0 0.0
    %1118 = vmatprep.subr.mxu0 0.0
    %1119 = vmatpush2.msra.mxu0 0.0
    %1120 = vmatprep.subr.mxu0 0.0
    %1121 = vmatpush2.msra.mxu0 0.0
    %1122 = vmatprep.subr.mxu0 0.0
    %1123 = vmatpush2.msra.mxu0 0.0
    %1124 = vmatprep.subr.mxu0 0.0
    %1125 = vmatpush2.msra.mxu0 0.0
    %1126 = vmatprep.subr.mxu0 0.0
    %1127 = vmatpush2.msra.mxu0 0.0
    %1128 = vmatprep.subr.mxu0 0.0
    %1129 = vmatpush2.msra.mxu0 0.0
    %1130 = vmatprep.subr.mxu0 0.0
    %1131 = vmatpush2.msra.mxu0 0.0
    %1132 = vmatprep.subr.mxu0 0.0
    %1133 = vmatpush2.msra.mxu0 0.0
    %1134 = vmatprep.subr.mxu0 0.0
    %1135 = vmatpush2.msra.mxu0 0.0
    %1136 = vmatprep.subr.mxu0 0.0
    %1137 = vmatpush2.msra.mxu0 0.0
    %1138 = vmatprep.subr.mxu0 0.0
    %1139 = vmatpush2.msra.mxu0 0.0
    %1140 = vmatprep.subr.mxu0 0.0
    %1141 = vmatpush2.msra.mxu0 0.0
    %1142 = vmatprep.subr.mxu0 0.0
    %1143 = vmatpush2.msra.mxu0 0.0
    %1144 = vmatprep.subr.mxu0 0.0
    %1145 = vmatpush2.msra.mxu0 0.0
    %1146 = vmatprep.mubr.f32.mxu0 0.0
    %1147 = vmatmul.mubr.f32.gmra.mxu0 %v1077
    %v1148 = vpop.f32.mrf.mxu0
    %v1149 = vadd.f32 0.0, %v1148
    %v1150 = vpop.f32.mrf.mxu0
    %1151 = vmatprep.mubr.f32.mxu0 0.0
    %1152 = vmatmul.mubr.f32.gmra.mxu0 %v1078
    %v1153 = vpop.f32.mrf.mxu0
    %v1154 = vadd.f32 0.0, %v1153
    %v1155 = vpop.f32.mrf.mxu0
    %1156 = vdwg.mxu0
    %v1157 = vld [vmem:[#allocation2 + $0x70] sm:$0xff]
    %v1158 = vld [vmem:[#allocation2 + $0x78] sm:$0xff]
    %v1159 = vadd.f32 %v1157, %v1149
    %v1160 = vadd.f32 %v1158, %v1154
    %v1161 = vld [vmem:[#allocation3 + $0x7] sm:$0x1]
    %v1162 = vlaneseq
    %v1163 = vshrl.u32 %v1162, 7
    %v1164 = vsub.s32 0, %v1163
    %v1165 = vrot.slane %v1161, %v1164
    %v1166 = vmul.f32 %v1071, %v1165
    %v1167 = vmul.f32 %v1072, %v1165
    %v1168 = vadd.f32 %v1063, %v1166
    %v1169 = vadd.f32 %v1064, %v1167
    %v1170 = vsub.f32 %v1063, 0.3
    %v1171 = vsub.f32 %v1064, 0.3
    %v1172 = vmul.f32 %v1170, 0.02
    %v1173 = vmul.f32 %v1171, 0.02
    %v1174 = vsub.f32 %v1168, %v1172
    %v1175 = vsub.f32 %v1169, %v1173
    %v1176 = vmul.f32 %v1071, 0.5
    %v1177 = vmul.f32 %v1072, 0.5
    %v1178 = vsub.f32 1.0, %v1077
    %v1179 = vsub.f32 1.0, %v1078
    %v1180 = vmul.f32 %v1176, %v1178
    %v1181 = vmul.f32 %v1177, %v1179
    %v1182 = vadd.f32 %v1180, %v1159
    %v1183 = vadd.f32 %v1181, %v1160
    %vm1184 = vcmp.gt.f32.partialorder %v1182, %v1174
    %vm1185 = vcmp.gt.f32.partialorder %v1183, %v1175
    %v1186 = vsel %vm1184, 1, 0
    %v1187 = vsel %vm1185, 1, 0
    %v1188 = vcvt.s32.f32 %v1186
    %v1189 = vcvt.s32.f32 %v1187
    %s1190 = scalar_lea.vmem [#allocation6], 112
    %1191 = vst [vmem:[%s1190] sm:$0xff] %v1188
    %1192 = vst [vmem:[%s1190 + $0x8] sm:$0xff] %v1189
    %1193 = vst [vmem:[#allocation7] sm:$0xff] %v1188
    %1194 = vst [vmem:[#allocation7 + $0x8] sm:$0xff] %v1189
    %1195 = vst [vmem:[#allocation9] sm:$0xff] %v1182
    %1196 = vst [vmem:[#allocation9 + $0x8] sm:$0xff] %v1183
    %1197 = vst [vmem:[#allocation10] sm:$0xff] %v1174
    %1198 = vst [vmem:[#allocation10 + $0x8] sm:$0xff] %v1175
    // Predicated region
    $region30: #{tpu_custom_call.1} parent=1 // pred_check
      _
    $region31: #{tpu_custom_call.1} parent=1 // pred_check_branch
      %1200 = sbr.rel (0) target = $region33
    $region32: #{tpu_custom_call.1} parent=1 // pred_region
      %s1202 = ssub.s32 2048, 2048
      %1203 = vsyncadd [#allocation5], %s1202
      %s1204 = sshll.u32 [#allocation6], 4
      %s1205 = int_to_ptr.vmem [resolvable:$true] %s1204
      %1210 = dma.vmem_to_hbm [thread:$0]  %s1205, 2048, %s5, [#allocation5], 128, 128, 8
    $region33: #{tpu_custom_call.1} parent=1 // pred_fallthru
      _
    // Predicated region
    $region34: #{tpu_custom_call.1} parent=1 // pred_check
      _
    $region35: #{tpu_custom_call.1} parent=1 // pred_check_branch
      %1212 = sbr.rel (0) target = $region37
    $region36: #{tpu_custom_call.1} parent=1 // pred_region
      %s1214 = ssub.s32 256, 256
      %1215 = vsyncadd [#allocation8], %s1214
      %s1216 = sshll.u32 [#allocation7], 4
      %s1217 = int_to_ptr.vmem [resolvable:$true] %s1216
      %1222 = dma.vmem_to_hbm [thread:$0]  %s1217, 256, %s6, [#allocation8], 128, 128, 8
    $region37: #{tpu_custom_call.1} parent=1 // pred_fallthru
      _
    // Predicated region
    $region38: #{tpu_custom_call.1} parent=1 // pred_check
      _
    $region39: #{tpu_custom_call.1} parent=1 // pred_check_branch
      %1224 = sbr.rel (0) target = $region41
    $region40: #{tpu_custom_call.1} parent=1 // pred_region
      %s1226 = ssub.s32 256, 256
      %1227 = vsyncadd [#allocation8], %s1226
      %s1228 = sshll.u32 [#allocation9], 4
      %s1229 = int_to_ptr.vmem [resolvable:$true] %s1228
      %1234 = dma.vmem_to_hbm [thread:$0]  %s1229, 256, %s7, [#allocation8], 128, 128, 8
    $region41: #{tpu_custom_call.1} parent=1 // pred_fallthru
      _
    // Predicated region
    $region42: #{tpu_custom_call.1} parent=1 // pred_check
      _
    $region43: #{tpu_custom_call.1} parent=1 // pred_check_branch
      %1236 = sbr.rel (0) target = $region45
    $region44: #{tpu_custom_call.1} parent=1 // pred_region
      %s1238 = ssub.s32 256, 256
      %1239 = vsyncadd [#allocation11], %s1238
      %s1240 = sshll.u32 [#allocation10], 4
      %s1241 = int_to_ptr.vmem [resolvable:$true] %s1240
      %1246 = dma.vmem_to_hbm [thread:$0]  %s1241, 256, %s8, [#allocation11], 128, 128, 8
    $region45: #{tpu_custom_call.1} parent=1 // pred_fallthru
      _
    // Predicated region
    $region46: #{tpu_custom_call.1} parent=1 // pred_check
      _
    $region47: #{tpu_custom_call.1} parent=1 // pred_check_branch
      %1248 = sbr.rel (0) target = $region49
    $region48: #{tpu_custom_call.1} parent=1 // pred_region
      %1249 = dma.done [#allocation5], 2048
    $region49: #{tpu_custom_call.1} parent=1 // pred_fallthru
      _
    // Predicated region
    $region50: #{tpu_custom_call.1} parent=1 // pred_check
      _
    $region51: #{tpu_custom_call.1} parent=1 // pred_check_branch
      %1251 = sbr.rel (0) target = $region53
    $region52: #{tpu_custom_call.1} parent=1 // pred_region
      %1252 = dma.done [#allocation8], 256
    $region53: #{tpu_custom_call.1} parent=1 // pred_fallthru
      _
    // Predicated region
    $region54: #{tpu_custom_call.1} parent=1 // pred_check
      _
    $region55: #{tpu_custom_call.1} parent=1 // pred_check_branch
      %1254 = sbr.rel (0) target = $region57
    $region56: #{tpu_custom_call.1} parent=1 // pred_region
      %1255 = dma.done [#allocation8], 256
    $region57: #{tpu_custom_call.1} parent=1 // pred_fallthru
      _
    // Predicated region
    $region58: #{tpu_custom_call.1} parent=1 // pred_check
      _
    $region59: #{tpu_custom_call.1} parent=1 // pred_check_branch
      %1257 = sbr.rel (0) target = $region61
    $region60: #{tpu_custom_call.1} parent=1 // pred_region
      %1258 = dma.done [#allocation11], 256
    $region61: #{tpu_custom_call.1} parent=1 // pred_fallthru
      _
    %1259 = vsyncpa [#allocation4], 1
    %1260 = vsyncpa [#allocation5], 1
    %1261 = vsyncpa [#allocation8], 1
    %1262 = vsyncpa [#allocation11], 1

</llo_original>
